<compile_context>
chip_gen: v5e
topology: v5e:2x2
jax: 0.10.0
libtpu: 0.0.40
codegen_flags: <defaults>
</compile_context>

<pallas_src>
import functools
import math

import jax
import jax.numpy as jnp
from jax import lax
from jax.experimental import pallas as pl
from jax.experimental.pallas import tpu as pltpu


# ---------------------------------------------------------------------------
# In-kernel helpers (trace-time only)
# ---------------------------------------------------------------------------
def _dot(a, b):
    return jnp.dot(a, b, preferred_element_type=jnp.float32)


def _dot_nt(a, b):
    # a @ b.T without materializing a transpose: contract last dim of both operands.
    return lax.dot_general(
        a, b, (((1,), (1,)), ((), ())), preferred_element_type=jnp.float32
    )


def _softmax_rows(e):
    e = e - jnp.max(e, axis=-1, keepdims=True)
    p = jnp.exp(e)
    return p * pl.reciprocal(jnp.sum(p, axis=-1, keepdims=True))


def _mha(x_q, x_kv, wqkv, bqkv, wo, bo, mask2d, attn_out_ref, *, n_heads,
         inv_scale, fused_qkv):
    """Multi-head attention on in-VMEM tiles; writes per-head attn to attn_out_ref."""
    D = x_q.shape[-1]
    dh = D // n_heads
    if fused_qkv:
        qkv = _dot(x_q, wqkv) + bqkv                      # (Lq, 3D)
        q, k, v = qkv[:, :D], qkv[:, D:2 * D], qkv[:, 2 * D:]
    else:
        q = _dot(x_q, wqkv[:, :D]) + bqkv[:, :D]          # (Lq, D)
        kv = _dot(x_kv, wqkv[:, D:]) + bqkv[:, D:]        # (Lk, 2D)
        k, v = kv[:, :D], kv[:, D:]
    ctx = []
    for h in range(n_heads):                              # static unroll
        sl = slice(h * dh, (h + 1) * dh)
        e = _dot_nt(q[:, sl], k[:, sl]) * inv_scale       # (Lq, Lk)
        e = jnp.where(mask2d == 0, jnp.float32(-1e10), e)
        a = _softmax_rows(e)
        attn_out_ref[h] = a
        ctx.append(_dot(a, v[:, sl]))                     # (Lq, dh)
    ctx = jnp.concatenate(ctx, axis=-1)                   # (Lq, D)
    return _dot(ctx, wo) + bo


def _add_ln(x, y, g, b):
    """LayerNorm(x + y) over last dim (PyTorch defaults: eps=1e-5, biased var)."""
    z = x + y
    mu = jnp.mean(z, axis=-1, keepdims=True)
    var = jnp.mean((z - mu) ** 2, axis=-1, keepdims=True)
    return (z - mu) * lax.rsqrt(var + 1e-5) * g + b


# ---------------------------------------------------------------------------
# Fused decoder-layer kernel (one grid step = one batch element)
# ---------------------------------------------------------------------------
def _decoder_layer_kernel(
    mask_ref, smask_ref, x_ref, src_ref,
    wqkv_s_ref, bqkv_s_ref, wo_s_ref, bo_s_ref, gs_ref, bs_ref,
    wqkv_e_ref, bqkv_e_ref, wo_e_ref, bo_e_ref, ge_ref, be_ref,
    w1_ref, b1_ref, w2_ref, b2_ref, gf_ref, bf_ref,
    out_ref, sattn_ref, eattn_ref, *, n_heads, inv_scale,
):
    x = x_ref[...]            # (L, D)
    src = src_ref[...]        # (Ls, D)
    m_self = mask_ref[...]    # (L, L)  int
    m_src = smask_ref[...]    # (1, Ls) int

    # --- self attention + residual + LayerNorm --------------------------------
    ax = _mha(x, x, wqkv_s_ref[...], bqkv_s_ref[...], wo_s_ref[...], bo_s_ref[...],
              m_self, sattn_ref, n_heads=n_heads, inv_scale=inv_scale, fused_qkv=True)
    x = _add_ln(x, ax, gs_ref[...], bs_ref[...])

    # --- encoder (cross) attention + residual + LayerNorm ---------------------
    ax = _mha(x, src, wqkv_e_ref[...], bqkv_e_ref[...], wo_e_ref[...], bo_e_ref[...],
              m_src, eattn_ref, n_heads=n_heads, inv_scale=inv_scale, fused_qkv=False)
    x = _add_ln(x, ax, ge_ref[...], be_ref[...])

    # --- position-wise feed-forward + residual + LayerNorm --------------------
    h = jnp.maximum(_dot(x, w1_ref[...]) + b1_ref[...], 0.0)
    fx = _dot(h, w2_ref[...]) + b2_ref[...]
    out_ref[...] = _add_ln(x, fx, gf_ref[...], bf_ref[...])


def decoder_layer(lp, x, mask, src_enc, src_mask, n_heads):
    """x: (B, L, D), mask: (B, 1, L, L) int, src_enc: (B, Ls, D), src_mask: (B, 1, 1, Ls) int."""
    B, L, D = x.shape
    Ls = src_enc.shape[1]
    P = lp["w1"].shape[1]
    inv_scale = 1.0 / math.sqrt(D // n_heads)
    kern = functools.partial(_decoder_layer_kernel, n_heads=n_heads, inv_scale=inv_scale)

    def pin(shape):  # weights resident across the (parallel) batch grid
        return pl.BlockSpec(shape, lambda b: (0, 0))

    out, sattn, eattn = pl.pallas_call(
        kern,
        grid=(B,),
        in_specs=[
            pl.BlockSpec((None, None, L, L), lambda b: (b, 0, 0, 0)),   # mask
            pl.BlockSpec((None, None, 1, Ls), lambda b: (b, 0, 0, 0)),  # src_mask
            pl.BlockSpec((None, L, D), lambda b: (b, 0, 0)),            # x
            pl.BlockSpec((None, Ls, D), lambda b: (b, 0, 0)),           # src_enc
            pin((D, 3 * D)), pin((1, 3 * D)), pin((D, D)), pin((1, D)), # self-attn
            pin((1, D)), pin((1, D)),                                   # ln_self
            pin((D, 3 * D)), pin((1, 3 * D)), pin((D, D)), pin((1, D)), # enc-attn
            pin((1, D)), pin((1, D)),                                   # ln_enc
            pin((D, P)), pin((1, P)), pin((P, D)), pin((1, D)),         # ffn
            pin((1, D)), pin((1, D)),                                   # ln_ff
        ],
        out_specs=(
            pl.BlockSpec((None, L, D), lambda b: (b, 0, 0)),
            pl.BlockSpec((None, n_heads, L, L), lambda b: (b, 0, 0, 0)),
            pl.BlockSpec((None, n_heads, L, Ls), lambda b: (b, 0, 0, 0)),
        ),
        out_shape=(
            jax.ShapeDtypeStruct((B, L, D), jnp.float32),
            jax.ShapeDtypeStruct((B, n_heads, L, L), jnp.float32),
            jax.ShapeDtypeStruct((B, n_heads, L, Ls), jnp.float32),
        ),
        compiler_params=pltpu.CompilerParams(dimension_semantics=("parallel",)),
    )(
        mask, src_mask, x, src_enc,
        lp["self_wqkv"], lp["self_bqkv"], lp["self_wo"], lp["self_bo"],
        lp["ln_self_g"], lp["ln_self_b"],
        lp["enc_wqkv"], lp["enc_bqkv"], lp["enc_wo"], lp["enc_bo"],
        lp["ln_enc_g"], lp["ln_enc_b"],
        lp["w1"], lp["b1"], lp["w2"], lp["b2"],
        lp["ln_ff_g"], lp["ln_ff_b"],
    )
    return out, sattn, eattn


# ---------------------------------------------------------------------------
# Output projection kernel (grid over batch, parallel)
# ---------------------------------------------------------------------------
def _proj_kernel(x_ref, w_ref, b_ref, o_ref):
    o_ref[...] = _dot(x_ref[...], w_ref[...]) + b_ref[...]


def output_projection(x, w, b):
    """x: (B, L, D) @ w: (D, O) + b: (1, O) -> (B, L, O)."""
    B, L, D = x.shape
    O = w.shape[1]
    return pl.pallas_call(
        _proj_kernel,
        grid=(B,),
        in_specs=[
            pl.BlockSpec((None, L, D), lambda i: (i, 0, 0)),
            pl.BlockSpec((D, O), lambda i: (0, 0)),
            pl.BlockSpec((1, O), lambda i: (0, 0)),
        ],
        out_specs=pl.BlockSpec((None, L, O), lambda i: (i, 0, 0)),
        out_shape=jax.ShapeDtypeStruct((B, L, O), jnp.float32),
        compiler_params=pltpu.CompilerParams(dimension_semantics=("parallel",)),
    )(x, w, b)


# ---------------------------------------------------------------------------
# Module forward (embedding gather in plain JAX, hot paths in Pallas)
# ---------------------------------------------------------------------------
def decoder_forward(params, x_tokens, mask, src_enc, src_mask, n_heads):
    B, L = x_tokens.shape
    hid = params["tok_emb"].shape[1]
    pos = jnp.arange(L)[None, :]                               # (1, L) broadcast over batch
    h = params["tok_emb"][x_tokens] * jnp.sqrt(jnp.float32(hid))
    h = h + params["pos_emb"][pos]                             # dropout = identity (eval)
    self_attn_list, enc_attn_list = [], []
    for lp in params["layers"]:
        h, self_attn, enc_attn = decoder_layer(lp, h, mask, src_enc, src_mask, n_heads)
        self_attn_list.append(self_attn)
        enc_attn_list.append(enc_attn)
    logits = output_projection(h, params["wout"], params["bout"])
    return logits, self_attn_list, enc_attn_list


# ---------------------------------------------------------------------------
# Deterministic parameter initialization (QKV weights stored fused: (D, 3D))
# ---------------------------------------------------------------------------
def _init_linear(key, din, dout):
    kw, kb = jax.random.split(key)
    w = jax.random.normal(kw, (din, dout), jnp.float32) * (1.0 / math.sqrt(din))
    b = jax.random.normal(kb, (1, dout), jnp.float32) * 0.01
    return w, b


def _init_mha(key, hid, prefix, lp):
    kqkv, ko = jax.random.split(key)
    lp[prefix + "_wqkv"], lp[prefix + "_bqkv"] = _init_linear(kqkv, hid, 3 * hid)
    lp[prefix + "_wo"], lp[prefix + "_bo"] = _init_linear(ko, hid, hid)


def _init_layer(key, hid, pf):
    ks = jax.random.split(key, 4)
    lp = {}
    _init_mha(ks[0], hid, "self", lp)
    _init_mha(ks[1], hid, "enc", lp)
    lp["w1"], lp["b1"] = _init_linear(ks[2], hid, pf)
    lp["w2"], lp["b2"] = _init_linear(ks[3], pf, hid)
    for name in ("ln_self", "ln_enc", "ln_ff"):
        lp[name + "_g"] = jnp.ones((1, hid), jnp.float32)
        lp[name + "_b"] = jnp.zeros((1, hid), jnp.float32)
    return lp


def init_params(key, out_dim, hid, pf, n_layers, max_len):
    keys = jax.random.split(key, 3 + n_layers)
    params = {
        "tok_emb": jax.random.normal(keys[0], (out_dim, hid), jnp.float32) * 0.02,
        "pos_emb": jax.random.normal(keys[1], (max_len, hid), jnp.float32) * 0.02,
    }
    params["wout"], params["bout"] = _init_linear(keys[2], hid, out_dim)
    params["layers"] = [_init_layer(keys[3 + i], hid, pf) for i in range(n_layers)]
    return params


# ---------------------------------------------------------------------------
if __name__ == "__main__":
    # Small config: out_dim=16 (vocab), hid=32, pf=64, 2 layers, 4 heads, max_len=16.
    B, L, L_SRC = 2, 8, 8
    OUT_DIM, HID, PF, N_LAYERS, N_HEADS, MAX_LEN = 16, 32, 64, 2, 4, 16

    root = jax.random.PRNGKey(0)
    k_par, k_tok, k_src = jax.random.split(root, 3)

    params = init_params(k_par, OUT_DIM, HID, PF, N_LAYERS, MAX_LEN)

    x_tokens = jax.random.randint(k_tok, (B, L), 0, OUT_DIM, dtype=jnp.int32)
    src_enc = jax.random.normal(k_src, (B, L_SRC, HID), jnp.float32)
    # causal self-attention mask (B, 1, L, L), full source mask (B, 1, 1, L_SRC)
    mask = jnp.broadcast_to(jnp.tril(jnp.ones((L, L), jnp.int32))[None, None], (B, 1, L, L))
    src_mask = jnp.ones((B, 1, 1, L_SRC), jnp.int32)

    fwd = jax.jit(functools.partial(decoder_forward, n_heads=N_HEADS))
    logits, self_attns, enc_attns = fwd(params, x_tokens, mask, src_enc, src_mask)
    jax.block_until_ready(logits)
    jax.block_until_ready(self_attns[-1])
    jax.block_until_ready(enc_attns[-1])

    assert logits.shape == (B, L, OUT_DIM)
    assert self_attns[0].shape == (B, N_HEADS, L, L)
    assert enc_attns[0].shape == (B, N_HEADS, L, L_SRC)
    print("KERNEL_OK")
</pallas_src>

<mosaic_0001>
module attributes {stable_mosaic.version = 11 : i64} {
  func.func @_proj_kernel(%arg0: i32, %arg1: memref<1x8x32xf32, #tpu.memory_space<vmem>>, %arg2: memref<32x16xf32, #tpu.memory_space<vmem>>, %arg3: memref<1x16xf32, #tpu.memory_space<vmem>>, %arg4: memref<1x8x16xf32, #tpu.memory_space<vmem>>) attributes {dimension_semantics = [#tpu.dimension_semantics<parallel>], iteration_bounds = array<i64: 2>, scalar_prefetch = 0 : i64, scratch_operands = 0 : i64, tpu.core_type = #tpu.core_type<tc>, window_params = [{transform_indices = @transform_0, window_bounds = array<i64: 1, 8, 32>}, {pipeline_mode = #tpu.pipeline_mode<synchronous>, transform_indices = @transform_1, window_bounds = array<i64: 32, 16>}, {pipeline_mode = #tpu.pipeline_mode<synchronous>, transform_indices = @transform_2, window_bounds = array<i64: 1, 16>}, {transform_indices = @transform_3, window_bounds = array<i64: 1, 8, 16>}]} {
    %c0 = arith.constant 0 : index
    %c0_0 = arith.constant 0 : index
    %c0_1 = arith.constant 0 : index
    %0 = vector.load %arg1[%c0, %c0_0, %c0_1] : memref<1x8x32xf32, #tpu.memory_space<vmem>>, vector<1x8x32xf32>
    %1 = vector.shape_cast %0 : vector<1x8x32xf32> to vector<8x32xf32>
    %c0_2 = arith.constant 0 : index
    %c0_3 = arith.constant 0 : index
    %2 = vector.load %arg2[%c0_2, %c0_3] : memref<32x16xf32, #tpu.memory_space<vmem>>, vector<32x16xf32>
    %cst = arith.constant dense<0.000000e+00> : vector<8x16xf32>
    %3 = tpu.matmul %1, %2, %cst {dimension_numbers = #tpu.dot_dimension_numbers<[1], [0], [0], [1], [0, 0, 1, 1], [], []>} : vector<8x32xf32>, vector<32x16xf32>, vector<8x16xf32> -> vector<8x16xf32>
    %c0_4 = arith.constant 0 : index
    %c0_5 = arith.constant 0 : index
    %4 = vector.load %arg3[%c0_4, %c0_5] : memref<1x16xf32, #tpu.memory_space<vmem>>, vector<1x16xf32>
    %5 = vector.broadcast %4 : vector<1x16xf32> to vector<8x16xf32>
    %6 = arith.addf %3, %5 : vector<8x16xf32>
    %c0_6 = arith.constant 0 : index
    %c0_7 = arith.constant 0 : index
    %c0_8 = arith.constant 0 : index
    %7 = vector.load %arg4[%c0_6, %c0_7, %c0_8] : memref<1x8x16xf32, #tpu.memory_space<vmem>>, vector<1x8x16xf32>
    %8 = vector.shape_cast %7 : vector<1x8x16xf32> to vector<8x16xf32>
    %9 = vector.shape_cast %6 : vector<8x16xf32> to vector<1x8x16xf32>
    tpu.vector_store %arg4[%c0_6, %c0_7, %c0_8], %9 {strides = array<i32>} : memref<1x8x16xf32, #tpu.memory_space<vmem>>, vector<1x8x16xf32>,
    return
  }
  func.func @transform_0(%arg0: i32) -> (i32, i32, i32) {
    %c0_i32 = arith.constant 0 : i32
    %c0_i32_0 = arith.constant 0 : i32
    %c0_i32_1 = arith.constant 0 : i32
    return %arg0, %c0_i32, %c0_i32_0 : i32, i32, i32
  }
  func.func @transform_1(%arg0: i32) -> (i32, i32) {
    %c0_i32 = arith.constant 0 : i32
    %c0_i32_0 = arith.constant 0 : i32
    %c0_i32_1 = arith.constant 0 : i32
    return %c0_i32, %c0_i32_0 : i32, i32
  }
  func.func @transform_2(%arg0: i32) -> (i32, i32) {
    %c0_i32 = arith.constant 0 : i32
    %c0_i32_0 = arith.constant 0 : i32
    %c0_i32_1 = arith.constant 0 : i32
    return %c0_i32, %c0_i32_0 : i32, i32
  }
  func.func @transform_3(%arg0: i32) -> (i32, i32, i32) {
    %c0_i32 = arith.constant 0 : i32
    %c0_i32_0 = arith.constant 0 : i32
    %c0_i32_1 = arith.constant 0 : i32
    return %arg0, %c0_i32, %c0_i32_0 : i32, i32, i32
  }
}

module attributes {stable_mosaic.version = 11 : i64} {
  func.func @_decoder_layer_kernel(%arg0: i32, %arg1: memref<1x1x8x8xi32, #tpu.memory_space<vmem>>, %arg2: memref<1x1x1x8xi32, #tpu.memory_space<vmem>>, %arg3: memref<1x8x32xf32, #tpu.memory_space<vmem>>, %arg4: memref<1x8x32xf32, #tpu.memory_space<vmem>>, %arg5: memref<32x96xf32, #tpu.memory_space<vmem>>, %arg6: memref<1x96xf32, #tpu.memory_space<vmem>>, %arg7: memref<32x32xf32, #tpu.memory_space<vmem>>, %arg8: memref<1x32xf32, #tpu.memory_space<vmem>>, %arg9: memref<1x32xf32, #tpu.memory_space<vmem>>, %arg10: memref<1x32xf32, #tpu.memory_space<vmem>>, %arg11: memref<32x96xf32, #tpu.memory_space<vmem>>, %arg12: memref<1x96xf32, #tpu.memory_space<vmem>>, %arg13: memref<32x32xf32, #tpu.memory_space<vmem>>, %arg14: memref<1x32xf32, #tpu.memory_space<vmem>>, %arg15: memref<1x32xf32, #tpu.memory_space<vmem>>, %arg16: memref<1x32xf32, #tpu.memory_space<vmem>>, %arg17: memref<32x64xf32, #tpu.memory_space<vmem>>, %arg18: memref<1x64xf32, #tpu.memory_space<vmem>>, %arg19: memref<64x32xf32, #tpu.memory_space<vmem>>, %arg20: memref<1x32xf32, #tpu.memory_space<vmem>>, %arg21: memref<1x32xf32, #tpu.memory_space<vmem>>, %arg22: memref<1x32xf32, #tpu.memory_space<vmem>>, %arg23: memref<1x8x32xf32, #tpu.memory_space<vmem>>, %arg24: memref<1x4x8x8xf32, #tpu.memory_space<vmem>>, %arg25: memref<1x4x8x8xf32, #tpu.memory_space<vmem>>) attributes {dimension_semantics = [#tpu.dimension_semantics<parallel>], iteration_bounds = array<i64: 2>, scalar_prefetch = 0 : i64, scratch_operands = 0 : i64, tpu.core_type = #tpu.core_type<tc>, window_params = [{transform_indices = @transform_0, window_bounds = array<i64: 1, 1, 8, 8>}, {transform_indices = @transform_1, window_bounds = array<i64: 1, 1, 1, 8>}, {transform_indices = @transform_2, window_bounds = array<i64: 1, 8, 32>}, {transform_indices = @transform_3, window_bounds = array<i64: 1, 8, 32>}, {pipeline_mode = #tpu.pipeline_mode<synchronous>, transform_indices = @transform_4, window_bounds = array<i64: 32, 96>}, {pipeline_mode = #tpu.pipeline_mode<synchronous>, transform_indices = @transform_5, window_bounds = array<i64: 1, 96>}, {pipeline_mode = #tpu.pipeline_mode<synchronous>, transform_indices = @transform_6, window_bounds = array<i64: 32, 32>}, {pipeline_mode = #tpu.pipeline_mode<synchronous>, transform_indices = @transform_7, window_bounds = array<i64: 1, 32>}, {pipeline_mode = #tpu.pipeline_mode<synchronous>, transform_indices = @transform_8, window_bounds = array<i64: 1, 32>}, {pipeline_mode = #tpu.pipeline_mode<synchronous>, transform_indices = @transform_9, window_bounds = array<i64: 1, 32>}, {pipeline_mode = #tpu.pipeline_mode<synchronous>, transform_indices = @transform_10, window_bounds = array<i64: 32, 96>}, {pipeline_mode = #tpu.pipeline_mode<synchronous>, transform_indices = @transform_11, window_bounds = array<i64: 1, 96>}, {pipeline_mode = #tpu.pipeline_mode<synchronous>, transform_indices = @transform_12, window_bounds = array<i64: 32, 32>}, {pipeline_mode = #tpu.pipeline_mode<synchronous>, transform_indices = @transform_13, window_bounds = array<i64: 1, 32>}, {pipeline_mode = #tpu.pipeline_mode<synchronous>, transform_indices = @transform_14, window_bounds = array<i64: 1, 32>}, {pipeline_mode = #tpu.pipeline_mode<synchronous>, transform_indices = @transform_15, window_bounds = array<i64: 1, 32>}, {pipeline_mode = #tpu.pipeline_mode<synchronous>, transform_indices = @transform_16, window_bounds = array<i64: 32, 64>}, {pipeline_mode = #tpu.pipeline_mode<synchronous>, transform_indices = @transform_17, window_bounds = array<i64: 1, 64>}, {pipeline_mode = #tpu.pipeline_mode<synchronous>, transform_indices = @transform_18, window_bounds = array<i64: 64, 32>}, {pipeline_mode = #tpu.pipeline_mode<synchronous>, transform_indices = @transform_19, window_bounds = array<i64: 1, 32>}, {pipeline_mode = #tpu.pipeline_mode<synchronous>, transform_indices = @transform_20, window_bounds = array<i64: 1, 32>}, {pipeline_mode = #tpu.pipeline_mode<synchronous>, transform_indices = @transform_21, window_bounds = array<i64: 1, 32>}, {transform_indices = @transform_22, window_bounds = array<i64: 1, 8, 32>}, {transform_indices = @transform_23, window_bounds = array<i64: 1, 4, 8, 8>}, {transform_indices = @transform_24, window_bounds = array<i64: 1, 4, 8, 8>}]} {
    %c0 = arith.constant 0 : index
    %c0_0 = arith.constant 0 : index
    %c0_1 = arith.constant 0 : index
    %0 = vector.load %arg3[%c0, %c0_0, %c0_1] : memref<1x8x32xf32, #tpu.memory_space<vmem>>, vector<1x8x32xf32>
    %1 = vector.shape_cast %0 : vector<1x8x32xf32> to vector<8x32xf32>
    %c0_2 = arith.constant 0 : index
    %c0_3 = arith.constant 0 : index
    %c0_4 = arith.constant 0 : index
    %2 = vector.load %arg4[%c0_2, %c0_3, %c0_4] : memref<1x8x32xf32, #tpu.memory_space<vmem>>, vector<1x8x32xf32>
    %3 = vector.shape_cast %2 : vector<1x8x32xf32> to vector<8x32xf32>
    %c0_5 = arith.constant 0 : index
    %c0_6 = arith.constant 0 : index
    %c0_7 = arith.constant 0 : index
    %c0_8 = arith.constant 0 : index
    %4 = vector.load %arg1[%c0_5, %c0_6, %c0_7, %c0_8] : memref<1x1x8x8xi32, #tpu.memory_space<vmem>>, vector<1x1x8x8xi32>
    %5 = vector.shape_cast %4 : vector<1x1x8x8xi32> to vector<8x8xi32>
    %c0_9 = arith.constant 0 : index
    %c0_10 = arith.constant 0 : index
    %c0_11 = arith.constant 0 : index
    %c0_12 = arith.constant 0 : index
    %6 = vector.load %arg2[%c0_9, %c0_10, %c0_11, %c0_12] : memref<1x1x1x8xi32, #tpu.memory_space<vmem>>, vector<1x1x1x8xi32>
    %7 = vector.shape_cast %6 : vector<1x1x1x8xi32> to vector<1x8xi32>
    %c0_13 = arith.constant 0 : index
    %c0_14 = arith.constant 0 : index
    %8 = vector.load %arg5[%c0_13, %c0_14] : memref<32x96xf32, #tpu.memory_space<vmem>>, vector<32x96xf32>
    %c0_15 = arith.constant 0 : index
    %c0_16 = arith.constant 0 : index
    %9 = vector.load %arg6[%c0_15, %c0_16] : memref<1x96xf32, #tpu.memory_space<vmem>>, vector<1x96xf32>
    %c0_17 = arith.constant 0 : index
    %c0_18 = arith.constant 0 : index
    %10 = vector.load %arg7[%c0_17, %c0_18] : memref<32x32xf32, #tpu.memory_space<vmem>>, vector<32x32xf32>
    %c0_19 = arith.constant 0 : index
    %c0_20 = arith.constant 0 : index
    %11 = vector.load %arg8[%c0_19, %c0_20] : memref<1x32xf32, #tpu.memory_space<vmem>>, vector<1x32xf32>
    %cst = arith.constant dense<0.000000e+00> : vector<8x96xf32>
    %12 = tpu.matmul %1, %8, %cst {dimension_numbers = #tpu.dot_dimension_numbers<[1], [0], [0], [1], [0, 0, 1, 1], [], []>} : vector<8x32xf32>, vector<32x96xf32>, vector<8x96xf32> -> vector<8x96xf32>
    %13 = vector.broadcast %9 : vector<1x96xf32> to vector<8x96xf32>
    %14 = arith.addf %12, %13 : vector<8x96xf32>
    %15 = vector.extract_strided_slice %14 {offsets = [0, 0], sizes = [8, 32], strides = [1, 1]} : vector<8x96xf32> to vector<8x32xf32>
    %16 = vector.extract_strided_slice %14 {offsets = [0, 32], sizes = [8, 32], strides = [1, 1]} : vector<8x96xf32> to vector<8x32xf32>
    %17 = vector.extract_strided_slice %14 {offsets = [0, 64], sizes = [8, 32], strides = [1, 1]} : vector<8x96xf32> to vector<8x32xf32>
    %18 = vector.extract_strided_slice %15 {offsets = [0, 0], sizes = [8, 8], strides = [1, 1]} : vector<8x32xf32> to vector<8x8xf32>
    %19 = vector.extract_strided_slice %16 {offsets = [0, 0], sizes = [8, 8], strides = [1, 1]} : vector<8x32xf32> to vector<8x8xf32>
    %cst_21 = arith.constant dense<0.000000e+00> : vector<8x8xf32>
    %20 = tpu.matmul %18, %19, %cst_21 {dimension_numbers = #tpu.dot_dimension_numbers<[1], [1], [0], [0], [0, 0, 1, 0], [], []>} : vector<8x8xf32>, vector<8x8xf32>, vector<8x8xf32> -> vector<8x8xf32>
    %cst_22 = arith.constant 0.353553385 : f32
    %21 = vector.broadcast %cst_22 : f32 to vector<8x8xf32>
    %22 = arith.mulf %20, %21 : vector<8x8xf32>
    %c0_i32 = arith.constant 0 : i32
    %23 = vector.broadcast %c0_i32 : i32 to vector<8x8xi32>
    %24 = arith.cmpi eq, %5, %23 : vector<8x8xi32>
    %cst_23 = arith.constant -1.000000e+10 : f32
    %25 = vector.broadcast %cst_23 : f32 to vector<8x8xf32>
    %26 = arith.select %24, %25, %22 : vector<8x8xi1>, vector<8x8xf32>
    %cst_24 = arith.constant dense<0xFF800000> : vector<8xf32>
    %27 = vector.multi_reduction <maximumf>, %26, %cst_24 [1] : vector<8x8xf32> to vector<8xf32>
    %28 = vector.shape_cast %27 : vector<8xf32> to vector<8x1xf32>
    %29 = vector.broadcast %28 : vector<8x1xf32> to vector<8x8xf32>
    %30 = arith.subf %26, %29 : vector<8x8xf32>
    %31 = math.exp %30 : vector<8x8xf32>
    %cst_25 = arith.constant dense<0.000000e+00> : vector<8xf32>
    %32 = vector.multi_reduction <add>, %31, %cst_25 [1] : vector<8x8xf32> to vector<8xf32>
    %33 = vector.shape_cast %32 : vector<8xf32> to vector<8x1xf32>
    %34 = tpu.reciprocal %33 : vector<8x1xf32> -> vector<8x1xf32>
    %35 = vector.broadcast %34 : vector<8x1xf32> to vector<8x8xf32>
    %36 = arith.mulf %31, %35 : vector<8x8xf32>
    %c0_26 = arith.constant 0 : index
    %c0_27 = arith.constant 0 : index
    %c0_28 = arith.constant 0 : index
    %c0_29 = arith.constant 0 : index
    %37 = vector.load %arg24[%c0_26, %c0_27, %c0_28, %c0_29] : memref<1x4x8x8xf32, #tpu.memory_space<vmem>>, vector<1x1x8x8xf32>
    %38 = vector.shape_cast %37 : vector<1x1x8x8xf32> to vector<8x8xf32>
    %39 = vector.shape_cast %36 : vector<8x8xf32> to vector<1x1x8x8xf32>
    tpu.vector_store %arg24[%c0_26, %c0_27, %c0_28, %c0_29], %39 {strides = array<i32>} : memref<1x4x8x8xf32, #tpu.memory_space<vmem>>, vector<1x1x8x8xf32>,
    %40 = vector.extract_strided_slice %17 {offsets = [0, 0], sizes = [8, 8], strides = [1, 1]} : vector<8x32xf32> to vector<8x8xf32>
    %cst_30 = arith.constant dense<0.000000e+00> : vector<8x8xf32>
    %41 = tpu.matmul %36, %40, %cst_30 {dimension_numbers = #tpu.dot_dimension_numbers<[1], [0], [0], [1], [0, 0, 1, 1], [], []>} : vector<8x8xf32>, vector<8x8xf32>, vector<8x8xf32> -> vector<8x8xf32>
    %42 = vector.extract_strided_slice %15 {offsets = [0, 8], sizes = [8, 8], strides = [1, 1]} : vector<8x32xf32> to vector<8x8xf32>
    %43 = vector.extract_strided_slice %16 {offsets = [0, 8], sizes = [8, 8], strides = [1, 1]} : vector<8x32xf32> to vector<8x8xf32>
    %cst_31 = arith.constant dense<0.000000e+00> : vector<8x8xf32>
    %44 = tpu.matmul %42, %43, %cst_31 {dimension_numbers = #tpu.dot_dimension_numbers<[1], [1], [0], [0], [0, 0, 1, 0], [], []>} : vector<8x8xf32>, vector<8x8xf32>, vector<8x8xf32> -> vector<8x8xf32>
    %cst_32 = arith.constant 0.353553385 : f32
    %45 = vector.broadcast %cst_32 : f32 to vector<8x8xf32>
    %46 = arith.mulf %44, %45 : vector<8x8xf32>
    %c0_i32_33 = arith.constant 0 : i32
    %47 = vector.broadcast %c0_i32_33 : i32 to vector<8x8xi32>
    %48 = arith.cmpi eq, %5, %47 : vector<8x8xi32>
    %cst_34 = arith.constant -1.000000e+10 : f32
    %49 = vector.broadcast %cst_34 : f32 to vector<8x8xf32>
    %50 = arith.select %48, %49, %46 : vector<8x8xi1>, vector<8x8xf32>
    %cst_35 = arith.constant dense<0xFF800000> : vector<8xf32>
    %51 = vector.multi_reduction <maximumf>, %50, %cst_35 [1] : vector<8x8xf32> to vector<8xf32>
    %52 = vector.shape_cast %51 : vector<8xf32> to vector<8x1xf32>
    %53 = vector.broadcast %52 : vector<8x1xf32> to vector<8x8xf32>
    %54 = arith.subf %50, %53 : vector<8x8xf32>
    %55 = math.exp %54 : vector<8x8xf32>
    %cst_36 = arith.constant dense<0.000000e+00> : vector<8xf32>
    %56 = vector.multi_reduction <add>, %55, %cst_36 [1] : vector<8x8xf32> to vector<8xf32>
    %57 = vector.shape_cast %56 : vector<8xf32> to vector<8x1xf32>
    %58 = tpu.reciprocal %57 : vector<8x1xf32> -> vector<8x1xf32>
    %59 = vector.broadcast %58 : vector<8x1xf32> to vector<8x8xf32>
    %60 = arith.mulf %55, %59 : vector<8x8xf32>
    %c0_37 = arith.constant 0 : index
    %c1 = arith.constant 1 : index
    %c0_38 = arith.constant 0 : index
    %c0_39 = arith.constant 0 : index
    %61 = vector.load %arg24[%c0_37, %c1, %c0_38, %c0_39] : memref<1x4x8x8xf32, #tpu.memory_space<vmem>>, vector<1x1x8x8xf32>
    %62 = vector.shape_cast %61 : vector<1x1x8x8xf32> to vector<8x8xf32>
    %63 = vector.shape_cast %60 : vector<8x8xf32> to vector<1x1x8x8xf32>
    tpu.vector_store %arg24[%c0_37, %c1, %c0_38, %c0_39], %63 {strides = array<i32>} : memref<1x4x8x8xf32, #tpu.memory_space<vmem>>, vector<1x1x8x8xf32>,
    %64 = vector.extract_strided_slice %17 {offsets = [0, 8], sizes = [8, 8], strides = [1, 1]} : vector<8x32xf32> to vector<8x8xf32>
    %cst_40 = arith.constant dense<0.000000e+00> : vector<8x8xf32>
    %65 = tpu.matmul %60, %64, %cst_40 {dimension_numbers = #tpu.dot_dimension_numbers<[1], [0], [0], [1], [0, 0, 1, 1], [], []>} : vector<8x8xf32>, vector<8x8xf32>, vector<8x8xf32> -> vector<8x8xf32>
    %66 = vector.extract_strided_slice %15 {offsets = [0, 16], sizes = [8, 8], strides = [1, 1]} : vector<8x32xf32> to vector<8x8xf32>
    %67 = vector.extract_strided_slice %16 {offsets = [0, 16], sizes = [8, 8], strides = [1, 1]} : vector<8x32xf32> to vector<8x8xf32>
    %cst_41 = arith.constant dense<0.000000e+00> : vector<8x8xf32>
    %68 = tpu.matmul %66, %67, %cst_41 {dimension_numbers = #tpu.dot_dimension_numbers<[1], [1], [0], [0], [0, 0, 1, 0], [], []>} : vector<8x8xf32>, vector<8x8xf32>, vector<8x8xf32> -> vector<8x8xf32>
    %cst_42 = arith.constant 0.353553385 : f32
    %69 = vector.broadcast %cst_42 : f32 to vector<8x8xf32>
    %70 = arith.mulf %68, %69 : vector<8x8xf32>
    %c0_i32_43 = arith.constant 0 : i32
    %71 = vector.broadcast %c0_i32_43 : i32 to vector<8x8xi32>
    %72 = arith.cmpi eq, %5, %71 : vector<8x8xi32>
    %cst_44 = arith.constant -1.000000e+10 : f32
    %73 = vector.broadcast %cst_44 : f32 to vector<8x8xf32>
    %74 = arith.select %72, %73, %70 : vector<8x8xi1>, vector<8x8xf32>
    %cst_45 = arith.constant dense<0xFF800000> : vector<8xf32>
    %75 = vector.multi_reduction <maximumf>, %74, %cst_45 [1] : vector<8x8xf32> to vector<8xf32>
    %76 = vector.shape_cast %75 : vector<8xf32> to vector<8x1xf32>
    %77 = vector.broadcast %76 : vector<8x1xf32> to vector<8x8xf32>
    %78 = arith.subf %74, %77 : vector<8x8xf32>
    %79 = math.exp %78 : vector<8x8xf32>
    %cst_46 = arith.constant dense<0.000000e+00> : vector<8xf32>
    %80 = vector.multi_reduction <add>, %79, %cst_46 [1] : vector<8x8xf32> to vector<8xf32>
    %81 = vector.shape_cast %80 : vector<8xf32> to vector<8x1xf32>
    %82 = tpu.reciprocal %81 : vector<8x1xf32> -> vector<8x1xf32>
    %83 = vector.broadcast %82 : vector<8x1xf32> to vector<8x8xf32>
    %84 = arith.mulf %79, %83 : vector<8x8xf32>
    %c0_47 = arith.constant 0 : index
    %c2 = arith.constant 2 : index
    %c0_48 = arith.constant 0 : index
    %c0_49 = arith.constant 0 : index
    %85 = vector.load %arg24[%c0_47, %c2, %c0_48, %c0_49] : memref<1x4x8x8xf32, #tpu.memory_space<vmem>>, vector<1x1x8x8xf32>
    %86 = vector.shape_cast %85 : vector<1x1x8x8xf32> to vector<8x8xf32>
    %87 = vector.shape_cast %84 : vector<8x8xf32> to vector<1x1x8x8xf32>
    tpu.vector_store %arg24[%c0_47, %c2, %c0_48, %c0_49], %87 {strides = array<i32>} : memref<1x4x8x8xf32, #tpu.memory_space<vmem>>, vector<1x1x8x8xf32>,
    %88 = vector.extract_strided_slice %17 {offsets = [0, 16], sizes = [8, 8], strides = [1, 1]} : vector<8x32xf32> to vector<8x8xf32>
    %cst_50 = arith.constant dense<0.000000e+00> : vector<8x8xf32>
    %89 = tpu.matmul %84, %88, %cst_50 {dimension_numbers = #tpu.dot_dimension_numbers<[1], [0], [0], [1], [0, 0, 1, 1], [], []>} : vector<8x8xf32>, vector<8x8xf32>, vector<8x8xf32> -> vector<8x8xf32>
    %90 = vector.extract_strided_slice %15 {offsets = [0, 24], sizes = [8, 8], strides = [1, 1]} : vector<8x32xf32> to vector<8x8xf32>
    %91 = vector.extract_strided_slice %16 {offsets = [0, 24], sizes = [8, 8], strides = [1, 1]} : vector<8x32xf32> to vector<8x8xf32>
    %cst_51 = arith.constant dense<0.000000e+00> : vector<8x8xf32>
    %92 = tpu.matmul %90, %91, %cst_51 {dimension_numbers = #tpu.dot_dimension_numbers<[1], [1], [0], [0], [0, 0, 1, 0], [], []>} : vector<8x8xf32>, vector<8x8xf32>, vector<8x8xf32> -> vector<8x8xf32>
    %cst_52 = arith.constant 0.353553385 : f32
    %93 = vector.broadcast %cst_52 : f32 to vector<8x8xf32>
    %94 = arith.mulf %92, %93 : vector<8x8xf32>
    %c0_i32_53 = arith.constant 0 : i32
    %95 = vector.broadcast %c0_i32_53 : i32 to vector<8x8xi32>
    %96 = arith.cmpi eq, %5, %95 : vector<8x8xi32>
    %cst_54 = arith.constant -1.000000e+10 : f32
    %97 = vector.broadcast %cst_54 : f32 to vector<8x8xf32>
    %98 = arith.select %96, %97, %94 : vector<8x8xi1>, vector<8x8xf32>
    %cst_55 = arith.constant dense<0xFF800000> : vector<8xf32>
    %99 = vector.multi_reduction <maximumf>, %98, %cst_55 [1] : vector<8x8xf32> to vector<8xf32>
    %100 = vector.shape_cast %99 : vector<8xf32> to vector<8x1xf32>
    %101 = vector.broadcast %100 : vector<8x1xf32> to vector<8x8xf32>
    %102 = arith.subf %98, %101 : vector<8x8xf32>
    %103 = math.exp %102 : vector<8x8xf32>
    %cst_56 = arith.constant dense<0.000000e+00> : vector<8xf32>
    %104 = vector.multi_reduction <add>, %103, %cst_56 [1] : vector<8x8xf32> to vector<8xf32>
    %105 = vector.shape_cast %104 : vector<8xf32> to vector<8x1xf32>
    %106 = tpu.reciprocal %105 : vector<8x1xf32> -> vector<8x1xf32>
    %107 = vector.broadcast %106 : vector<8x1xf32> to vector<8x8xf32>
    %108 = arith.mulf %103, %107 : vector<8x8xf32>
    %c0_57 = arith.constant 0 : index
    %c3 = arith.constant 3 : index
    %c0_58 = arith.constant 0 : index
    %c0_59 = arith.constant 0 : index
    %109 = vector.load %arg24[%c0_57, %c3, %c0_58, %c0_59] : memref<1x4x8x8xf32, #tpu.memory_space<vmem>>, vector<1x1x8x8xf32>
    %110 = vector.shape_cast %109 : vector<1x1x8x8xf32> to vector<8x8xf32>
    %111 = vector.shape_cast %108 : vector<8x8xf32> to vector<1x1x8x8xf32>
    tpu.vector_store %arg24[%c0_57, %c3, %c0_58, %c0_59], %111 {strides = array<i32>} : memref<1x4x8x8xf32, #tpu.memory_space<vmem>>, vector<1x1x8x8xf32>,
    %112 = vector.extract_strided_slice %17 {offsets = [0, 24], sizes = [8, 8], strides = [1, 1]} : vector<8x32xf32> to vector<8x8xf32>
    %cst_60 = arith.constant dense<0.000000e+00> : vector<8x8xf32>
    %113 = tpu.matmul %108, %112, %cst_60 {dimension_numbers = #tpu.dot_dimension_numbers<[1], [0], [0], [1], [0, 0, 1, 1], [], []>} : vector<8x8xf32>, vector<8x8xf32>, vector<8x8xf32> -> vector<8x8xf32>
    %114 = tpu.concatenate %41, %65, %89, %113 in 1 : vector<8x8xf32>, vector<8x8xf32>, vector<8x8xf32>, vector<8x8xf32> -> vector<8x32xf32>
    %cst_61 = arith.constant dense<0.000000e+00> : vector<8x32xf32>
    %115 = tpu.matmul %114, %10, %cst_61 {dimension_numbers = #tpu.dot_dimension_numbers<[1], [0], [0], [1], [0, 0, 1, 1], [], []>} : vector<8x32xf32>, vector<32x32xf32>, vector<8x32xf32> -> vector<8x32xf32>
    %116 = vector.broadcast %11 : vector<1x32xf32> to vector<8x32xf32>
    %117 = arith.addf %115, %116 : vector<8x32xf32>
    %c0_62 = arith.constant 0 : index
    %c0_63 = arith.constant 0 : index
    %118 = vector.load %arg9[%c0_62, %c0_63] : memref<1x32xf32, #tpu.memory_space<vmem>>, vector<1x32xf32>
    %c0_64 = arith.constant 0 : index
    %c0_65 = arith.constant 0 : index
    %119 = vector.load %arg10[%c0_64, %c0_65] : memref<1x32xf32, #tpu.memory_space<vmem>>, vector<1x32xf32>
    %120 = arith.addf %1, %117 : vector<8x32xf32>
    %cst_66 = arith.constant dense<0.000000e+00> : vector<8xf32>
    %121 = vector.multi_reduction <add>, %120, %cst_66 [1] : vector<8x32xf32> to vector<8xf32>
    %122 = vector.shape_cast %121 : vector<8xf32> to vector<8x1xf32>
    %cst_67 = arith.constant 3.200000e+01 : f32
    %123 = vector.broadcast %cst_67 : f32 to vector<8x1xf32>
    %124 = arith.divf %122, %123 : vector<8x1xf32>
    %125 = vector.broadcast %124 : vector<8x1xf32> to vector<8x32xf32>
    %126 = arith.subf %120, %125 : vector<8x32xf32>
    %127 = arith.mulf %126, %126 : vector<8x32xf32>
    %cst_68 = arith.constant dense<0.000000e+00> : vector<8xf32>
    %128 = vector.multi_reduction <add>, %127, %cst_68 [1] : vector<8x32xf32> to vector<8xf32>
    %129 = vector.shape_cast %128 : vector<8xf32> to vector<8x1xf32>
    %cst_69 = arith.constant 3.200000e+01 : f32
    %130 = vector.broadcast %cst_69 : f32 to vector<8x1xf32>
    %131 = arith.divf %129, %130 : vector<8x1xf32>
    %132 = vector.broadcast %124 : vector<8x1xf32> to vector<8x32xf32>
    %133 = arith.subf %120, %132 : vector<8x32xf32>
    %cst_70 = arith.constant 9.99999974E-6 : f32
    %134 = vector.broadcast %cst_70 : f32 to vector<8x1xf32>
    %135 = arith.addf %131, %134 : vector<8x1xf32>
    %136 = math.rsqrt %135 : vector<8x1xf32>
    %137 = vector.broadcast %136 : vector<8x1xf32> to vector<8x32xf32>
    %138 = arith.mulf %133, %137 : vector<8x32xf32>
    %139 = vector.broadcast %118 : vector<1x32xf32> to vector<8x32xf32>
    %140 = arith.mulf %138, %139 : vector<8x32xf32>
    %141 = vector.broadcast %119 : vector<1x32xf32> to vector<8x32xf32>
    %142 = arith.addf %140, %141 : vector<8x32xf32>
    %c0_71 = arith.constant 0 : index
    %c0_72 = arith.constant 0 : index
    %143 = vector.load %arg11[%c0_71, %c0_72] : memref<32x96xf32, #tpu.memory_space<vmem>>, vector<32x96xf32>
    %c0_73 = arith.constant 0 : index
    %c0_74 = arith.constant 0 : index
    %144 = vector.load %arg12[%c0_73, %c0_74] : memref<1x96xf32, #tpu.memory_space<vmem>>, vector<1x96xf32>
    %c0_75 = arith.constant 0 : index
    %c0_76 = arith.constant 0 : index
    %145 = vector.load %arg13[%c0_75, %c0_76] : memref<32x32xf32, #tpu.memory_space<vmem>>, vector<32x32xf32>
    %c0_77 = arith.constant 0 : index
    %c0_78 = arith.constant 0 : index
    %146 = vector.load %arg14[%c0_77, %c0_78] : memref<1x32xf32, #tpu.memory_space<vmem>>, vector<1x32xf32>
    %147 = vector.extract_strided_slice %143 {offsets = [0, 0], sizes = [32, 32], strides = [1, 1]} : vector<32x96xf32> to vector<32x32xf32>
    %cst_79 = arith.constant dense<0.000000e+00> : vector<8x32xf32>
    %148 = tpu.matmul %142, %147, %cst_79 {dimension_numbers = #tpu.dot_dimension_numbers<[1], [0], [0], [1], [0, 0, 1, 1], [], []>} : vector<8x32xf32>, vector<32x32xf32>, vector<8x32xf32> -> vector<8x32xf32>
    %149 = vector.extract_strided_slice %144 {offsets = [0, 0], sizes = [1, 32], strides = [1, 1]} : vector<1x96xf32> to vector<1x32xf32>
    %150 = vector.broadcast %149 : vector<1x32xf32> to vector<8x32xf32>
    %151 = arith.addf %148, %150 : vector<8x32xf32>
    %152 = vector.extract_strided_slice %143 {offsets = [0, 32], sizes = [32, 64], strides = [1, 1]} : vector<32x96xf32> to vector<32x64xf32>
    %cst_80 = arith.constant dense<0.000000e+00> : vector<8x64xf32>
    %153 = tpu.matmul %3, %152, %cst_80 {dimension_numbers = #tpu.dot_dimension_numbers<[1], [0], [0], [1], [0, 0, 1, 1], [], []>} : vector<8x32xf32>, vector<32x64xf32>, vector<8x64xf32> -> vector<8x64xf32>
    %154 = vector.extract_strided_slice %144 {offsets = [0, 32], sizes = [1, 64], strides = [1, 1]} : vector<1x96xf32> to vector<1x64xf32>
    %155 = vector.broadcast %154 : vector<1x64xf32> to vector<8x64xf32>
    %156 = arith.addf %153, %155 : vector<8x64xf32>
    %157 = vector.extract_strided_slice %156 {offsets = [0, 0], sizes = [8, 32], strides = [1, 1]} : vector<8x64xf32> to vector<8x32xf32>
    %158 = vector.extract_strided_slice %156 {offsets = [0, 32], sizes = [8, 32], strides = [1, 1]} : vector<8x64xf32> to vector<8x32xf32>
    %159 = vector.extract_strided_slice %151 {offsets = [0, 0], sizes = [8, 8], strides = [1, 1]} : vector<8x32xf32> to vector<8x8xf32>
    %160 = vector.extract_strided_slice %157 {offsets = [0, 0], sizes = [8, 8], strides = [1, 1]} : vector<8x32xf32> to vector<8x8xf32>
    %cst_81 = arith.constant dense<0.000000e+00> : vector<8x8xf32>
    %161 = tpu.matmul %159, %160, %cst_81 {dimension_numbers = #tpu.dot_dimension_numbers<[1], [1], [0], [0], [0, 0, 1, 0], [], []>} : vector<8x8xf32>, vector<8x8xf32>, vector<8x8xf32> -> vector<8x8xf32>
    %cst_82 = arith.constant 0.353553385 : f32
    %162 = vector.broadcast %cst_82 : f32 to vector<8x8xf32>
    %163 = arith.mulf %161, %162 : vector<8x8xf32>
    %c0_i32_83 = arith.constant 0 : i32
    %164 = vector.broadcast %c0_i32_83 : i32 to vector<1x8xi32>
    %165 = arith.cmpi eq, %7, %164 : vector<1x8xi32>
    %cst_84 = arith.constant -1.000000e+10 : f32
    %166 = vector.shape_cast %165 : vector<1x8xi1> to vector<1x8xi1>
    %167 = vector.broadcast %166 : vector<1x8xi1> to vector<8x8xi1>
    %168 = vector.broadcast %cst_84 : f32 to vector<8x8xf32>
    %169 = arith.select %167, %168, %163 : vector<8x8xi1>, vector<8x8xf32>
    %cst_85 = arith.constant dense<0xFF800000> : vector<8xf32>
    %170 = vector.multi_reduction <maximumf>, %169, %cst_85 [1] : vector<8x8xf32> to vector<8xf32>
    %171 = vector.shape_cast %170 : vector<8xf32> to vector<8x1xf32>
    %172 = vector.broadcast %171 : vector<8x1xf32> to vector<8x8xf32>
    %173 = arith.subf %169, %172 : vector<8x8xf32>
    %174 = math.exp %173 : vector<8x8xf32>
    %cst_86 = arith.constant dense<0.000000e+00> : vector<8xf32>
    %175 = vector.multi_reduction <add>, %174, %cst_86 [1] : vector<8x8xf32> to vector<8xf32>
    %176 = vector.shape_cast %175 : vector<8xf32> to vector<8x1xf32>
    %177 = tpu.reciprocal %176 : vector<8x1xf32> -> vector<8x1xf32>
    %178 = vector.broadcast %177 : vector<8x1xf32> to vector<8x8xf32>
    %179 = arith.mulf %174, %178 : vector<8x8xf32>
    %c0_87 = arith.constant 0 : index
    %c0_88 = arith.constant 0 : index
    %c0_89 = arith.constant 0 : index
    %c0_90 = arith.constant 0 : index
    %180 = vector.load %arg25[%c0_87, %c0_88, %c0_89, %c0_90] : memref<1x4x8x8xf32, #tpu.memory_space<vmem>>, vector<1x1x8x8xf32>
    %181 = vector.shape_cast %180 : vector<1x1x8x8xf32> to vector<8x8xf32>
    %182 = vector.shape_cast %179 : vector<8x8xf32> to vector<1x1x8x8xf32>
    tpu.vector_store %arg25[%c0_87, %c0_88, %c0_89, %c0_90], %182 {strides = array<i32>} : memref<1x4x8x8xf32, #tpu.memory_space<vmem>>, vector<1x1x8x8xf32>,
    %183 = vector.extract_strided_slice %158 {offsets = [0, 0], sizes = [8, 8], strides = [1, 1]} : vector<8x32xf32> to vector<8x8xf32>
    %cst_91 = arith.constant dense<0.000000e+00> : vector<8x8xf32>
    %184 = tpu.matmul %179, %183, %cst_91 {dimension_numbers = #tpu.dot_dimension_numbers<[1], [0], [0], [1], [0, 0, 1, 1], [], []>} : vector<8x8xf32>, vector<8x8xf32>, vector<8x8xf32> -> vector<8x8xf32>
    %185 = vector.extract_strided_slice %151 {offsets = [0, 8], sizes = [8, 8], strides = [1, 1]} : vector<8x32xf32> to vector<8x8xf32>
    %186 = vector.extract_strided_slice %157 {offsets = [0, 8], sizes = [8, 8], strides = [1, 1]} : vector<8x32xf32> to vector<8x8xf32>
    %cst_92 = arith.constant dense<0.000000e+00> : vector<8x8xf32>
    %187 = tpu.matmul %185, %186, %cst_92 {dimension_numbers = #tpu.dot_dimension_numbers<[1], [1], [0], [0], [0, 0, 1, 0], [], []>} : vector<8x8xf32>, vector<8x8xf32>, vector<8x8xf32> -> vector<8x8xf32>
    %cst_93 = arith.constant 0.353553385 : f32
    %188 = vector.broadcast %cst_93 : f32 to vector<8x8xf32>
    %189 = arith.mulf %187, %188 : vector<8x8xf32>
    %c0_i32_94 = arith.constant 0 : i32
    %190 = vector.broadcast %c0_i32_94 : i32 to vector<1x8xi32>
    %191 = arith.cmpi eq, %7, %190 : vector<1x8xi32>
    %cst_95 = arith.constant -1.000000e+10 : f32
    %192 = vector.shape_cast %191 : vector<1x8xi1> to vector<1x8xi1>
    %193 = vector.broadcast %192 : vector<1x8xi1> to vector<8x8xi1>
    %194 = vector.broadcast %cst_95 : f32 to vector<8x8xf32>
    %195 = arith.select %193, %194, %189 : vector<8x8xi1>, vector<8x8xf32>
    %cst_96 = arith.constant dense<0xFF800000> : vector<8xf32>
    %196 = vector.multi_reduction <maximumf>, %195, %cst_96 [1] : vector<8x8xf32> to vector<8xf32>
    %197 = vector.shape_cast %196 : vector<8xf32> to vector<8x1xf32>
    %198 = vector.broadcast %197 : vector<8x1xf32> to vector<8x8xf32>
    %199 = arith.subf %195, %198 : vector<8x8xf32>
    %200 = math.exp %199 : vector<8x8xf32>
    %cst_97 = arith.constant dense<0.000000e+00> : vector<8xf32>
    %201 = vector.multi_reduction <add>, %200, %cst_97 [1] : vector<8x8xf32> to vector<8xf32>
    %202 = vector.shape_cast %201 : vector<8xf32> to vector<8x1xf32>
    %203 = tpu.reciprocal %202 : vector<8x1xf32> -> vector<8x1xf32>
    %204 = vector.broadcast %203 : vector<8x1xf32> to vector<8x8xf32>
    %205 = arith.mulf %200, %204 : vector<8x8xf32>
    %c0_98 = arith.constant 0 : index
    %c1_99 = arith.constant 1 : index
    %c0_100 = arith.constant 0 : index
    %c0_101 = arith.constant 0 : index
    %206 = vector.load %arg25[%c0_98, %c1_99, %c0_100, %c0_101] : memref<1x4x8x8xf32, #tpu.memory_space<vmem>>, vector<1x1x8x8xf32>
    %207 = vector.shape_cast %206 : vector<1x1x8x8xf32> to vector<8x8xf32>
    %208 = vector.shape_cast %205 : vector<8x8xf32> to vector<1x1x8x8xf32>
    tpu.vector_store %arg25[%c0_98, %c1_99, %c0_100, %c0_101], %208 {strides = array<i32>} : memref<1x4x8x8xf32, #tpu.memory_space<vmem>>, vector<1x1x8x8xf32>,
    %209 = vector.extract_strided_slice %158 {offsets = [0, 8], sizes = [8, 8], strides = [1, 1]} : vector<8x32xf32> to vector<8x8xf32>
    %cst_102 = arith.constant dense<0.000000e+00> : vector<8x8xf32>
    %210 = tpu.matmul %205, %209, %cst_102 {dimension_numbers = #tpu.dot_dimension_numbers<[1], [0], [0], [1], [0, 0, 1, 1], [], []>} : vector<8x8xf32>, vector<8x8xf32>, vector<8x8xf32> -> vector<8x8xf32>
    %211 = vector.extract_strided_slice %151 {offsets = [0, 16], sizes = [8, 8], strides = [1, 1]} : vector<8x32xf32> to vector<8x8xf32>
    %212 = vector.extract_strided_slice %157 {offsets = [0, 16], sizes = [8, 8], strides = [1, 1]} : vector<8x32xf32> to vector<8x8xf32>
    %cst_103 = arith.constant dense<0.000000e+00> : vector<8x8xf32>
    %213 = tpu.matmul %211, %212, %cst_103 {dimension_numbers = #tpu.dot_dimension_numbers<[1], [1], [0], [0], [0, 0, 1, 0], [], []>} : vector<8x8xf32>, vector<8x8xf32>, vector<8x8xf32> -> vector<8x8xf32>
    %cst_104 = arith.constant 0.353553385 : f32
    %214 = vector.broadcast %cst_104 : f32 to vector<8x8xf32>
    %215 = arith.mulf %213, %214 : vector<8x8xf32>
    %c0_i32_105 = arith.constant 0 : i32
    %216 = vector.broadcast %c0_i32_105 : i32 to vector<1x8xi32>
    %217 = arith.cmpi eq, %7, %216 : vector<1x8xi32>
    %cst_106 = arith.constant -1.000000e+10 : f32
    %218 = vector.shape_cast %217 : vector<1x8xi1> to vector<1x8xi1>
    %219 = vector.broadcast %218 : vector<1x8xi1> to vector<8x8xi1>
    %220 = vector.broadcast %cst_106 : f32 to vector<8x8xf32>
    %221 = arith.select %219, %220, %215 : vector<8x8xi1>, vector<8x8xf32>
    %cst_107 = arith.constant dense<0xFF800000> : vector<8xf32>
    %222 = vector.multi_reduction <maximumf>, %221, %cst_107 [1] : vector<8x8xf32> to vector<8xf32>
    %223 = vector.shape_cast %222 : vector<8xf32> to vector<8x1xf32>
    %224 = vector.broadcast %223 : vector<8x1xf32> to vector<8x8xf32>
    %225 = arith.subf %221, %224 : vector<8x8xf32>
    %226 = math.exp %225 : vector<8x8xf32>
    %cst_108 = arith.constant dense<0.000000e+00> : vector<8xf32>
    %227 = vector.multi_reduction <add>, %226, %cst_108 [1] : vector<8x8xf32> to vector<8xf32>
    %228 = vector.shape_cast %227 : vector<8xf32> to vector<8x1xf32>
    %229 = tpu.reciprocal %228 : vector<8x1xf32> -> vector<8x1xf32>
    %230 = vector.broadcast %229 : vector<8x1xf32> to vector<8x8xf32>
    %231 = arith.mulf %226, %230 : vector<8x8xf32>
    %c0_109 = arith.constant 0 : index
    %c2_110 = arith.constant 2 : index
    %c0_111 = arith.constant 0 : index
    %c0_112 = arith.constant 0 : index
    %232 = vector.load %arg25[%c0_109, %c2_110, %c0_111, %c0_112] : memref<1x4x8x8xf32, #tpu.memory_space<vmem>>, vector<1x1x8x8xf32>
    %233 = vector.shape_cast %232 : vector<1x1x8x8xf32> to vector<8x8xf32>
    %234 = vector.shape_cast %231 : vector<8x8xf32> to vector<1x1x8x8xf32>
    tpu.vector_store %arg25[%c0_109, %c2_110, %c0_111, %c0_112], %234 {strides = array<i32>} : memref<1x4x8x8xf32, #tpu.memory_space<vmem>>, vector<1x1x8x8xf32>,
    %235 = vector.extract_strided_slice %158 {offsets = [0, 16], sizes = [8, 8], strides = [1, 1]} : vector<8x32xf32> to vector<8x8xf32>
    %cst_113 = arith.constant dense<0.000000e+00> : vector<8x8xf32>
    %236 = tpu.matmul %231, %235, %cst_113 {dimension_numbers = #tpu.dot_dimension_numbers<[1], [0], [0], [1], [0, 0, 1, 1], [], []>} : vector<8x8xf32>, vector<8x8xf32>, vector<8x8xf32> -> vector<8x8xf32>
    %237 = vector.extract_strided_slice %151 {offsets = [0, 24], sizes = [8, 8], strides = [1, 1]} : vector<8x32xf32> to vector<8x8xf32>
    %238 = vector.extract_strided_slice %157 {offsets = [0, 24], sizes = [8, 8], strides = [1, 1]} : vector<8x32xf32> to vector<8x8xf32>
    %cst_114 = arith.constant dense<0.000000e+00> : vector<8x8xf32>
    %239 = tpu.matmul %237, %238, %cst_114 {dimension_numbers = #tpu.dot_dimension_numbers<[1], [1], [0], [0], [0, 0, 1, 0], [], []>} : vector<8x8xf32>, vector<8x8xf32>, vector<8x8xf32> -> vector<8x8xf32>
    %cst_115 = arith.constant 0.353553385 : f32
    %240 = vector.broadcast %cst_115 : f32 to vector<8x8xf32>
    %241 = arith.mulf %239, %240 : vector<8x8xf32>
    %c0_i32_116 = arith.constant 0 : i32
    %242 = vector.broadcast %c0_i32_116 : i32 to vector<1x8xi32>
    %243 = arith.cmpi eq, %7, %242 : vector<1x8xi32>
    %cst_117 = arith.constant -1.000000e+10 : f32
    %244 = vector.shape_cast %243 : vector<1x8xi1> to vector<1x8xi1>
    %245 = vector.broadcast %244 : vector<1x8xi1> to vector<8x8xi1>
    %246 = vector.broadcast %cst_117 : f32 to vector<8x8xf32>
    %247 = arith.select %245, %246, %241 : vector<8x8xi1>, vector<8x8xf32>
    %cst_118 = arith.constant dense<0xFF800000> : vector<8xf32>
    %248 = vector.multi_reduction <maximumf>, %247, %cst_118 [1] : vector<8x8xf32> to vector<8xf32>
    %249 = vector.shape_cast %248 : vector<8xf32> to vector<8x1xf32>
    %250 = vector.broadcast %249 : vector<8x1xf32> to vector<8x8xf32>
    %251 = arith.subf %247, %250 : vector<8x8xf32>
    %252 = math.exp %251 : vector<8x8xf32>
    %cst_119 = arith.constant dense<0.000000e+00> : vector<8xf32>
    %253 = vector.multi_reduction <add>, %252, %cst_119 [1] : vector<8x8xf32> to vector<8xf32>
    %254 = vector.shape_cast %253 : vector<8xf32> to vector<8x1xf32>
    %255 = tpu.reciprocal %254 : vector<8x1xf32> -> vector<8x1xf32>
    %256 = vector.broadcast %255 : vector<8x1xf32> to vector<8x8xf32>
    %257 = arith.mulf %252, %256 : vector<8x8xf32>
    %c0_120 = arith.constant 0 : index
    %c3_121 = arith.constant 3 : index
    %c0_122 = arith.constant 0 : index
    %c0_123 = arith.constant 0 : index
    %258 = vector.load %arg25[%c0_120, %c3_121, %c0_122, %c0_123] : memref<1x4x8x8xf32, #tpu.memory_space<vmem>>, vector<1x1x8x8xf32>
    %259 = vector.shape_cast %258 : vector<1x1x8x8xf32> to vector<8x8xf32>
    %260 = vector.shape_cast %257 : vector<8x8xf32> to vector<1x1x8x8xf32>
    tpu.vector_store %arg25[%c0_120, %c3_121, %c0_122, %c0_123], %260 {strides = array<i32>} : memref<1x4x8x8xf32, #tpu.memory_space<vmem>>, vector<1x1x8x8xf32>,
    %261 = vector.extract_strided_slice %158 {offsets = [0, 24], sizes = [8, 8], strides = [1, 1]} : vector<8x32xf32> to vector<8x8xf32>
    %cst_124 = arith.constant dense<0.000000e+00> : vector<8x8xf32>
    %262 = tpu.matmul %257, %261, %cst_124 {dimension_numbers = #tpu.dot_dimension_numbers<[1], [0], [0], [1], [0, 0, 1, 1], [], []>} : vector<8x8xf32>, vector<8x8xf32>, vector<8x8xf32> -> vector<8x8xf32>
    %263 = tpu.concatenate %184, %210, %236, %262 in 1 : vector<8x8xf32>, vector<8x8xf32>, vector<8x8xf32>, vector<8x8xf32> -> vector<8x32xf32>
    %cst_125 = arith.constant dense<0.000000e+00> : vector<8x32xf32>
    %264 = tpu.matmul %263, %145, %cst_125 {dimension_numbers = #tpu.dot_dimension_numbers<[1], [0], [0], [1], [0, 0, 1, 1], [], []>} : vector<8x32xf32>, vector<32x32xf32>, vector<8x32xf32> -> vector<8x32xf32>
    %265 = vector.broadcast %146 : vector<1x32xf32> to vector<8x32xf32>
    %266 = arith.addf %264, %265 : vector<8x32xf32>
    %c0_126 = arith.constant 0 : index
    %c0_127 = arith.constant 0 : index
    %267 = vector.load %arg15[%c0_126, %c0_127] : memref<1x32xf32, #tpu.memory_space<vmem>>, vector<1x32xf32>
    %c0_128 = arith.constant 0 : index
    %c0_129 = arith.constant 0 : index
    %268 = vector.load %arg16[%c0_128, %c0_129] : memref<1x32xf32, #tpu.memory_space<vmem>>, vector<1x32xf32>
    %269 = arith.addf %142, %266 : vector<8x32xf32>
    %cst_130 = arith.constant dense<0.000000e+00> : vector<8xf32>
    %270 = vector.multi_reduction <add>, %269, %cst_130 [1] : vector<8x32xf32> to vector<8xf32>
    %271 = vector.shape_cast %270 : vector<8xf32> to vector<8x1xf32>
    %cst_131 = arith.constant 3.200000e+01 : f32
    %272 = vector.broadcast %cst_131 : f32 to vector<8x1xf32>
    %273 = arith.divf %271, %272 : vector<8x1xf32>
    %274 = vector.broadcast %273 : vector<8x1xf32> to vector<8x32xf32>
    %275 = arith.subf %269, %274 : vector<8x32xf32>
    %276 = arith.mulf %275, %275 : vector<8x32xf32>
    %cst_132 = arith.constant dense<0.000000e+00> : vector<8xf32>
    %277 = vector.multi_reduction <add>, %276, %cst_132 [1] : vector<8x32xf32> to vector<8xf32>
    %278 = vector.shape_cast %277 : vector<8xf32> to vector<8x1xf32>
    %cst_133 = arith.constant 3.200000e+01 : f32
    %279 = vector.broadcast %cst_133 : f32 to vector<8x1xf32>
    %280 = arith.divf %278, %279 : vector<8x1xf32>
    %281 = vector.broadcast %273 : vector<8x1xf32> to vector<8x32xf32>
    %282 = arith.subf %269, %281 : vector<8x32xf32>
    %cst_134 = arith.constant 9.99999974E-6 : f32
    %283 = vector.broadcast %cst_134 : f32 to vector<8x1xf32>
    %284 = arith.addf %280, %283 : vector<8x1xf32>
    %285 = math.rsqrt %284 : vector<8x1xf32>
    %286 = vector.broadcast %285 : vector<8x1xf32> to vector<8x32xf32>
    %287 = arith.mulf %282, %286 : vector<8x32xf32>
    %288 = vector.broadcast %267 : vector<1x32xf32> to vector<8x32xf32>
    %289 = arith.mulf %287, %288 : vector<8x32xf32>
    %290 = vector.broadcast %268 : vector<1x32xf32> to vector<8x32xf32>
    %291 = arith.addf %289, %290 : vector<8x32xf32>
    %c0_135 = arith.constant 0 : index
    %c0_136 = arith.constant 0 : index
    %292 = vector.load %arg17[%c0_135, %c0_136] : memref<32x64xf32, #tpu.memory_space<vmem>>, vector<32x64xf32>
    %cst_137 = arith.constant dense<0.000000e+00> : vector<8x64xf32>
    %293 = tpu.matmul %291, %292, %cst_137 {dimension_numbers = #tpu.dot_dimension_numbers<[1], [0], [0], [1], [0, 0, 1, 1], [], []>} : vector<8x32xf32>, vector<32x64xf32>, vector<8x64xf32> -> vector<8x64xf32>
    %c0_138 = arith.constant 0 : index
    %c0_139 = arith.constant 0 : index
    %294 = vector.load %arg18[%c0_138, %c0_139] : memref<1x64xf32, #tpu.memory_space<vmem>>, vector<1x64xf32>
    %295 = vector.broadcast %294 : vector<1x64xf32> to vector<8x64xf32>
    %296 = arith.addf %293, %295 : vector<8x64xf32>
    %cst_140 = arith.constant 0.000000e+00 : f32
    %297 = vector.broadcast %cst_140 : f32 to vector<8x64xf32>
    %298 = arith.maximumf %296, %297 : vector<8x64xf32>
    %c0_141 = arith.constant 0 : index
    %c0_142 = arith.constant 0 : index
    %299 = vector.load %arg19[%c0_141, %c0_142] : memref<64x32xf32, #tpu.memory_space<vmem>>, vector<64x32xf32>
    %cst_143 = arith.constant dense<0.000000e+00> : vector<8x32xf32>
    %300 = tpu.matmul %298, %299, %cst_143 {dimension_numbers = #tpu.dot_dimension_numbers<[1], [0], [0], [1], [0, 0, 1, 1], [], []>} : vector<8x64xf32>, vector<64x32xf32>, vector<8x32xf32> -> vector<8x32xf32>
    %c0_144 = arith.constant 0 : index
    %c0_145 = arith.constant 0 : index
    %301 = vector.load %arg20[%c0_144, %c0_145] : memref<1x32xf32, #tpu.memory_space<vmem>>, vector<1x32xf32>
    %302 = vector.broadcast %301 : vector<1x32xf32> to vector<8x32xf32>
    %303 = arith.addf %300, %302 : vector<8x32xf32>
    %c0_146 = arith.constant 0 : index
    %c0_147 = arith.constant 0 : index
    %304 = vector.load %arg21[%c0_146, %c0_147] : memref<1x32xf32, #tpu.memory_space<vmem>>, vector<1x32xf32>
    %c0_148 = arith.constant 0 : index
    %c0_149 = arith.constant 0 : index
    %305 = vector.load %arg22[%c0_148, %c0_149] : memref<1x32xf32, #tpu.memory_space<vmem>>, vector<1x32xf32>
    %306 = arith.addf %291, %303 : vector<8x32xf32>
    %cst_150 = arith.constant dense<0.000000e+00> : vector<8xf32>
    %307 = vector.multi_reduction <add>, %306, %cst_150 [1] : vector<8x32xf32> to vector<8xf32>
    %308 = vector.shape_cast %307 : vector<8xf32> to vector<8x1xf32>
    %cst_151 = arith.constant 3.200000e+01 : f32
    %309 = vector.broadcast %cst_151 : f32 to vector<8x1xf32>
    %310 = arith.divf %308, %309 : vector<8x1xf32>
    %311 = vector.broadcast %310 : vector<8x1xf32> to vector<8x32xf32>
    %312 = arith.subf %306, %311 : vector<8x32xf32>
    %313 = arith.mulf %312, %312 : vector<8x32xf32>
    %cst_152 = arith.constant dense<0.000000e+00> : vector<8xf32>
    %314 = vector.multi_reduction <add>, %313, %cst_152 [1] : vector<8x32xf32> to vector<8xf32>
    %315 = vector.shape_cast %314 : vector<8xf32> to vector<8x1xf32>
    %cst_153 = arith.constant 3.200000e+01 : f32
    %316 = vector.broadcast %cst_153 : f32 to vector<8x1xf32>
    %317 = arith.divf %315, %316 : vector<8x1xf32>
    %318 = vector.broadcast %310 : vector<8x1xf32> to vector<8x32xf32>
    %319 = arith.subf %306, %318 : vector<8x32xf32>
    %cst_154 = arith.constant 9.99999974E-6 : f32
    %320 = vector.broadcast %cst_154 : f32 to vector<8x1xf32>
    %321 = arith.addf %317, %320 : vector<8x1xf32>
    %322 = math.rsqrt %321 : vector<8x1xf32>
    %323 = vector.broadcast %322 : vector<8x1xf32> to vector<8x32xf32>
    %324 = arith.mulf %319, %323 : vector<8x32xf32>
    %325 = vector.broadcast %304 : vector<1x32xf32> to vector<8x32xf32>
    %326 = arith.mulf %324, %325 : vector<8x32xf32>
    %327 = vector.broadcast %305 : vector<1x32xf32> to vector<8x32xf32>
    %328 = arith.addf %326, %327 : vector<8x32xf32>
    %c0_155 = arith.constant 0 : index
    %c0_156 = arith.constant 0 : index
    %c0_157 = arith.constant 0 : index
    %329 = vector.load %arg23[%c0_155, %c0_156, %c0_157] : memref<1x8x32xf32, #tpu.memory_space<vmem>>, vector<1x8x32xf32>
    %330 = vector.shape_cast %329 : vector<1x8x32xf32> to vector<8x32xf32>
    %331 = vector.shape_cast %328 : vector<8x32xf32> to vector<1x8x32xf32>
    tpu.vector_store %arg23[%c0_155, %c0_156, %c0_157], %331 {strides = array<i32>} : memref<1x8x32xf32, #tpu.memory_space<vmem>>, vector<1x8x32xf32>,
    return
  }
  func.func @transform_0(%arg0: i32) -> (i32, i32, i32, i32) {
    %c0_i32 = arith.constant 0 : i32
    %c0_i32_0 = arith.constant 0 : i32
    %c0_i32_1 = arith.constant 0 : i32
    %c0_i32_2 = arith.constant 0 : i32
    return %arg0, %c0_i32, %c0_i32_0, %c0_i32_1 : i32, i32, i32, i32
  }
  func.func @transform_1(%arg0: i32) -> (i32, i32, i32, i32) {
    %c0_i32 = arith.constant 0 : i32
    %c0_i32_0 = arith.constant 0 : i32
    %c0_i32_1 = arith.constant 0 : i32
    %c0_i32_2 = arith.constant 0 : i32
    return %arg0, %c0_i32, %c0_i32_0, %c0_i32_1 : i32, i32, i32, i32
  }
  func.func @transform_2(%arg0: i32) -> (i32, i32, i32) {
    %c0_i32 = arith.constant 0 : i32
    %c0_i32_0 = arith.constant 0 : i32
    %c0_i32_1 = arith.constant 0 : i32
    return %arg0, %c0_i32, %c0_i32_0 : i32, i32, i32
  }
  func.func @transform_3(%arg0: i32) -> (i32, i32, i32) {
    %c0_i32 = arith.constant 0 : i32
    %c0_i32_0 = arith.constant 0 : i32
    %c0_i32_1 = arith.constant 0 : i32
    return %arg0, %c0_i32, %c0_i32_0 : i32, i32, i32
  }
  func.func @transform_4(%arg0: i32) -> (i32, i32) {
    %c0_i32 = arith.constant 0 : i32
    %c0_i32_0 = arith.constant 0 : i32
    %c0_i32_1 = arith.constant 0 : i32
    return %c0_i32, %c0_i32_0 : i32, i32
  }
  func.func @transform_5(%arg0: i32) -> (i32, i32) {
    %c0_i32 = arith.constant 0 : i32
    %c0_i32_0 = arith.constant 0 : i32
    %c0_i32_1 = arith.constant 0 : i32
    return %c0_i32, %c0_i32_0 : i32, i32
  }
  func.func @transform_6(%arg0: i32) -> (i32, i32) {
    %c0_i32 = arith.constant 0 : i32
    %c0_i32_0 = arith.constant 0 : i32
    %c0_i32_1 = arith.constant 0 : i32
    return %c0_i32, %c0_i32_0 : i32, i32
  }
  func.func @transform_7(%arg0: i32) -> (i32, i32) {
    %c0_i32 = arith.constant 0 : i32
    %c0_i32_0 = arith.constant 0 : i32
    %c0_i32_1 = arith.constant 0 : i32
    return %c0_i32, %c0_i32_0 : i32, i32
  }
  func.func @transform_8(%arg0: i32) -> (i32, i32) {
    %c0_i32 = arith.constant 0 : i32
    %c0_i32_0 = arith.constant 0 : i32
    %c0_i32_1 = arith.constant 0 : i32
    return %c0_i32, %c0_i32_0 : i32, i32
  }
  func.func @transform_9(%arg0: i32) -> (i32, i32) {
    %c0_i32 = arith.constant 0 : i32
    %c0_i32_0 = arith.constant 0 : i32
    %c0_i32_1 = arith.constant 0 : i32
    return %c0_i32, %c0_i32_0 : i32, i32
  }
  func.func @transform_10(%arg0: i32) -> (i32, i32) {
    %c0_i32 = arith.constant 0 : i32
    %c0_i32_0 = arith.constant 0 : i32
    %c0_i32_1 = arith.constant 0 : i32
    return %c0_i32, %c0_i32_0 : i32, i32
  }
  func.func @transform_11(%arg0: i32) -> (i32, i32) {
    %c0_i32 = arith.constant 0 : i32
    %c0_i32_0 = arith.constant 0 : i32
    %c0_i32_1 = arith.constant 0 : i32
    return %c0_i32, %c0_i32_0 : i32, i32
  }
  func.func @transform_12(%arg0: i32) -> (i32, i32) {
    %c0_i32 = arith.constant 0 : i32
    %c0_i32_0 = arith.constant 0 : i32
    %c0_i32_1 = arith.constant 0 : i32
    return %c0_i32, %c0_i32_0 : i32, i32
  }
  func.func @transform_13(%arg0: i32) -> (i32, i32) {
    %c0_i32 = arith.constant 0 : i32
    %c0_i32_0 = arith.constant 0 : i32
    %c0_i32_1 = arith.constant 0 : i32
    return %c0_i32, %c0_i32_0 : i32, i32
  }
  func.func @transform_14(%arg0: i32) -> (i32, i32) {
    %c0_i32 = arith.constant 0 : i32
    %c0_i32_0 = arith.constant 0 : i32
    %c0_i32_1 = arith.constant 0 : i32
    return %c0_i32, %c0_i32_0 : i32, i32
  }
  func.func @transform_15(%arg0: i32) -> (i32, i32) {
    %c0_i32 = arith.constant 0 : i32
    %c0_i32_0 = arith.constant 0 : i32
    %c0_i32_1 = arith.constant 0 : i32
    return %c0_i32, %c0_i32_0 : i32, i32
  }
  func.func @transform_16(%arg0: i32) -> (i32, i32) {
    %c0_i32 = arith.constant 0 : i32
    %c0_i32_0 = arith.constant 0 : i32
    %c0_i32_1 = arith.constant 0 : i32
    return %c0_i32, %c0_i32_0 : i32, i32
  }
  func.func @transform_17(%arg0: i32) -> (i32, i32) {
    %c0_i32 = arith.constant 0 : i32
    %c0_i32_0 = arith.constant 0 : i32
    %c0_i32_1 = arith.constant 0 : i32
    return %c0_i32, %c0_i32_0 : i32, i32
  }
  func.func @transform_18(%arg0: i32) -> (i32, i32) {
    %c0_i32 = arith.constant 0 : i32
    %c0_i32_0 = arith.constant 0 : i32
    %c0_i32_1 = arith.constant 0 : i32
    return %c0_i32, %c0_i32_0 : i32, i32
  }
  func.func @transform_19(%arg0: i32) -> (i32, i32) {
    %c0_i32 = arith.constant 0 : i32
    %c0_i32_0 = arith.constant 0 : i32
    %c0_i32_1 = arith.constant 0 : i32
    return %c0_i32, %c0_i32_0 : i32, i32
  }
  func.func @transform_20(%arg0: i32) -> (i32, i32) {
    %c0_i32 = arith.constant 0 : i32
    %c0_i32_0 = arith.constant 0 : i32
    %c0_i32_1 = arith.constant 0 : i32
    return %c0_i32, %c0_i32_0 : i32, i32
  }
  func.func @transform_21(%arg0: i32) -> (i32, i32) {
    %c0_i32 = arith.constant 0 : i32
    %c0_i32_0 = arith.constant 0 : i32
    %c0_i32_1 = arith.constant 0 : i32
    return %c0_i32, %c0_i32_0 : i32, i32
  }
  func.func @transform_22(%arg0: i32) -> (i32, i32, i32) {
    %c0_i32 = arith.constant 0 : i32
    %c0_i32_0 = arith.constant 0 : i32
    %c0_i32_1 = arith.constant 0 : i32
    return %arg0, %c0_i32, %c0_i32_0 : i32, i32, i32
  }
  func.func @transform_23(%arg0: i32) -> (i32, i32, i32, i32) {
    %c0_i32 = arith.constant 0 : i32
    %c0_i32_0 = arith.constant 0 : i32
    %c0_i32_1 = arith.constant 0 : i32
    %c0_i32_2 = arith.constant 0 : i32
    return %arg0, %c0_i32, %c0_i32_0, %c0_i32_1 : i32, i32, i32, i32
  }
  func.func @transform_24(%arg0: i32) -> (i32, i32, i32, i32) {
    %c0_i32 = arith.constant 0 : i32
    %c0_i32_0 = arith.constant 0 : i32
    %c0_i32_1 = arith.constant 0 : i32
    %c0_i32_2 = arith.constant 0 : i32
    return %arg0, %c0_i32, %c0_i32_0, %c0_i32_1 : i32, i32, i32, i32
  }
}

</mosaic_0001>

<llo_original>
// kernel: decoder_forward.5
$region0: #{decoder_forward.5}
  #allocation0 [shape = 'u32[]', space=smem, size = 0x4, offset = 0x4, fixed_abs, tag = 'smem constant byte address 0x4 - core index']
  #allocation1 [shape = 'u32[72,128]{1,0:T(1,128)}', space=vmem, size = 0x9000, scoped, tag = 'internal scratch']
  %s0 = inlined_call_operand.vmem [shape: f32[2,8,32], index: 0, kind: input, shape index: {}]
  %s1 = inlined_call_operand.vmem [shape: f32[32,16], index: 1, kind: input, shape index: {}]
  %s2 = inlined_call_operand.vmem [shape: f32[1,16], index: 2, kind: input, shape index: {}]
  %s3 = inlined_call_operand.hbm [shape: f32[2,8,16], index: 3, kind: output, shape index: {}]
  %s4 = sld [smem:[#allocation0]]
  $region45: #{decoder_forward.5} parent=0
    _
  %s6 = ssub.s32 1, %s4
  %s7 = scalar_select 0, %s6, %s4
  $region1: #{decoder_forward.5} parent=0
    #allocation2 [shape = 'u8[8192]{0}', space=vmem, size = 0x2000, scoped, tag = 'output window, operand 0']
    #allocation3 [shape = 's32[2]{0}', space=sflag, size = 0x8, scoped, tag = 'scoped memory for decoder_forward.5']
    %8 = vsyncpa [#allocation3], 0
    %s9 = scalar_lea.sflag [#allocation3], 1
    %10 = vsyncpa %s9, 0
    loop: start=0, step=1, limit=4
    $region2: #{decoder_forward.5} parent=1 // loop_pre_header
      _
    $region3: #{decoder_forward.5} parent=1 // loop_header
      %s12 = sphi 0, %s16
      %p13 = scmp.ge.s32.totalorder %s12, 4
      %s22 = sphi 0, %s24
      %s25 = sphi 0, %s22
      %s26 = sphi 0, %s25
      %s42 = sphi 0, %s26
      %s46 = sphi 0, %s46
      %s48 = sphi 0, %s46
      %s49 = sphi 0, %s48
      %s63 = sphi 0, %s49
      %s67 = sphi 0, %s67
      %s69 = sphi 0, %s67
      %s70 = sphi 0, %s69
      %s84 = sphi 0, %s70
      %s90 = sphi 0, %s92
      %s93 = sphi 0, %s90
      %s94 = sphi 0, %s93
      %s110 = sphi 0, %s94
    $region4: #{decoder_forward.5} parent=1 // loop_header_branch
      %15 = sbr.rel (%p13) target = $region8
    $region5: #{decoder_forward.5} parent=1 // loop_body
      %s17 = ssub.s32 %s12, 1
      %s18 = ssub.s32 %s12, 2
      %s19 = sadd.s32 %s12, 1
      %s20 = ssub.s32 %s12, %s19
      %p21 = scmp.eq.s32.totalorder %s20, 0
      %s23 = sadd.s32 %s22, 1
      %s24 = scalar_select %p21, %s22, %s23
      %p27 = pneg %p21
      %p28 = scmp.eq.s32.totalorder %s12, 1
      %p29 = por %p27, %p28
      %p30 = scmp.ne.s32.totalorder %s22, %s25
      %p31 = scmp.eq.s32.totalorder %s12, 0
      %p32 = por %p30, %p31
      %p33 = scmp.ne.s32.totalorder %s22, %s25
      %p34 = scmp.eq.s32.totalorder %s17, 1
      %p35 = por %p33, %p34
      %p36 = scmp.ne.s32.totalorder %s25, %s26
      %p37 = scmp.eq.s32.totalorder %s17, 0
      %p38 = por %p36, %p37
      %p39 = scmp.ne.s32.totalorder %s25, %s26
      %p40 = scmp.eq.s32.totalorder %s18, 1
      %p41 = por %p39, %p40
      %p43 = scmp.ne.s32.totalorder %s26, %s42
      %p44 = scmp.eq.s32.totalorder %s18, 0
      %p45 = por %p43, %p44
      %s47 = sadd.s32 %s46, 1
      %p50 = scmp.eq.s32.totalorder %s12, 1
      %p51 = scmp.ne.s32.totalorder %s46, %s48
      %p52 = scmp.eq.s32.totalorder %s12, 0
      %p53 = por %p51, %p52
      %p54 = scmp.ne.s32.totalorder %s46, %s48
      %p55 = scmp.eq.s32.totalorder %s17, 1
      %p56 = por %p54, %p55
      %p57 = scmp.ne.s32.totalorder %s48, %s49
      %p58 = scmp.eq.s32.totalorder %s17, 0
      %p59 = por %p57, %p58
      %p60 = scmp.ne.s32.totalorder %s48, %s49
      %p61 = scmp.eq.s32.totalorder %s18, 1
      %p62 = por %p60, %p61
      %p64 = scmp.ne.s32.totalorder %s49, %s63
      %p65 = scmp.eq.s32.totalorder %s18, 0
      %p66 = por %p64, %p65
      %s68 = sadd.s32 %s67, 1
      %p71 = scmp.eq.s32.totalorder %s12, 1
      %p72 = scmp.ne.s32.totalorder %s67, %s69
      %p73 = scmp.eq.s32.totalorder %s12, 0
      %p74 = por %p72, %p73
      %p75 = scmp.ne.s32.totalorder %s67, %s69
      %p76 = scmp.eq.s32.totalorder %s17, 1
      %p77 = por %p75, %p76
      %p78 = scmp.ne.s32.totalorder %s69, %s70
      %p79 = scmp.eq.s32.totalorder %s17, 0
      %p80 = por %p78, %p79
      %p81 = scmp.ne.s32.totalorder %s69, %s70
      %p82 = scmp.eq.s32.totalorder %s18, 1
      %p83 = por %p81, %p82
      %p85 = scmp.ne.s32.totalorder %s70, %s84
      %p86 = scmp.eq.s32.totalorder %s18, 0
      %p87 = por %p85, %p86
      %s88 = ssub.s32 %s12, %s19
      %p89 = scmp.eq.s32.totalorder %s88, 0
      %s91 = sadd.s32 %s90, 1
      %s92 = scalar_select %p89, %s90, %s91
      %p95 = pneg %p89
      %p96 = scmp.eq.s32.totalorder %s12, 1
      %p97 = por %p95, %p96
      %p98 = scmp.ne.s32.totalorder %s90, %s93
      %p99 = scmp.eq.s32.totalorder %s12, 0
      %p100 = por %p98, %p99
      %p101 = scmp.ne.s32.totalorder %s90, %s93
      %p102 = scmp.eq.s32.totalorder %s17, 1
      %p103 = por %p101, %p102
      %p104 = scmp.ne.s32.totalorder %s93, %s94
      %p105 = scmp.eq.s32.totalorder %s17, 0
      %p106 = por %p104, %p105
      %p107 = scmp.ne.s32.totalorder %s93, %s94
      %p108 = scmp.eq.s32.totalorder %s18, 1
      %p109 = por %p107, %p108
      %p111 = scmp.ne.s32.totalorder %s94, %s110
      %p112 = scmp.eq.s32.totalorder %s18, 0
      %p113 = por %p111, %p112
      %p114 = scmp.le.s32.totalorder 1, %s12
      %p115 = scmp.lt.s32.totalorder %s12, 3
      %p116 = pnand %p114, %p115
      %p117 = pneg %p116
      // Predicated region
      $region9: #{decoder_forward.5} parent=5 // pred_check
        _
      $region10: #{decoder_forward.5} parent=5 // pred_check_branch
        %119 = sbr.rel (%p116) target = $region12
      $region11: #{decoder_forward.5} parent=5 // pred_region
        %s120 = ssub.s32 %s12, 1
        // Predicated region
        $region13: #{decoder_forward.5} parent=11 // pred_check
          %p121 = pneg %p59
        $region14: #{decoder_forward.5} parent=11 // pred_check_branch
          %123 = sbr.rel (%p121) target = $region16
        $region15: #{decoder_forward.5} parent=11 // pred_region
          _
        $region16: #{decoder_forward.5} parent=11 // pred_fallthru
          _
        // Predicated region
        $region17: #{decoder_forward.5} parent=11 // pred_check
          %p124 = pneg %p80
        $region18: #{decoder_forward.5} parent=11 // pred_check_branch
          %126 = sbr.rel (%p124) target = $region20
        $region19: #{decoder_forward.5} parent=11 // pred_region
          _
        $region20: #{decoder_forward.5} parent=11 // pred_fallthru
          _
      $region12: #{decoder_forward.5} parent=5 // pred_fallthru
        _
      %p127 = scmp.lt.s32.totalorder %s12, 2
      // Predicated region
      $region21: #{decoder_forward.5} parent=5 // pred_check
        %p128 = pneg %p127
      $region22: #{decoder_forward.5} parent=5 // pred_check_branch
        %130 = sbr.rel (%p128) target = $region24
      $region23: #{decoder_forward.5} parent=5 // pred_region
        // Predicated region
        $region25: #{decoder_forward.5} parent=23 // pred_check
          %p131 = pneg %p32
        $region26: #{decoder_forward.5} parent=23 // pred_check_branch
          %133 = sbr.rel (%p131) target = $region28
        $region27: #{decoder_forward.5} parent=23 // pred_region
          %p134 = scmp.lt.s32.totalorder %s12, 1
          %s135 = scalar_select %p134, %s12, 1
          %s136 = smul.addr %s135, 8
          %s137 = scalar_lea.vmem %s0, %s136
        $region28: #{decoder_forward.5} parent=23 // pred_fallthru
          _
      $region24: #{decoder_forward.5} parent=5 // pred_fallthru
        _
      %p138 = scmp.le.s32.totalorder 1, %s12
      %p139 = scmp.lt.s32.totalorder %s12, 3
      %p140 = pnand %p138, %p139
      %p141 = pneg %p140
      // Predicated region
      $region29: #{decoder_forward.5} parent=5 // pred_check
        _
      $region30: #{decoder_forward.5} parent=5 // pred_check_branch
        %143 = sbr.rel (%p140) target = $region32
      $region31: #{decoder_forward.5} parent=5 // pred_region
        %s144 = ssub.s32 %s12, 1
        %p145 = scmp.lt.s32.totalorder %s17, 1
        %s146 = scalar_select %p145, %s17, 1
        %s147 = smul.addr %s146, 8
        %s148 = scalar_lea.vmem %s0, %s147
        %p149 = pneg %p38
        %p150 = pneg %p35
        %p151 = pneg %p59
        %p152 = pneg %p56
        %p153 = pneg %p80
        %p154 = pneg %p77
        %p155 = pneg %p106
        %p156 = pneg %p103
        %s157 = sand.u32 %s93, 1
        %s158 = scalar_lea.sflag [#allocation3], %s157
        %s159 = sand.u32 %s93, 1
        %s160 = smul.addr %s159, 8
        %s161 = scalar_lea.vmem [#allocation2], %s160
        %p162 = scmp.lt.s32.totalorder %s17, 1
        %s163 = scalar_select %p162, %s17, 1
        %s164 = smul.addr %s163, 8
        %s165 = scalar_lea.vmem %s0, %s164
        %v166 = vld [vmem:[%s165] sm:$0xff]
        %v167 = vld [vmem:[%s1] sm:$0xff]
        %v168 = vld [vmem:[%s1 + $0x8] sm:$0xff]
        %v169 = vld [vmem:[%s1 + $0x10] sm:$0xff]
        %v170 = vld [vmem:[%s1 + $0x18] sm:$0xff]
        %v171 = vld [vmem:[%s2] sm:$0x1]
        %v173 = vperm.slane %v171, 0
        %vm175 = vcmask 261120
        %v177 = vsel %vm175, %v166, 0
        %179 = vmatpush.msra.mxu0 0.0
        %180 = vmatpush.msra.mxu0 0.0
        %181 = vmatpush.msra.mxu0 0.0
        %182 = vmatpush.msra.mxu0 0.0
        %183 = vmatpush.msra.mxu0 0.0
        %184 = vmatpush.msra.mxu0 0.0
        %185 = vmatpush.msra.mxu0 0.0
        %186 = vmatpush.msra.mxu0 0.0
        %187 = vmatpush.msra.mxu0 0.0
        %188 = vmatpush.msra.mxu0 0.0
        %189 = vmatpush.msra.mxu0 0.0
        %190 = vmatpush.msra.mxu0 0.0
        %191 = vmatpush.msra.mxu0 %v170
        %192 = vmatpush.msra.mxu0 %v169
        %193 = vmatpush.msra.mxu0 %v168
        %194 = vmatpush.msra.mxu0 %v167
        %195 = vmatmul.f32.gmra.mxu0 %v177
        %v196 = vpop.f32.mrf.mxu0
        %v197 = vadd.f32 %v173, %v196
        %198 = vdwg.mxu0
        %vm199 = vcmask 130048
        %200 = vst.msk [vmem:[%s161] sm:$0xff] %vm199, %v197
        %s201 = sand.u32 %s93, 1
        %s202 = scalar_lea.sflag [#allocation3], %s201
        %s203 = sand.u32 %s93, 1
        %s204 = smul.addr %s203, 8
        %s205 = scalar_lea.vmem [#allocation2], %s204
        // Predicated region
        $region33: #{decoder_forward.5} parent=31 // pred_check
          %p206 = pneg %p103
        $region34: #{decoder_forward.5} parent=31 // pred_check_branch
          %208 = sbr.rel (%p206) target = $region36
        $region35: #{decoder_forward.5} parent=31 // pred_region
          %210 = vsyncadd %s202, 0
          %s211 = smul.addr %s17, 8
          %s212 = scalar_lea.hbm %s3, %s211
          %s214 = sshll.u32 %s205, 4
          %s215 = int_to_ptr.vmem [resolvable:$true] %s214
          %s216 = sshll.u32 %s212, 4
          %s217 = int_to_ptr.hbm [resolvable:$true] %s216
          %219 = dma.vmem_to_hbm [thread:$0]  %s215, 128, %s217, %s202
        $region36: #{decoder_forward.5} parent=31 // pred_fallthru
          _
      $region32: #{decoder_forward.5} parent=5 // pred_fallthru
        _
      %p220 = scmp.le.s32.totalorder 2, %s12
      // Predicated region
      $region37: #{decoder_forward.5} parent=5 // pred_check
        %p221 = pneg %p220
      $region38: #{decoder_forward.5} parent=5 // pred_check_branch
        %223 = sbr.rel (%p221) target = $region40
      $region39: #{decoder_forward.5} parent=5 // pred_region
        %s224 = ssub.s32 %s12, 2
        // Predicated region
        $region41: #{decoder_forward.5} parent=39 // pred_check
          %p225 = pneg %p109
        $region42: #{decoder_forward.5} parent=39 // pred_check_branch
          %227 = sbr.rel (%p225) target = $region44
        $region43: #{decoder_forward.5} parent=39 // pred_region
          %s228 = sand.u32 %s94, 1
          %s229 = scalar_lea.sflag [#allocation3], %s228
          %s230 = sand.u32 %s94, 1
          %s231 = smul.addr %s230, 8
          %s232 = scalar_lea.vmem [#allocation2], %s231
          %234 = dma.done %s229, 128
        $region44: #{decoder_forward.5} parent=39 // pred_fallthru
          _
      $region40: #{decoder_forward.5} parent=5 // pred_fallthru
        _
    $region6: #{decoder_forward.5} parent=1 // loop_footer
      %s16 = sadd.s32 1, %s12
    $region7: #{decoder_forward.5} parent=1 // loop_footer_branch
      %11 = sbr.rel target = $region3
    $region8: #{decoder_forward.5} parent=1 // loop_exit
      _
    %235 = vsyncpa [#allocation3], 1
    %s236 = scalar_lea.sflag [#allocation3], 1
    %237 = vsyncpa %s236, 1

// kernel: decoder_forward.3
$region0: #{decoder_forward.3}
  #allocation0 [shape = 'u32[]', space=smem, size = 0x4, offset = 0x4, fixed_abs, tag = 'smem constant byte address 0x4 - core index']
  #allocation1 [shape = 'u32[72,128]{1,0:T(1,128)}', space=vmem, size = 0x9000, scoped, tag = 'internal scratch']
  %s0 = inlined_call_operand.vmem [shape: s32[2,1,8,8], index: 0, kind: input, shape index: {}]
  %s1 = inlined_call_operand.vmem [shape: s32[2,1,1,8], index: 1, kind: input, shape index: {}]
  %s2 = inlined_call_operand.vmem [shape: f32[2,8,32], index: 2, kind: input, shape index: {}]
  %s3 = inlined_call_operand.vmem [shape: f32[2,8,32], index: 3, kind: input, shape index: {}]
  %s4 = inlined_call_operand.vmem [shape: f32[32,96], index: 4, kind: input, shape index: {}]
  %s5 = inlined_call_operand.vmem [shape: f32[1,96], index: 5, kind: input, shape index: {}]
  %s6 = inlined_call_operand.vmem [shape: f32[32,32], index: 6, kind: input, shape index: {}]
  %s7 = inlined_call_operand.vmem [shape: f32[1,32], index: 7, kind: input, shape index: {}]
  %s8 = inlined_call_operand.vmem [shape: f32[1,32], index: 8, kind: input, shape index: {}]
  %s9 = inlined_call_operand.vmem [shape: f32[1,32], index: 9, kind: input, shape index: {}]
  %s10 = inlined_call_operand.vmem [shape: f32[32,96], index: 10, kind: input, shape index: {}]
  %s11 = inlined_call_operand.vmem [shape: f32[1,96], index: 11, kind: input, shape index: {}]
  %s12 = inlined_call_operand.vmem [shape: f32[32,32], index: 12, kind: input, shape index: {}]
  %s13 = inlined_call_operand.vmem [shape: f32[1,32], index: 13, kind: input, shape index: {}]
  %s14 = inlined_call_operand.vmem [shape: f32[1,32], index: 14, kind: input, shape index: {}]
  %s15 = inlined_call_operand.vmem [shape: f32[1,32], index: 15, kind: input, shape index: {}]
  %s16 = inlined_call_operand.vmem [shape: f32[32,64], index: 16, kind: input, shape index: {}]
  %s17 = inlined_call_operand.vmem [shape: f32[1,64], index: 17, kind: input, shape index: {}]
  %s18 = inlined_call_operand.vmem [shape: f32[64,32], index: 18, kind: input, shape index: {}]
  %s19 = inlined_call_operand.vmem [shape: f32[1,32], index: 19, kind: input, shape index: {}]
  %s20 = inlined_call_operand.vmem [shape: f32[1,32], index: 20, kind: input, shape index: {}]
  %s21 = inlined_call_operand.vmem [shape: f32[1,32], index: 21, kind: input, shape index: {}]
  %s22 = inlined_call_operand.vmem [shape: f32[2,8,32], index: 22, kind: output, shape index: {0}]
  %s23 = inlined_call_operand.hbm [shape: f32[2,4,8,8], index: 23, kind: output, shape index: {1}]
  %s24 = inlined_call_operand.hbm [shape: f32[2,4,8,8], index: 24, kind: output, shape index: {2}]
  %25 = xla_tuple %s22, %s23, %s24
  %s26 = sld [smem:[#allocation0]]
  $region137: #{decoder_forward.3} parent=0
    _
  %s28 = ssub.s32 1, %s26
  %s29 = scalar_select 0, %s28, %s26
  $region1: #{decoder_forward.3} parent=0
    #allocation2 [shape = 'u8[32768]{0}', space=vmem, size = 0x8000, scoped, tag = 'output window, operand 1']
    #allocation3 [shape = 's32[2]{0}', space=sflag, size = 0x8, scoped, tag = 'scoped memory for decoder_forward.3']
    #allocation4 [shape = 'u8[32768]{0}', space=vmem, size = 0x8000, scoped, tag = 'output window, operand 2']
    #allocation5 [shape = 's32[2]{0}', space=sflag, size = 0x8, scoped, tag = 'scoped memory for decoder_forward.3']
    %30 = vsyncpa [#allocation3], 0
    %s31 = scalar_lea.sflag [#allocation3], 1
    %32 = vsyncpa %s31, 0
    %33 = vsyncpa [#allocation5], 0
    %s34 = scalar_lea.sflag [#allocation5], 1
    %35 = vsyncpa %s34, 0
    loop: start=0, step=1, limit=4
    $region2: #{decoder_forward.3} parent=1 // loop_pre_header
      _
    $region3: #{decoder_forward.3} parent=1 // loop_header
      %s37 = sphi 0, %s41
      %p38 = scmp.ge.s32.totalorder %s37, 4
      %s47 = sphi 0, %s49
      %s50 = sphi 0, %s47
      %s51 = sphi 0, %s50
      %s67 = sphi 0, %s51
      %s73 = sphi 0, %s75
      %s76 = sphi 0, %s73
      %s77 = sphi 0, %s76
      %s93 = sphi 0, %s77
      %s99 = sphi 0, %s101
      %s102 = sphi 0, %s99
      %s103 = sphi 0, %s102
      %s119 = sphi 0, %s103
      %s125 = sphi 0, %s127
      %s128 = sphi 0, %s125
      %s129 = sphi 0, %s128
      %s145 = sphi 0, %s129
      %s149 = sphi 0, %s149
      %s151 = sphi 0, %s149
      %s152 = sphi 0, %s151
      %s166 = sphi 0, %s152
      %s170 = sphi 0, %s170
      %s172 = sphi 0, %s170
      %s173 = sphi 0, %s172
      %s187 = sphi 0, %s173
      %s191 = sphi 0, %s191
      %s193 = sphi 0, %s191
      %s194 = sphi 0, %s193
      %s208 = sphi 0, %s194
      %s212 = sphi 0, %s212
      %s214 = sphi 0, %s212
      %s215 = sphi 0, %s214
      %s229 = sphi 0, %s215
      %s233 = sphi 0, %s233
      %s235 = sphi 0, %s233
      %s236 = sphi 0, %s235
      %s250 = sphi 0, %s236
      %s254 = sphi 0, %s254
      %s256 = sphi 0, %s254
      %s257 = sphi 0, %s256
      %s271 = sphi 0, %s257
      %s275 = sphi 0, %s275
      %s277 = sphi 0, %s275
      %s278 = sphi 0, %s277
      %s292 = sphi 0, %s278
      %s296 = sphi 0, %s296
      %s298 = sphi 0, %s296
      %s299 = sphi 0, %s298
      %s313 = sphi 0, %s299
      %s317 = sphi 0, %s317
      %s319 = sphi 0, %s317
      %s320 = sphi 0, %s319
      %s334 = sphi 0, %s320
      %s338 = sphi 0, %s338
      %s340 = sphi 0, %s338
      %s341 = sphi 0, %s340
      %s355 = sphi 0, %s341
      %s359 = sphi 0, %s359
      %s361 = sphi 0, %s359
      %s362 = sphi 0, %s361
      %s376 = sphi 0, %s362
      %s380 = sphi 0, %s380
      %s382 = sphi 0, %s380
      %s383 = sphi 0, %s382
      %s397 = sphi 0, %s383
      %s401 = sphi 0, %s401
      %s403 = sphi 0, %s401
      %s404 = sphi 0, %s403
      %s418 = sphi 0, %s404
      %s422 = sphi 0, %s422
      %s424 = sphi 0, %s422
      %s425 = sphi 0, %s424
      %s439 = sphi 0, %s425
      %s443 = sphi 0, %s443
      %s445 = sphi 0, %s443
      %s446 = sphi 0, %s445
      %s460 = sphi 0, %s446
      %s464 = sphi 0, %s464
      %s466 = sphi 0, %s464
      %s467 = sphi 0, %s466
      %s481 = sphi 0, %s467
      %s485 = sphi 0, %s485
      %s487 = sphi 0, %s485
      %s488 = sphi 0, %s487
      %s502 = sphi 0, %s488
      %s506 = sphi 0, %s506
      %s508 = sphi 0, %s506
      %s509 = sphi 0, %s508
      %s523 = sphi 0, %s509
      %s529 = sphi 0, %s531
      %s532 = sphi 0, %s529
      %s533 = sphi 0, %s532
      %s549 = sphi 0, %s533
      %s555 = sphi 0, %s557
      %s558 = sphi 0, %s555
      %s559 = sphi 0, %s558
      %s575 = sphi 0, %s559
      %s581 = sphi 0, %s583
      %s584 = sphi 0, %s581
      %s585 = sphi 0, %s584
      %s601 = sphi 0, %s585
    $region4: #{decoder_forward.3} parent=1 // loop_header_branch
      %40 = sbr.rel (%p38) target = $region8
    $region5: #{decoder_forward.3} parent=1 // loop_body
      %s42 = ssub.s32 %s37, 1
      %s43 = ssub.s32 %s37, 2
      %s44 = sadd.s32 %s37, 1
      %s45 = ssub.s32 %s37, %s44
      %p46 = scmp.eq.s32.totalorder %s45, 0
      %s48 = sadd.s32 %s47, 1
      %s49 = scalar_select %p46, %s47, %s48
      %p52 = pneg %p46
      %p53 = scmp.eq.s32.totalorder %s37, 1
      %p54 = por %p52, %p53
      %p55 = scmp.ne.s32.totalorder %s47, %s50
      %p56 = scmp.eq.s32.totalorder %s37, 0
      %p57 = por %p55, %p56
      %p58 = scmp.ne.s32.totalorder %s47, %s50
      %p59 = scmp.eq.s32.totalorder %s42, 1
      %p60 = por %p58, %p59
      %p61 = scmp.ne.s32.totalorder %s50, %s51
      %p62 = scmp.eq.s32.totalorder %s42, 0
      %p63 = por %p61, %p62
      %p64 = scmp.ne.s32.totalorder %s50, %s51
      %p65 = scmp.eq.s32.totalorder %s43, 1
      %p66 = por %p64, %p65
      %p68 = scmp.ne.s32.totalorder %s51, %s67
      %p69 = scmp.eq.s32.totalorder %s43, 0
      %p70 = por %p68, %p69
      %s71 = ssub.s32 %s37, %s44
      %p72 = scmp.eq.s32.totalorder %s71, 0
      %s74 = sadd.s32 %s73, 1
      %s75 = scalar_select %p72, %s73, %s74
      %p78 = pneg %p72
      %p79 = scmp.eq.s32.totalorder %s37, 1
      %p80 = por %p78, %p79
      %p81 = scmp.ne.s32.totalorder %s73, %s76
      %p82 = scmp.eq.s32.totalorder %s37, 0
      %p83 = por %p81, %p82
      %p84 = scmp.ne.s32.totalorder %s73, %s76
      %p85 = scmp.eq.s32.totalorder %s42, 1
      %p86 = por %p84, %p85
      %p87 = scmp.ne.s32.totalorder %s76, %s77
      %p88 = scmp.eq.s32.totalorder %s42, 0
      %p89 = por %p87, %p88
      %p90 = scmp.ne.s32.totalorder %s76, %s77
      %p91 = scmp.eq.s32.totalorder %s43, 1
      %p92 = por %p90, %p91
      %p94 = scmp.ne.s32.totalorder %s77, %s93
      %p95 = scmp.eq.s32.totalorder %s43, 0
      %p96 = por %p94, %p95
      %s97 = ssub.s32 %s37, %s44
      %p98 = scmp.eq.s32.totalorder %s97, 0
      %s100 = sadd.s32 %s99, 1
      %s101 = scalar_select %p98, %s99, %s100
      %p104 = pneg %p98
      %p105 = scmp.eq.s32.totalorder %s37, 1
      %p106 = por %p104, %p105
      %p107 = scmp.ne.s32.totalorder %s99, %s102
      %p108 = scmp.eq.s32.totalorder %s37, 0
      %p109 = por %p107, %p108
      %p110 = scmp.ne.s32.totalorder %s99, %s102
      %p111 = scmp.eq.s32.totalorder %s42, 1
      %p112 = por %p110, %p111
      %p113 = scmp.ne.s32.totalorder %s102, %s103
      %p114 = scmp.eq.s32.totalorder %s42, 0
      %p115 = por %p113, %p114
      %p116 = scmp.ne.s32.totalorder %s102, %s103
      %p117 = scmp.eq.s32.totalorder %s43, 1
      %p118 = por %p116, %p117
      %p120 = scmp.ne.s32.totalorder %s103, %s119
      %p121 = scmp.eq.s32.totalorder %s43, 0
      %p122 = por %p120, %p121
      %s123 = ssub.s32 %s37, %s44
      %p124 = scmp.eq.s32.totalorder %s123, 0
      %s126 = sadd.s32 %s125, 1
      %s127 = scalar_select %p124, %s125, %s126
      %p130 = pneg %p124
      %p131 = scmp.eq.s32.totalorder %s37, 1
      %p132 = por %p130, %p131
      %p133 = scmp.ne.s32.totalorder %s125, %s128
      %p134 = scmp.eq.s32.totalorder %s37, 0
      %p135 = por %p133, %p134
      %p136 = scmp.ne.s32.totalorder %s125, %s128
      %p137 = scmp.eq.s32.totalorder %s42, 1
      %p138 = por %p136, %p137
      %p139 = scmp.ne.s32.totalorder %s128, %s129
      %p140 = scmp.eq.s32.totalorder %s42, 0
      %p141 = por %p139, %p140
      %p142 = scmp.ne.s32.totalorder %s128, %s129
      %p143 = scmp.eq.s32.totalorder %s43, 1
      %p144 = por %p142, %p143
      %p146 = scmp.ne.s32.totalorder %s129, %s145
      %p147 = scmp.eq.s32.totalorder %s43, 0
      %p148 = por %p146, %p147
      %s150 = sadd.s32 %s149, 1
      %p153 = scmp.eq.s32.totalorder %s37, 1
      %p154 = scmp.ne.s32.totalorder %s149, %s151
      %p155 = scmp.eq.s32.totalorder %s37, 0
      %p156 = por %p154, %p155
      %p157 = scmp.ne.s32.totalorder %s149, %s151
      %p158 = scmp.eq.s32.totalorder %s42, 1
      %p159 = por %p157, %p158
      %p160 = scmp.ne.s32.totalorder %s151, %s152
      %p161 = scmp.eq.s32.totalorder %s42, 0
      %p162 = por %p160, %p161
      %p163 = scmp.ne.s32.totalorder %s151, %s152
      %p164 = scmp.eq.s32.totalorder %s43, 1
      %p165 = por %p163, %p164
      %p167 = scmp.ne.s32.totalorder %s152, %s166
      %p168 = scmp.eq.s32.totalorder %s43, 0
      %p169 = por %p167, %p168
      %s171 = sadd.s32 %s170, 1
      %p174 = scmp.eq.s32.totalorder %s37, 1
      %p175 = scmp.ne.s32.totalorder %s170, %s172
      %p176 = scmp.eq.s32.totalorder %s37, 0
      %p177 = por %p175, %p176
      %p178 = scmp.ne.s32.totalorder %s170, %s172
      %p179 = scmp.eq.s32.totalorder %s42, 1
      %p180 = por %p178, %p179
      %p181 = scmp.ne.s32.totalorder %s172, %s173
      %p182 = scmp.eq.s32.totalorder %s42, 0
      %p183 = por %p181, %p182
      %p184 = scmp.ne.s32.totalorder %s172, %s173
      %p185 = scmp.eq.s32.totalorder %s43, 1
      %p186 = por %p184, %p185
      %p188 = scmp.ne.s32.totalorder %s173, %s187
      %p189 = scmp.eq.s32.totalorder %s43, 0
      %p190 = por %p188, %p189
      %s192 = sadd.s32 %s191, 1
      %p195 = scmp.eq.s32.totalorder %s37, 1
      %p196 = scmp.ne.s32.totalorder %s191, %s193
      %p197 = scmp.eq.s32.totalorder %s37, 0
      %p198 = por %p196, %p197
      %p199 = scmp.ne.s32.totalorder %s191, %s193
      %p200 = scmp.eq.s32.totalorder %s42, 1
      %p201 = por %p199, %p200
      %p202 = scmp.ne.s32.totalorder %s193, %s194
      %p203 = scmp.eq.s32.totalorder %s42, 0
      %p204 = por %p202, %p203
      %p205 = scmp.ne.s32.totalorder %s193, %s194
      %p206 = scmp.eq.s32.totalorder %s43, 1
      %p207 = por %p205, %p206
      %p209 = scmp.ne.s32.totalorder %s194, %s208
      %p210 = scmp.eq.s32.totalorder %s43, 0
      %p211 = por %p209, %p210
      %s213 = sadd.s32 %s212, 1
      %p216 = scmp.eq.s32.totalorder %s37, 1
      %p217 = scmp.ne.s32.totalorder %s212, %s214
      %p218 = scmp.eq.s32.totalorder %s37, 0
      %p219 = por %p217, %p218
      %p220 = scmp.ne.s32.totalorder %s212, %s214
      %p221 = scmp.eq.s32.totalorder %s42, 1
      %p222 = por %p220, %p221
      %p223 = scmp.ne.s32.totalorder %s214, %s215
      %p224 = scmp.eq.s32.totalorder %s42, 0
      %p225 = por %p223, %p224
      %p226 = scmp.ne.s32.totalorder %s214, %s215
      %p227 = scmp.eq.s32.totalorder %s43, 1
      %p228 = por %p226, %p227
      %p230 = scmp.ne.s32.totalorder %s215, %s229
      %p231 = scmp.eq.s32.totalorder %s43, 0
      %p232 = por %p230, %p231
      %s234 = sadd.s32 %s233, 1
      %p237 = scmp.eq.s32.totalorder %s37, 1
      %p238 = scmp.ne.s32.totalorder %s233, %s235
      %p239 = scmp.eq.s32.totalorder %s37, 0
      %p240 = por %p238, %p239
      %p241 = scmp.ne.s32.totalorder %s233, %s235
      %p242 = scmp.eq.s32.totalorder %s42, 1
      %p243 = por %p241, %p242
      %p244 = scmp.ne.s32.totalorder %s235, %s236
      %p245 = scmp.eq.s32.totalorder %s42, 0
      %p246 = por %p244, %p245
      %p247 = scmp.ne.s32.totalorder %s235, %s236
      %p248 = scmp.eq.s32.totalorder %s43, 1
      %p249 = por %p247, %p248
      %p251 = scmp.ne.s32.totalorder %s236, %s250
      %p252 = scmp.eq.s32.totalorder %s43, 0
      %p253 = por %p251, %p252
      %s255 = sadd.s32 %s254, 1
      %p258 = scmp.eq.s32.totalorder %s37, 1
      %p259 = scmp.ne.s32.totalorder %s254, %s256
      %p260 = scmp.eq.s32.totalorder %s37, 0
      %p261 = por %p259, %p260
      %p262 = scmp.ne.s32.totalorder %s254, %s256
      %p263 = scmp.eq.s32.totalorder %s42, 1
      %p264 = por %p262, %p263
      %p265 = scmp.ne.s32.totalorder %s256, %s257
      %p266 = scmp.eq.s32.totalorder %s42, 0
      %p267 = por %p265, %p266
      %p268 = scmp.ne.s32.totalorder %s256, %s257
      %p269 = scmp.eq.s32.totalorder %s43, 1
      %p270 = por %p268, %p269
      %p272 = scmp.ne.s32.totalorder %s257, %s271
      %p273 = scmp.eq.s32.totalorder %s43, 0
      %p274 = por %p272, %p273
      %s276 = sadd.s32 %s275, 1
      %p279 = scmp.eq.s32.totalorder %s37, 1
      %p280 = scmp.ne.s32.totalorder %s275, %s277
      %p281 = scmp.eq.s32.totalorder %s37, 0
      %p282 = por %p280, %p281
      %p283 = scmp.ne.s32.totalorder %s275, %s277
      %p284 = scmp.eq.s32.totalorder %s42, 1
      %p285 = por %p283, %p284
      %p286 = scmp.ne.s32.totalorder %s277, %s278
      %p287 = scmp.eq.s32.totalorder %s42, 0
      %p288 = por %p286, %p287
      %p289 = scmp.ne.s32.totalorder %s277, %s278
      %p290 = scmp.eq.s32.totalorder %s43, 1
      %p291 = por %p289, %p290
      %p293 = scmp.ne.s32.totalorder %s278, %s292
      %p294 = scmp.eq.s32.totalorder %s43, 0
      %p295 = por %p293, %p294
      %s297 = sadd.s32 %s296, 1
      %p300 = scmp.eq.s32.totalorder %s37, 1
      %p301 = scmp.ne.s32.totalorder %s296, %s298
      %p302 = scmp.eq.s32.totalorder %s37, 0
      %p303 = por %p301, %p302
      %p304 = scmp.ne.s32.totalorder %s296, %s298
      %p305 = scmp.eq.s32.totalorder %s42, 1
      %p306 = por %p304, %p305
      %p307 = scmp.ne.s32.totalorder %s298, %s299
      %p308 = scmp.eq.s32.totalorder %s42, 0
      %p309 = por %p307, %p308
      %p310 = scmp.ne.s32.totalorder %s298, %s299
      %p311 = scmp.eq.s32.totalorder %s43, 1
      %p312 = por %p310, %p311
      %p314 = scmp.ne.s32.totalorder %s299, %s313
      %p315 = scmp.eq.s32.totalorder %s43, 0
      %p316 = por %p314, %p315
      %s318 = sadd.s32 %s317, 1
      %p321 = scmp.eq.s32.totalorder %s37, 1
      %p322 = scmp.ne.s32.totalorder %s317, %s319
      %p323 = scmp.eq.s32.totalorder %s37, 0
      %p324 = por %p322, %p323
      %p325 = scmp.ne.s32.totalorder %s317, %s319
      %p326 = scmp.eq.s32.totalorder %s42, 1
      %p327 = por %p325, %p326
      %p328 = scmp.ne.s32.totalorder %s319, %s320
      %p329 = scmp.eq.s32.totalorder %s42, 0
      %p330 = por %p328, %p329
      %p331 = scmp.ne.s32.totalorder %s319, %s320
      %p332 = scmp.eq.s32.totalorder %s43, 1
      %p333 = por %p331, %p332
      %p335 = scmp.ne.s32.totalorder %s320, %s334
      %p336 = scmp.eq.s32.totalorder %s43, 0
      %p337 = por %p335, %p336
      %s339 = sadd.s32 %s338, 1
      %p342 = scmp.eq.s32.totalorder %s37, 1
      %p343 = scmp.ne.s32.totalorder %s338, %s340
      %p344 = scmp.eq.s32.totalorder %s37, 0
      %p345 = por %p343, %p344
      %p346 = scmp.ne.s32.totalorder %s338, %s340
      %p347 = scmp.eq.s32.totalorder %s42, 1
      %p348 = por %p346, %p347
      %p349 = scmp.ne.s32.totalorder %s340, %s341
      %p350 = scmp.eq.s32.totalorder %s42, 0
      %p351 = por %p349, %p350
      %p352 = scmp.ne.s32.totalorder %s340, %s341
      %p353 = scmp.eq.s32.totalorder %s43, 1
      %p354 = por %p352, %p353
      %p356 = scmp.ne.s32.totalorder %s341, %s355
      %p357 = scmp.eq.s32.totalorder %s43, 0
      %p358 = por %p356, %p357
      %s360 = sadd.s32 %s359, 1
      %p363 = scmp.eq.s32.totalorder %s37, 1
      %p364 = scmp.ne.s32.totalorder %s359, %s361
      %p365 = scmp.eq.s32.totalorder %s37, 0
      %p366 = por %p364, %p365
      %p367 = scmp.ne.s32.totalorder %s359, %s361
      %p368 = scmp.eq.s32.totalorder %s42, 1
      %p369 = por %p367, %p368
      %p370 = scmp.ne.s32.totalorder %s361, %s362
      %p371 = scmp.eq.s32.totalorder %s42, 0
      %p372 = por %p370, %p371
      %p373 = scmp.ne.s32.totalorder %s361, %s362
      %p374 = scmp.eq.s32.totalorder %s43, 1
      %p375 = por %p373, %p374
      %p377 = scmp.ne.s32.totalorder %s362, %s376
      %p378 = scmp.eq.s32.totalorder %s43, 0
      %p379 = por %p377, %p378
      %s381 = sadd.s32 %s380, 1
      %p384 = scmp.eq.s32.totalorder %s37, 1
      %p385 = scmp.ne.s32.totalorder %s380, %s382
      %p386 = scmp.eq.s32.totalorder %s37, 0
      %p387 = por %p385, %p386
      %p388 = scmp.ne.s32.totalorder %s380, %s382
      %p389 = scmp.eq.s32.totalorder %s42, 1
      %p390 = por %p388, %p389
      %p391 = scmp.ne.s32.totalorder %s382, %s383
      %p392 = scmp.eq.s32.totalorder %s42, 0
      %p393 = por %p391, %p392
      %p394 = scmp.ne.s32.totalorder %s382, %s383
      %p395 = scmp.eq.s32.totalorder %s43, 1
      %p396 = por %p394, %p395
      %p398 = scmp.ne.s32.totalorder %s383, %s397
      %p399 = scmp.eq.s32.totalorder %s43, 0
      %p400 = por %p398, %p399
      %s402 = sadd.s32 %s401, 1
      %p405 = scmp.eq.s32.totalorder %s37, 1
      %p406 = scmp.ne.s32.totalorder %s401, %s403
      %p407 = scmp.eq.s32.totalorder %s37, 0
      %p408 = por %p406, %p407
      %p409 = scmp.ne.s32.totalorder %s401, %s403
      %p410 = scmp.eq.s32.totalorder %s42, 1
      %p411 = por %p409, %p410
      %p412 = scmp.ne.s32.totalorder %s403, %s404
      %p413 = scmp.eq.s32.totalorder %s42, 0
      %p414 = por %p412, %p413
      %p415 = scmp.ne.s32.totalorder %s403, %s404
      %p416 = scmp.eq.s32.totalorder %s43, 1
      %p417 = por %p415, %p416
      %p419 = scmp.ne.s32.totalorder %s404, %s418
      %p420 = scmp.eq.s32.totalorder %s43, 0
      %p421 = por %p419, %p420
      %s423 = sadd.s32 %s422, 1
      %p426 = scmp.eq.s32.totalorder %s37, 1
      %p427 = scmp.ne.s32.totalorder %s422, %s424
      %p428 = scmp.eq.s32.totalorder %s37, 0
      %p429 = por %p427, %p428
      %p430 = scmp.ne.s32.totalorder %s422, %s424
      %p431 = scmp.eq.s32.totalorder %s42, 1
      %p432 = por %p430, %p431
      %p433 = scmp.ne.s32.totalorder %s424, %s425
      %p434 = scmp.eq.s32.totalorder %s42, 0
      %p435 = por %p433, %p434
      %p436 = scmp.ne.s32.totalorder %s424, %s425
      %p437 = scmp.eq.s32.totalorder %s43, 1
      %p438 = por %p436, %p437
      %p440 = scmp.ne.s32.totalorder %s425, %s439
      %p441 = scmp.eq.s32.totalorder %s43, 0
      %p442 = por %p440, %p441
      %s444 = sadd.s32 %s443, 1
      %p447 = scmp.eq.s32.totalorder %s37, 1
      %p448 = scmp.ne.s32.totalorder %s443, %s445
      %p449 = scmp.eq.s32.totalorder %s37, 0
      %p450 = por %p448, %p449
      %p451 = scmp.ne.s32.totalorder %s443, %s445
      %p452 = scmp.eq.s32.totalorder %s42, 1
      %p453 = por %p451, %p452
      %p454 = scmp.ne.s32.totalorder %s445, %s446
      %p455 = scmp.eq.s32.totalorder %s42, 0
      %p456 = por %p454, %p455
      %p457 = scmp.ne.s32.totalorder %s445, %s446
      %p458 = scmp.eq.s32.totalorder %s43, 1
      %p459 = por %p457, %p458
      %p461 = scmp.ne.s32.totalorder %s446, %s460
      %p462 = scmp.eq.s32.totalorder %s43, 0
      %p463 = por %p461, %p462
      %s465 = sadd.s32 %s464, 1
      %p468 = scmp.eq.s32.totalorder %s37, 1
      %p469 = scmp.ne.s32.totalorder %s464, %s466
      %p470 = scmp.eq.s32.totalorder %s37, 0
      %p471 = por %p469, %p470
      %p472 = scmp.ne.s32.totalorder %s464, %s466
      %p473 = scmp.eq.s32.totalorder %s42, 1
      %p474 = por %p472, %p473
      %p475 = scmp.ne.s32.totalorder %s466, %s467
      %p476 = scmp.eq.s32.totalorder %s42, 0
      %p477 = por %p475, %p476
      %p478 = scmp.ne.s32.totalorder %s466, %s467
      %p479 = scmp.eq.s32.totalorder %s43, 1
      %p480 = por %p478, %p479
      %p482 = scmp.ne.s32.totalorder %s467, %s481
      %p483 = scmp.eq.s32.totalorder %s43, 0
      %p484 = por %p482, %p483
      %s486 = sadd.s32 %s485, 1
      %p489 = scmp.eq.s32.totalorder %s37, 1
      %p490 = scmp.ne.s32.totalorder %s485, %s487
      %p491 = scmp.eq.s32.totalorder %s37, 0
      %p492 = por %p490, %p491
      %p493 = scmp.ne.s32.totalorder %s485, %s487
      %p494 = scmp.eq.s32.totalorder %s42, 1
      %p495 = por %p493, %p494
      %p496 = scmp.ne.s32.totalorder %s487, %s488
      %p497 = scmp.eq.s32.totalorder %s42, 0
      %p498 = por %p496, %p497
      %p499 = scmp.ne.s32.totalorder %s487, %s488
      %p500 = scmp.eq.s32.totalorder %s43, 1
      %p501 = por %p499, %p500
      %p503 = scmp.ne.s32.totalorder %s488, %s502
      %p504 = scmp.eq.s32.totalorder %s43, 0
      %p505 = por %p503, %p504
      %s507 = sadd.s32 %s506, 1
      %p510 = scmp.eq.s32.totalorder %s37, 1
      %p511 = scmp.ne.s32.totalorder %s506, %s508
      %p512 = scmp.eq.s32.totalorder %s37, 0
      %p513 = por %p511, %p512
      %p514 = scmp.ne.s32.totalorder %s506, %s508
      %p515 = scmp.eq.s32.totalorder %s42, 1
      %p516 = por %p514, %p515
      %p517 = scmp.ne.s32.totalorder %s508, %s509
      %p518 = scmp.eq.s32.totalorder %s42, 0
      %p519 = por %p517, %p518
      %p520 = scmp.ne.s32.totalorder %s508, %s509
      %p521 = scmp.eq.s32.totalorder %s43, 1
      %p522 = por %p520, %p521
      %p524 = scmp.ne.s32.totalorder %s509, %s523
      %p525 = scmp.eq.s32.totalorder %s43, 0
      %p526 = por %p524, %p525
      %s527 = ssub.s32 %s37, %s44
      %p528 = scmp.eq.s32.totalorder %s527, 0
      %s530 = sadd.s32 %s529, 1
      %s531 = scalar_select %p528, %s529, %s530
      %p534 = pneg %p528
      %p535 = scmp.eq.s32.totalorder %s37, 1
      %p536 = por %p534, %p535
      %p537 = scmp.ne.s32.totalorder %s529, %s532
      %p538 = scmp.eq.s32.totalorder %s37, 0
      %p539 = por %p537, %p538
      %p540 = scmp.ne.s32.totalorder %s529, %s532
      %p541 = scmp.eq.s32.totalorder %s42, 1
      %p542 = por %p540, %p541
      %p543 = scmp.ne.s32.totalorder %s532, %s533
      %p544 = scmp.eq.s32.totalorder %s42, 0
      %p545 = por %p543, %p544
      %p546 = scmp.ne.s32.totalorder %s532, %s533
      %p547 = scmp.eq.s32.totalorder %s43, 1
      %p548 = por %p546, %p547
      %p550 = scmp.ne.s32.totalorder %s533, %s549
      %p551 = scmp.eq.s32.totalorder %s43, 0
      %p552 = por %p550, %p551
      %s553 = ssub.s32 %s37, %s44
      %p554 = scmp.eq.s32.totalorder %s553, 0
      %s556 = sadd.s32 %s555, 1
      %s557 = scalar_select %p554, %s555, %s556
      %p560 = pneg %p554
      %p561 = scmp.eq.s32.totalorder %s37, 1
      %p562 = por %p560, %p561
      %p563 = scmp.ne.s32.totalorder %s555, %s558
      %p564 = scmp.eq.s32.totalorder %s37, 0
      %p565 = por %p563, %p564
      %p566 = scmp.ne.s32.totalorder %s555, %s558
      %p567 = scmp.eq.s32.totalorder %s42, 1
      %p568 = por %p566, %p567
      %p569 = scmp.ne.s32.totalorder %s558, %s559
      %p570 = scmp.eq.s32.totalorder %s42, 0
      %p571 = por %p569, %p570
      %p572 = scmp.ne.s32.totalorder %s558, %s559
      %p573 = scmp.eq.s32.totalorder %s43, 1
      %p574 = por %p572, %p573
      %p576 = scmp.ne.s32.totalorder %s559, %s575
      %p577 = scmp.eq.s32.totalorder %s43, 0
      %p578 = por %p576, %p577
      %s579 = ssub.s32 %s37, %s44
      %p580 = scmp.eq.s32.totalorder %s579, 0
      %s582 = sadd.s32 %s581, 1
      %s583 = scalar_select %p580, %s581, %s582
      %p586 = pneg %p580
      %p587 = scmp.eq.s32.totalorder %s37, 1
      %p588 = por %p586, %p587
      %p589 = scmp.ne.s32.totalorder %s581, %s584
      %p590 = scmp.eq.s32.totalorder %s37, 0
      %p591 = por %p589, %p590
      %p592 = scmp.ne.s32.totalorder %s581, %s584
      %p593 = scmp.eq.s32.totalorder %s42, 1
      %p594 = por %p592, %p593
      %p595 = scmp.ne.s32.totalorder %s584, %s585
      %p596 = scmp.eq.s32.totalorder %s42, 0
      %p597 = por %p595, %p596
      %p598 = scmp.ne.s32.totalorder %s584, %s585
      %p599 = scmp.eq.s32.totalorder %s43, 1
      %p600 = por %p598, %p599
      %p602 = scmp.ne.s32.totalorder %s585, %s601
      %p603 = scmp.eq.s32.totalorder %s43, 0
      %p604 = por %p602, %p603
      %p605 = scmp.le.s32.totalorder 1, %s37
      %p606 = scmp.lt.s32.totalorder %s37, 3
      %p607 = pnand %p605, %p606
      %p608 = pneg %p607
      // Predicated region
      $region9: #{decoder_forward.3} parent=5 // pred_check
        _
      $region10: #{decoder_forward.3} parent=5 // pred_check_branch
        %610 = sbr.rel (%p607) target = $region12
      $region11: #{decoder_forward.3} parent=5 // pred_region
        %s611 = ssub.s32 %s37, 1
        // Predicated region
        $region13: #{decoder_forward.3} parent=11 // pred_check
          %p612 = pneg %p162
        $region14: #{decoder_forward.3} parent=11 // pred_check_branch
          %614 = sbr.rel (%p612) target = $region16
        $region15: #{decoder_forward.3} parent=11 // pred_region
          _
        $region16: #{decoder_forward.3} parent=11 // pred_fallthru
          _
        // Predicated region
        $region17: #{decoder_forward.3} parent=11 // pred_check
          %p615 = pneg %p183
        $region18: #{decoder_forward.3} parent=11 // pred_check_branch
          %617 = sbr.rel (%p615) target = $region20
        $region19: #{decoder_forward.3} parent=11 // pred_region
          _
        $region20: #{decoder_forward.3} parent=11 // pred_fallthru
          _
        // Predicated region
        $region21: #{decoder_forward.3} parent=11 // pred_check
          %p618 = pneg %p204
        $region22: #{decoder_forward.3} parent=11 // pred_check_branch
          %620 = sbr.rel (%p618) target = $region24
        $region23: #{decoder_forward.3} parent=11 // pred_region
          _
        $region24: #{decoder_forward.3} parent=11 // pred_fallthru
          _
        // Predicated region
        $region25: #{decoder_forward.3} parent=11 // pred_check
          %p621 = pneg %p225
        $region26: #{decoder_forward.3} parent=11 // pred_check_branch
          %623 = sbr.rel (%p621) target = $region28
        $region27: #{decoder_forward.3} parent=11 // pred_region
          _
        $region28: #{decoder_forward.3} parent=11 // pred_fallthru
          _
        // Predicated region
        $region29: #{decoder_forward.3} parent=11 // pred_check
          %p624 = pneg %p246
        $region30: #{decoder_forward.3} parent=11 // pred_check_branch
          %626 = sbr.rel (%p624) target = $region32
        $region31: #{decoder_forward.3} parent=11 // pred_region
          _
        $region32: #{decoder_forward.3} parent=11 // pred_fallthru
          _
        // Predicated region
        $region33: #{decoder_forward.3} parent=11 // pred_check
          %p627 = pneg %p267
        $region34: #{decoder_forward.3} parent=11 // pred_check_branch
          %629 = sbr.rel (%p627) target = $region36
        $region35: #{decoder_forward.3} parent=11 // pred_region
          _
        $region36: #{decoder_forward.3} parent=11 // pred_fallthru
          _
        // Predicated region
        $region37: #{decoder_forward.3} parent=11 // pred_check
          %p630 = pneg %p288
        $region38: #{decoder_forward.3} parent=11 // pred_check_branch
          %632 = sbr.rel (%p630) target = $region40
        $region39: #{decoder_forward.3} parent=11 // pred_region
          _
        $region40: #{decoder_forward.3} parent=11 // pred_fallthru
          _
        // Predicated region
        $region41: #{decoder_forward.3} parent=11 // pred_check
          %p633 = pneg %p309
        $region42: #{decoder_forward.3} parent=11 // pred_check_branch
          %635 = sbr.rel (%p633) target = $region44
        $region43: #{decoder_forward.3} parent=11 // pred_region
          _
        $region44: #{decoder_forward.3} parent=11 // pred_fallthru
          _
        // Predicated region
        $region45: #{decoder_forward.3} parent=11 // pred_check
          %p636 = pneg %p330
        $region46: #{decoder_forward.3} parent=11 // pred_check_branch
          %638 = sbr.rel (%p636) target = $region48
        $region47: #{decoder_forward.3} parent=11 // pred_region
          _
        $region48: #{decoder_forward.3} parent=11 // pred_fallthru
          _
        // Predicated region
        $region49: #{decoder_forward.3} parent=11 // pred_check
          %p639 = pneg %p351
        $region50: #{decoder_forward.3} parent=11 // pred_check_branch
          %641 = sbr.rel (%p639) target = $region52
        $region51: #{decoder_forward.3} parent=11 // pred_region
          _
        $region52: #{decoder_forward.3} parent=11 // pred_fallthru
          _
        // Predicated region
        $region53: #{decoder_forward.3} parent=11 // pred_check
          %p642 = pneg %p372
        $region54: #{decoder_forward.3} parent=11 // pred_check_branch
          %644 = sbr.rel (%p642) target = $region56
        $region55: #{decoder_forward.3} parent=11 // pred_region
          _
        $region56: #{decoder_forward.3} parent=11 // pred_fallthru
          _
        // Predicated region
        $region57: #{decoder_forward.3} parent=11 // pred_check
          %p645 = pneg %p393
        $region58: #{decoder_forward.3} parent=11 // pred_check_branch
          %647 = sbr.rel (%p645) target = $region60
        $region59: #{decoder_forward.3} parent=11 // pred_region
          _
        $region60: #{decoder_forward.3} parent=11 // pred_fallthru
          _
        // Predicated region
        $region61: #{decoder_forward.3} parent=11 // pred_check
          %p648 = pneg %p414
        $region62: #{decoder_forward.3} parent=11 // pred_check_branch
          %650 = sbr.rel (%p648) target = $region64
        $region63: #{decoder_forward.3} parent=11 // pred_region
          _
        $region64: #{decoder_forward.3} parent=11 // pred_fallthru
          _
        // Predicated region
        $region65: #{decoder_forward.3} parent=11 // pred_check
          %p651 = pneg %p435
        $region66: #{decoder_forward.3} parent=11 // pred_check_branch
          %653 = sbr.rel (%p651) target = $region68
        $region67: #{decoder_forward.3} parent=11 // pred_region
          _
        $region68: #{decoder_forward.3} parent=11 // pred_fallthru
          _
        // Predicated region
        $region69: #{decoder_forward.3} parent=11 // pred_check
          %p654 = pneg %p456
        $region70: #{decoder_forward.3} parent=11 // pred_check_branch
          %656 = sbr.rel (%p654) target = $region72
        $region71: #{decoder_forward.3} parent=11 // pred_region
          _
        $region72: #{decoder_forward.3} parent=11 // pred_fallthru
          _
        // Predicated region
        $region73: #{decoder_forward.3} parent=11 // pred_check
          %p657 = pneg %p477
        $region74: #{decoder_forward.3} parent=11 // pred_check_branch
          %659 = sbr.rel (%p657) target = $region76
        $region75: #{decoder_forward.3} parent=11 // pred_region
          _
        $region76: #{decoder_forward.3} parent=11 // pred_fallthru
          _
        // Predicated region
        $region77: #{decoder_forward.3} parent=11 // pred_check
          %p660 = pneg %p498
        $region78: #{decoder_forward.3} parent=11 // pred_check_branch
          %662 = sbr.rel (%p660) target = $region80
        $region79: #{decoder_forward.3} parent=11 // pred_region
          _
        $region80: #{decoder_forward.3} parent=11 // pred_fallthru
          _
        // Predicated region
        $region81: #{decoder_forward.3} parent=11 // pred_check
          %p663 = pneg %p519
        $region82: #{decoder_forward.3} parent=11 // pred_check_branch
          %665 = sbr.rel (%p663) target = $region84
        $region83: #{decoder_forward.3} parent=11 // pred_region
          _
        $region84: #{decoder_forward.3} parent=11 // pred_fallthru
          _
      $region12: #{decoder_forward.3} parent=5 // pred_fallthru
        _
      %p666 = scmp.lt.s32.totalorder %s37, 2
      // Predicated region
      $region85: #{decoder_forward.3} parent=5 // pred_check
        %p667 = pneg %p666
      $region86: #{decoder_forward.3} parent=5 // pred_check_branch
        %669 = sbr.rel (%p667) target = $region88
      $region87: #{decoder_forward.3} parent=5 // pred_region
        // Predicated region
        $region89: #{decoder_forward.3} parent=87 // pred_check
          %p670 = pneg %p57
        $region90: #{decoder_forward.3} parent=87 // pred_check_branch
          %672 = sbr.rel (%p670) target = $region92
        $region91: #{decoder_forward.3} parent=87 // pred_region
          %p673 = scmp.lt.s32.totalorder %s37, 1
          %s674 = scalar_select %p673, %s37, 1
          %s675 = smul.addr %s674, 8
          %s676 = scalar_lea.vmem %s0, %s675
        $region92: #{decoder_forward.3} parent=87 // pred_fallthru
          _
        // Predicated region
        $region93: #{decoder_forward.3} parent=87 // pred_check
          %p677 = pneg %p83
        $region94: #{decoder_forward.3} parent=87 // pred_check_branch
          %679 = sbr.rel (%p677) target = $region96
        $region95: #{decoder_forward.3} parent=87 // pred_region
          %p680 = scmp.lt.s32.totalorder %s37, 1
          %s681 = scalar_select %p680, %s37, 1
          %s682 = scalar_lea.vmem %s1, %s681
        $region96: #{decoder_forward.3} parent=87 // pred_fallthru
          _
        // Predicated region
        $region97: #{decoder_forward.3} parent=87 // pred_check
          %p683 = pneg %p109
        $region98: #{decoder_forward.3} parent=87 // pred_check_branch
          %685 = sbr.rel (%p683) target = $region100
        $region99: #{decoder_forward.3} parent=87 // pred_region
          %p686 = scmp.lt.s32.totalorder %s37, 1
          %s687 = scalar_select %p686, %s37, 1
          %s688 = smul.addr %s687, 8
          %s689 = scalar_lea.vmem %s2, %s688
        $region100: #{decoder_forward.3} parent=87 // pred_fallthru
          _
        // Predicated region
        $region101: #{decoder_forward.3} parent=87 // pred_check
          %p690 = pneg %p135
        $region102: #{decoder_forward.3} parent=87 // pred_check_branch
          %692 = sbr.rel (%p690) target = $region104
        $region103: #{decoder_forward.3} parent=87 // pred_region
          %p693 = scmp.lt.s32.totalorder %s37, 1
          %s694 = scalar_select %p693, %s37, 1
          %s695 = smul.addr %s694, 8
          %s696 = scalar_lea.vmem %s3, %s695
        $region104: #{decoder_forward.3} parent=87 // pred_fallthru
          _
      $region88: #{decoder_forward.3} parent=5 // pred_fallthru
        _
      %p697 = scmp.le.s32.totalorder 1, %s37
      %p698 = scmp.lt.s32.totalorder %s37, 3
      %p699 = pnand %p697, %p698
      %p700 = pneg %p699
      // Predicated region
      $region105: #{decoder_forward.3} parent=5 // pred_check
        _
      $region106: #{decoder_forward.3} parent=5 // pred_check_branch
        %702 = sbr.rel (%p699) target = $region108
      $region107: #{decoder_forward.3} parent=5 // pred_region
        %s703 = ssub.s32 %s37, 1
        %p704 = scmp.lt.s32.totalorder %s42, 1
        %s705 = scalar_select %p704, %s42, 1
        %s706 = smul.addr %s705, 8
        %s707 = scalar_lea.vmem %s0, %s706
        %p708 = pneg %p63
        %p709 = pneg %p60
        %p710 = scmp.lt.s32.totalorder %s42, 1
        %s711 = scalar_select %p710, %s42, 1
        %s712 = scalar_lea.vmem %s1, %s711
        %p713 = pneg %p89
        %p714 = pneg %p86
        %p715 = scmp.lt.s32.totalorder %s42, 1
        %s716 = scalar_select %p715, %s42, 1
        %s717 = smul.addr %s716, 8
        %s718 = scalar_lea.vmem %s2, %s717
        %p719 = pneg %p115
        %p720 = pneg %p112
        %p721 = scmp.lt.s32.totalorder %s42, 1
        %s722 = scalar_select %p721, %s42, 1
        %s723 = smul.addr %s722, 8
        %s724 = scalar_lea.vmem %s3, %s723
        %p725 = pneg %p141
        %p726 = pneg %p138
        %p727 = pneg %p162
        %p728 = pneg %p159
        %p729 = pneg %p183
        %p730 = pneg %p180
        %p731 = pneg %p204
        %p732 = pneg %p201
        %p733 = pneg %p225
        %p734 = pneg %p222
        %p735 = pneg %p246
        %p736 = pneg %p243
        %p737 = pneg %p267
        %p738 = pneg %p264
        %p739 = pneg %p288
        %p740 = pneg %p285
        %p741 = pneg %p309
        %p742 = pneg %p306
        %p743 = pneg %p330
        %p744 = pneg %p327
        %p745 = pneg %p351
        %p746 = pneg %p348
        %p747 = pneg %p372
        %p748 = pneg %p369
        %p749 = pneg %p393
        %p750 = pneg %p390
        %p751 = pneg %p414
        %p752 = pneg %p411
        %p753 = pneg %p435
        %p754 = pneg %p432
        %p755 = pneg %p456
        %p756 = pneg %p453
        %p757 = pneg %p477
        %p758 = pneg %p474
        %p759 = pneg %p498
        %p760 = pneg %p495
        %p761 = pneg %p519
        %p762 = pneg %p516
        %p763 = pneg %p545
        %p764 = pneg %p542
        %p765 = scmp.lt.s32.totalorder %s42, 1
        %s766 = scalar_select %p765, %s42, 1
        %s767 = smul.addr %s766, 8
        %s768 = scalar_lea.vmem %s22, %s767
        %p769 = pneg %p571
        %p770 = pneg %p568
        %s771 = sand.u32 %s558, 1
        %s772 = scalar_lea.sflag [#allocation3], %s771
        %s773 = sand.u32 %s558, 1
        %s774 = smul.addr %s773, 32
        %s775 = scalar_lea.vmem [#allocation2], %s774
        %p776 = pneg %p597
        %p777 = pneg %p594
        %s778 = sand.u32 %s584, 1
        %s779 = scalar_lea.sflag [#allocation5], %s778
        %s780 = sand.u32 %s584, 1
        %s781 = smul.addr %s780, 32
        %s782 = scalar_lea.vmem [#allocation4], %s781
        %p783 = scmp.lt.s32.totalorder %s42, 1
        %s784 = scalar_select %p783, %s42, 1
        %s785 = smul.addr %s784, 8
        %s786 = scalar_lea.vmem %s0, %s785
        %p787 = scmp.lt.s32.totalorder %s42, 1
        %s788 = scalar_select %p787, %s42, 1
        %s789 = scalar_lea.vmem %s1, %s788
        %p790 = scmp.lt.s32.totalorder %s42, 1
        %s791 = scalar_select %p790, %s42, 1
        %s792 = smul.addr %s791, 8
        %s793 = scalar_lea.vmem %s2, %s792
        %p794 = scmp.lt.s32.totalorder %s42, 1
        %s795 = scalar_select %p794, %s42, 1
        %s796 = smul.addr %s795, 8
        %s797 = scalar_lea.vmem %s3, %s796
        %p798 = scmp.lt.s32.totalorder %s42, 1
        %s799 = scalar_select %p798, %s42, 1
        %s800 = smul.addr %s799, 8
        %s801 = scalar_lea.vmem %s22, %s800
        %v802 = vld [vmem:[%s793] sm:$0xff]
        %v803 = vld [vmem:[%s797] sm:$0xff]
        %v804 = vld [vmem:[%s786] sm:$0xff]
        %v805 = vld [vmem:[%s789] sm:$0x1]
        %v806 = vld [vmem:[%s4] sm:$0xff]
        %v807 = vld [vmem:[%s4 + $0x8] sm:$0xff]
        %v808 = vld [vmem:[%s4 + $0x10] sm:$0xff]
        %v809 = vld [vmem:[%s4 + $0x18] sm:$0xff]
        %v810 = vld [vmem:[%s5] sm:$0x1]
        %v811 = vld [vmem:[%s6] sm:$0xff]
        %v812 = vld [vmem:[%s6 + $0x8] sm:$0xff]
        %v813 = vld [vmem:[%s6 + $0x10] sm:$0xff]
        %v814 = vld [vmem:[%s6 + $0x18] sm:$0xff]
        %v815 = vld [vmem:[%s7] sm:$0x1]
        %v817 = vperm.slane %v810, 0
        %vm819 = vcmask 261120
        %v821 = vsel %vm819, %v802, 0
        %823 = vmatpush.msra.mxu0 0.0
        %824 = vmatpush.msra.mxu0 0.0
        %825 = vmatpush.msra.mxu0 0.0
        %826 = vmatpush.msra.mxu0 0.0
        %827 = vmatpush.msra.mxu0 0.0
        %828 = vmatpush.msra.mxu0 0.0
        %829 = vmatpush.msra.mxu0 0.0
        %830 = vmatpush.msra.mxu0 0.0
        %831 = vmatpush.msra.mxu0 0.0
        %832 = vmatpush.msra.mxu0 0.0
        %833 = vmatpush.msra.mxu0 0.0
        %834 = vmatpush.msra.mxu0 0.0
        %835 = vmatpush.msra.mxu0 %v809
        %836 = vmatpush.msra.mxu0 %v808
        %837 = vmatpush.msra.mxu0 %v807
        %838 = vmatpush.msra.mxu0 %v806
        %839 = vmatmul.f32.gmra.mxu0 %v821
        %v840 = vpop.f32.mrf.mxu0
        %v841 = vadd.f32 %v817, %v840
        %842 = vdwg.mxu0
        %844 = vrot.lane.b32.xlu0 %v841, 96
        %v845 = vpop.permute.xlu0 %844
        %vm846 = vcmask 64512
        %v847 = vsel %vm846, %v841, 0
        %v849 = vsel %vm846, %v845, 0
        %851 = vmatpush.xpose.msra.mxu0 0.0
        %852 = vmatpush.xpose.msra.mxu0 0.0
        %853 = vmatpush.xpose.msra.mxu0 0.0
        %854 = vmatpush.xpose.msra.mxu0 0.0
        %855 = vmatpush.xpose.msra.mxu0 0.0
        %856 = vmatpush.xpose.msra.mxu0 0.0
        %857 = vmatpush.xpose.msra.mxu0 0.0
        %858 = vmatpush.xpose.msra.mxu0 0.0
        %859 = vmatpush.xpose.msra.mxu0 0.0
        %860 = vmatpush.xpose.msra.mxu0 0.0
        %861 = vmatpush.xpose.msra.mxu0 0.0
        %862 = vmatpush.xpose.msra.mxu0 0.0
        %863 = vmatpush.xpose.msra.mxu0 0.0
        %864 = vmatpush.xpose.msra.mxu0 0.0
        %865 = vmatpush.xpose.msra.mxu0 0.0
        %866 = vmatpush.xpose.msra.mxu0 %v849
        %867 = vmatmul.f32.gmra.mxu0 %v847
        %v868 = vpop.f32.mrf.mxu0
        %v869 = vadd.f32 0.0, %v868
        %870 = vdwg.mxu0
        %v871 = vmul.f32 %v869, 0.35355338
        %vm872 = vcmp.eq.s32.totalorder %v804, 0
        %v873 = vsel %vm872, -1e+10, %v871
        %v874 = vsel %vm846, %v873, -inf
        %875 = vmax.xlane.f32.xlu0 %v874
        %v876 = vpop.xlane.xlu0 %875
        %v877 = vsub.f32 %v873, %v876
        %v878 = vmul.f32 %v877, 1.442695
        %v879 = vpow.pop %v878
        %v880 = vsel %vm846, %v879, 0.0
        %881 = vadd.xlane.f32.xlu0 %v880
        %v882 = vpop.xlane.xlu0 %881
        %v883 = vrcp.pop %v882
        %v884 = vmul.f32 %v882, %v883
        %v885 = vsub.f32 1.0, %v884
        %v886 = vmul.f32 %v883, %v885
        %v887 = vadd.f32 %v883, %v886
        %vm888 = vweird.f32 %v882
        %vm889 = vweird.f32 %v883
        %vm890 = vmor %vm888, %vm889
        %v891 = vsel %vm890, %v883, %v887
        %v892 = vand.u32 2147483647, %v882
        %vm893 = vcmp.eq.f32.partialorder %v892, 8.507059e+37
        %v894 = vand.u32 %v882, 2147483648
        %v895 = vor.u32 1.1754944e-38, %v894
        %v896 = vsel %vm893, %v895, %v891
        %v897 = vmul.f32 %v879, %v896
        %898 = vst.msk [vmem:[%s775] sm:$0xff] %vm846, %v897
        %899 = vrot.lane.b32.xlu0 %v841, 64
        %v900 = vpop.permute.xlu0 %899
        %v903 = vsel %vm846, %v897, 0
        %905 = vmatpush.msra.mxu0 0.0
        %906 = vmatpush.msra.mxu0 0.0
        %907 = vmatpush.msra.mxu0 0.0
        %908 = vmatpush.msra.mxu0 0.0
        %909 = vmatpush.msra.mxu0 0.0
        %910 = vmatpush.msra.mxu0 0.0
        %911 = vmatpush.msra.mxu0 0.0
        %912 = vmatpush.msra.mxu0 0.0
        %913 = vmatpush.msra.mxu0 0.0
        %914 = vmatpush.msra.mxu0 0.0
        %915 = vmatpush.msra.mxu0 0.0
        %916 = vmatpush.msra.mxu0 0.0
        %917 = vmatpush.msra.mxu0 0.0
        %918 = vmatpush.msra.mxu0 0.0
        %919 = vmatpush.msra.mxu0 0.0
        %920 = vmatpush.msra.mxu0 %v900
        %921 = vmatmul.f32.gmra.mxu0 %v903
        %v922 = vpop.f32.mrf.mxu0
        %v923 = vadd.f32 0.0, %v922
        %924 = vdwg.mxu0
        %925 = vrot.lane.b32.xlu0 %v841, 120
        %v926 = vpop.permute.xlu0 %925
        %927 = vrot.lane.b32.xlu0 %v841, 88
        %v928 = vpop.permute.xlu0 %927
        %v929 = vsel %vm846, %v926, 0
        %v931 = vsel %vm846, %v928, 0
        %933 = vmatpush.xpose.msra.mxu0 0.0
        %934 = vmatpush.xpose.msra.mxu0 0.0
        %935 = vmatpush.xpose.msra.mxu0 0.0
        %936 = vmatpush.xpose.msra.mxu0 0.0
        %937 = vmatpush.xpose.msra.mxu0 0.0
        %938 = vmatpush.xpose.msra.mxu0 0.0
        %939 = vmatpush.xpose.msra.mxu0 0.0
        %940 = vmatpush.xpose.msra.mxu0 0.0
        %941 = vmatpush.xpose.msra.mxu0 0.0
        %942 = vmatpush.xpose.msra.mxu0 0.0
        %943 = vmatpush.xpose.msra.mxu0 0.0
        %944 = vmatpush.xpose.msra.mxu0 0.0
        %945 = vmatpush.xpose.msra.mxu0 0.0
        %946 = vmatpush.xpose.msra.mxu0 0.0
        %947 = vmatpush.xpose.msra.mxu0 0.0
        %948 = vmatpush.xpose.msra.mxu0 %v931
        %949 = vmatmul.f32.gmra.mxu0 %v929
        %v950 = vpop.f32.mrf.mxu0
        %v951 = vadd.f32 0.0, %v950
        %952 = vdwg.mxu0
        %v953 = vmul.f32 %v951, 0.35355338
        %v954 = vsel %vm872, -1e+10, %v953
        %v955 = vsel %vm846, %v954, -inf
        %956 = vmax.xlane.f32.xlu0 %v955
        %v957 = vpop.xlane.xlu0 %956
        %v958 = vsub.f32 %v954, %v957
        %v959 = vmul.f32 %v958, 1.442695
        %v960 = vpow.pop %v959
        %v961 = vsel %vm846, %v960, 0.0
        %962 = vadd.xlane.f32.xlu0 %v961
        %v963 = vpop.xlane.xlu0 %962
        %v964 = vrcp.pop %v963
        %v965 = vmul.f32 %v963, %v964
        %v966 = vsub.f32 1.0, %v965
        %v967 = vmul.f32 %v964, %v966
        %v968 = vadd.f32 %v964, %v967
        %vm969 = vweird.f32 %v963
        %vm970 = vweird.f32 %v964
        %vm971 = vmor %vm969, %vm970
        %v972 = vsel %vm971, %v964, %v968
        %v973 = vand.u32 2147483647, %v963
        %vm974 = vcmp.eq.f32.partialorder %v973, 8.507059e+37
        %v975 = vand.u32 %v963, 2147483648
        %v976 = vor.u32 1.1754944e-38, %v975
        %v977 = vsel %vm974, %v976, %v972
        %v978 = vmul.f32 %v960, %v977
        %s979 = scalar_lea.vmem %s775, 8 [#allocation2]
        %980 = vst.msk [vmem:[%s979] sm:$0xff] %vm846, %v978
        %981 = vrot.lane.b32.xlu0 %v841, 56
        %v982 = vpop.permute.xlu0 %981
        %v985 = vsel %vm846, %v978, 0
        %987 = vmatpush.msra.mxu0 0.0
        %988 = vmatpush.msra.mxu0 0.0
        %989 = vmatpush.msra.mxu0 0.0
        %990 = vmatpush.msra.mxu0 0.0
        %991 = vmatpush.msra.mxu0 0.0
        %992 = vmatpush.msra.mxu0 0.0
        %993 = vmatpush.msra.mxu0 0.0
        %994 = vmatpush.msra.mxu0 0.0
        %995 = vmatpush.msra.mxu0 0.0
        %996 = vmatpush.msra.mxu0 0.0
        %997 = vmatpush.msra.mxu0 0.0
        %998 = vmatpush.msra.mxu0 0.0
        %999 = vmatpush.msra.mxu0 0.0
        %1000 = vmatpush.msra.mxu0 0.0
        %1001 = vmatpush.msra.mxu0 0.0
        %1002 = vmatpush.msra.mxu0 %v982
        %1003 = vmatmul.f32.gmra.mxu0 %v985
        %v1004 = vpop.f32.mrf.mxu0
        %v1005 = vadd.f32 0.0, %v1004
        %1006 = vdwg.mxu0
        %1007 = vrot.lane.b32.xlu0 %v841, 112
        %v1008 = vpop.permute.xlu0 %1007
        %1009 = vrot.lane.b32.xlu0 %v841, 80
        %v1010 = vpop.permute.xlu0 %1009
        %v1011 = vsel %vm846, %v1008, 0
        %v1013 = vsel %vm846, %v1010, 0
        %1015 = vmatpush.xpose.msra.mxu0 0.0
        %1016 = vmatpush.xpose.msra.mxu0 0.0
        %1017 = vmatpush.xpose.msra.mxu0 0.0
        %1018 = vmatpush.xpose.msra.mxu0 0.0
        %1019 = vmatpush.xpose.msra.mxu0 0.0
        %1020 = vmatpush.xpose.msra.mxu0 0.0
        %1021 = vmatpush.xpose.msra.mxu0 0.0
        %1022 = vmatpush.xpose.msra.mxu0 0.0
        %1023 = vmatpush.xpose.msra.mxu0 0.0
        %1024 = vmatpush.xpose.msra.mxu0 0.0
        %1025 = vmatpush.xpose.msra.mxu0 0.0
        %1026 = vmatpush.xpose.msra.mxu0 0.0
        %1027 = vmatpush.xpose.msra.mxu0 0.0
        %1028 = vmatpush.xpose.msra.mxu0 0.0
        %1029 = vmatpush.xpose.msra.mxu0 0.0
        %1030 = vmatpush.xpose.msra.mxu0 %v1013
        %1031 = vmatmul.f32.gmra.mxu0 %v1011
        %v1032 = vpop.f32.mrf.mxu0
        %v1033 = vadd.f32 0.0, %v1032
        %1034 = vdwg.mxu0
        %v1035 = vmul.f32 %v1033, 0.35355338
        %v1036 = vsel %vm872, -1e+10, %v1035
        %v1037 = vsel %vm846, %v1036, -inf
        %1038 = vmax.xlane.f32.xlu0 %v1037
        %v1039 = vpop.xlane.xlu0 %1038
        %v1040 = vsub.f32 %v1036, %v1039
        %v1041 = vmul.f32 %v1040, 1.442695
        %v1042 = vpow.pop %v1041
        %v1043 = vsel %vm846, %v1042, 0.0
        %1044 = vadd.xlane.f32.xlu0 %v1043
        %v1045 = vpop.xlane.xlu0 %1044
        %v1046 = vrcp.pop %v1045
        %v1047 = vmul.f32 %v1045, %v1046
        %v1048 = vsub.f32 1.0, %v1047
        %v1049 = vmul.f32 %v1046, %v1048
        %v1050 = vadd.f32 %v1046, %v1049
        %vm1051 = vweird.f32 %v1045
        %vm1052 = vweird.f32 %v1046
        %vm1053 = vmor %vm1051, %vm1052
        %v1054 = vsel %vm1053, %v1046, %v1050
        %v1055 = vand.u32 2147483647, %v1045
        %vm1056 = vcmp.eq.f32.partialorder %v1055, 8.507059e+37
        %v1057 = vand.u32 %v1045, 2147483648
        %v1058 = vor.u32 1.1754944e-38, %v1057
        %v1059 = vsel %vm1056, %v1058, %v1054
        %v1060 = vmul.f32 %v1042, %v1059
        %s1061 = scalar_lea.vmem %s775, 16 [#allocation2]
        %1062 = vst.msk [vmem:[%s1061] sm:$0xff] %vm846, %v1060
        %1063 = vrot.lane.b32.xlu0 %v841, 48
        %v1064 = vpop.permute.xlu0 %1063
        %v1067 = vsel %vm846, %v1060, 0
        %1069 = vmatpush.msra.mxu0 0.0
        %1070 = vmatpush.msra.mxu0 0.0
        %1071 = vmatpush.msra.mxu0 0.0
        %1072 = vmatpush.msra.mxu0 0.0
        %1073 = vmatpush.msra.mxu0 0.0
        %1074 = vmatpush.msra.mxu0 0.0
        %1075 = vmatpush.msra.mxu0 0.0
        %1076 = vmatpush.msra.mxu0 0.0
        %1077 = vmatpush.msra.mxu0 0.0
        %1078 = vmatpush.msra.mxu0 0.0
        %1079 = vmatpush.msra.mxu0 0.0
        %1080 = vmatpush.msra.mxu0 0.0
        %1081 = vmatpush.msra.mxu0 0.0
        %1082 = vmatpush.msra.mxu0 0.0
        %1083 = vmatpush.msra.mxu0 0.0
        %1084 = vmatpush.msra.mxu0 %v1064
        %1085 = vmatmul.f32.gmra.mxu0 %v1067
        %v1086 = vpop.f32.mrf.mxu0
        %v1087 = vadd.f32 0.0, %v1086
        %1088 = vdwg.mxu0
        %1089 = vrot.lane.b32.xlu0 %v841, 104
        %v1090 = vpop.permute.xlu0 %1089
        %1091 = vrot.lane.b32.xlu0 %v841, 72
        %v1092 = vpop.permute.xlu0 %1091
        %v1093 = vsel %vm846, %v1090, 0
        %v1095 = vsel %vm846, %v1092, 0
        %1097 = vmatpush.xpose.msra.mxu0 0.0
        %1098 = vmatpush.xpose.msra.mxu0 0.0
        %1099 = vmatpush.xpose.msra.mxu0 0.0
        %1100 = vmatpush.xpose.msra.mxu0 0.0
        %1101 = vmatpush.xpose.msra.mxu0 0.0
        %1102 = vmatpush.xpose.msra.mxu0 0.0
        %1103 = vmatpush.xpose.msra.mxu0 0.0
        %1104 = vmatpush.xpose.msra.mxu0 0.0
        %1105 = vmatpush.xpose.msra.mxu0 0.0
        %1106 = vmatpush.xpose.msra.mxu0 0.0
        %1107 = vmatpush.xpose.msra.mxu0 0.0
        %1108 = vmatpush.xpose.msra.mxu0 0.0
        %1109 = vmatpush.xpose.msra.mxu0 0.0
        %1110 = vmatpush.xpose.msra.mxu0 0.0
        %1111 = vmatpush.xpose.msra.mxu0 0.0
        %1112 = vmatpush.xpose.msra.mxu0 %v1095
        %1113 = vmatmul.f32.gmra.mxu0 %v1093
        %v1114 = vpop.f32.mrf.mxu0
        %v1115 = vadd.f32 0.0, %v1114
        %1116 = vdwg.mxu0
        %v1117 = vmul.f32 %v1115, 0.35355338
        %v1118 = vsel %vm872, -1e+10, %v1117
        %v1119 = vsel %vm846, %v1118, -inf
        %1120 = vmax.xlane.f32.xlu0 %v1119
        %v1121 = vpop.xlane.xlu0 %1120
        %v1122 = vsub.f32 %v1118, %v1121
        %v1123 = vmul.f32 %v1122, 1.442695
        %v1124 = vpow.pop %v1123
        %v1125 = vsel %vm846, %v1124, 0.0
        %1126 = vadd.xlane.f32.xlu0 %v1125
        %v1127 = vpop.xlane.xlu0 %1126
        %v1128 = vrcp.pop %v1127
        %v1129 = vmul.f32 %v1127, %v1128
        %v1130 = vsub.f32 1.0, %v1129
        %v1131 = vmul.f32 %v1128, %v1130
        %v1132 = vadd.f32 %v1128, %v1131
        %vm1133 = vweird.f32 %v1127
        %vm1134 = vweird.f32 %v1128
        %vm1135 = vmor %vm1133, %vm1134
        %v1136 = vsel %vm1135, %v1128, %v1132
        %v1137 = vand.u32 2147483647, %v1127
        %vm1138 = vcmp.eq.f32.partialorder %v1137, 8.507059e+37
        %v1139 = vand.u32 %v1127, 2147483648
        %v1140 = vor.u32 1.1754944e-38, %v1139
        %v1141 = vsel %vm1138, %v1140, %v1136
        %v1142 = vmul.f32 %v1124, %v1141
        %s1143 = scalar_lea.vmem %s775, 24 [#allocation2]
        %1144 = vst.msk [vmem:[%s1143] sm:$0xff] %vm846, %v1142
        %1145 = vrot.lane.b32.xlu0 %v841, 40
        %v1146 = vpop.permute.xlu0 %1145
        %v1149 = vsel %vm846, %v1142, 0
        %1151 = vmatpush.msra.mxu0 0.0
        %1152 = vmatpush.msra.mxu0 0.0
        %1153 = vmatpush.msra.mxu0 0.0
        %1154 = vmatpush.msra.mxu0 0.0
        %1155 = vmatpush.msra.mxu0 0.0
        %1156 = vmatpush.msra.mxu0 0.0
        %1157 = vmatpush.msra.mxu0 0.0
        %1158 = vmatpush.msra.mxu0 0.0
        %1159 = vmatpush.msra.mxu0 0.0
        %1160 = vmatpush.msra.mxu0 0.0
        %1161 = vmatpush.msra.mxu0 0.0
        %1162 = vmatpush.msra.mxu0 0.0
        %1163 = vmatpush.msra.mxu0 0.0
        %1164 = vmatpush.msra.mxu0 0.0
        %1165 = vmatpush.msra.mxu0 0.0
        %1166 = vmatpush.msra.mxu0 %v1146
        %1167 = vmatmul.f32.gmra.mxu0 %v1149
        %v1168 = vpop.f32.mrf.mxu0
        %v1169 = vadd.f32 0.0, %v1168
        %1170 = vdwg.mxu0
        %1172 = vrot.lane.b32.xlu0 %v1005, 8
        %v1173 = vpop.permute.xlu0 %1172
        %1176 = vrot.lane.b32.xlu0 %v1087, 16
        %v1177 = vpop.permute.xlu0 %1176
        %1180 = vrot.lane.b32.xlu0 %v1169, 24
        %v1181 = vpop.permute.xlu0 %1180
        %v1183 = vsel %vm846, %v923, %v1173
        %vm1184 = vcmask 130048
        %v1185 = vsel %vm1184, %v1183, %v1177
        %vm1186 = vcmask 195584
        %v1187 = vsel %vm1186, %v1185, %v1181
        %v1189 = vperm.slane %v815, 0
        %v1192 = vsel %vm819, %v1187, 0
        %1194 = vmatpush.msra.mxu0 0.0
        %1195 = vmatpush.msra.mxu0 0.0
        %1196 = vmatpush.msra.mxu0 0.0
        %1197 = vmatpush.msra.mxu0 0.0
        %1198 = vmatpush.msra.mxu0 0.0
        %1199 = vmatpush.msra.mxu0 0.0
        %1200 = vmatpush.msra.mxu0 0.0
        %1201 = vmatpush.msra.mxu0 0.0
        %1202 = vmatpush.msra.mxu0 0.0
        %1203 = vmatpush.msra.mxu0 0.0
        %1204 = vmatpush.msra.mxu0 0.0
        %1205 = vmatpush.msra.mxu0 0.0
        %1206 = vmatpush.msra.mxu0 %v814
        %1207 = vmatpush.msra.mxu0 %v813
        %1208 = vmatpush.msra.mxu0 %v812
        %1209 = vmatpush.msra.mxu0 %v811
        %1210 = vmatmul.f32.gmra.mxu0 %v1192
        %v1211 = vpop.f32.mrf.mxu0
        %v1212 = vadd.f32 %v1189, %v1211
        %1213 = vdwg.mxu0
        %v1214 = vld [vmem:[%s8] sm:$0x1]
        %v1215 = vld [vmem:[%s9] sm:$0x1]
        %v1216 = vadd.f32 %v802, %v1212
        %v1217 = vsel %vm819, %v1216, 0.0
        %1218 = vadd.xlane.f32.xlu0 %v1217
        %v1219 = vpop.xlane.xlu0 %1218
        %v1220 = vrcp.pop 32.0
        %v1221 = vmul.f32 32.0, %v1220
        %v1222 = vsub.f32 1.0, %v1221
        %v1223 = vmul.f32 %v1220, %v1222
        %v1224 = vadd.f32 %v1220, %v1223
        %vm1225 = vweird.f32 %v1220
        %v1226 = vsel %vm1225, %v1220, %v1224
        %v1227 = vmul.f32 %v1219, %v1226
        %v1228 = vsub.f32 %v1216, %v1227
        %v1229 = vmul.f32 %v1228, %v1228
        %v1230 = vsel %vm819, %v1229, 0.0
        %1231 = vadd.xlane.f32.xlu0 %v1230
        %v1232 = vpop.xlane.xlu0 %1231
        %v1233 = vmul.f32 %v1232, %v1226
        %v1234 = vadd.f32 %v1233, 1e-05
        %v1235 = vrsqrt.pop %v1234
        %v1236 = vmul.f32 %v1235, %v1234
        %v1237 = vmul.f32 %v1236, %v1235
        %v1238 = vmul.f32 0.5, %v1237
        %v1239 = vsub.f32 1.5, %v1238
        %v1240 = vmul.f32 %v1235, %v1239
        %vm1241 = vweird.f32 %v1234
        %vm1242 = vweird.f32 %v1235
        %vm1243 = vmor %vm1241, %vm1242
        %v1244 = vsel %vm1243, %v1235, %v1240
        %v1245 = vmul.f32 %v1228, %v1244
        %v1247 = vperm.slane %v1214, 0
        %v1249 = vmul.f32 %v1245, %v1247
        %v1251 = vperm.slane %v1215, 0
        %v1253 = vadd.f32 %v1249, %v1251
        %v1254 = vld [vmem:[%s10] sm:$0xff]
        %v1255 = vld [vmem:[%s10 + $0x8] sm:$0xff]
        %v1256 = vld [vmem:[%s10 + $0x10] sm:$0xff]
        %v1257 = vld [vmem:[%s10 + $0x18] sm:$0xff]
        %v1258 = vld [vmem:[%s11] sm:$0x1]
        %v1259 = vld [vmem:[%s12] sm:$0xff]
        %v1260 = vld [vmem:[%s12 + $0x8] sm:$0xff]
        %v1261 = vld [vmem:[%s12 + $0x10] sm:$0xff]
        %v1262 = vld [vmem:[%s12 + $0x18] sm:$0xff]
        %v1263 = vld [vmem:[%s13] sm:$0x1]
        %v1265 = vperm.slane %v1258, 0
        %v1268 = vsel %vm819, %v1253, 0
        %1270 = vmatpush.msra.mxu0 0.0
        %1271 = vmatpush.msra.mxu0 0.0
        %1272 = vmatpush.msra.mxu0 0.0
        %1273 = vmatpush.msra.mxu0 0.0
        %1274 = vmatpush.msra.mxu0 0.0
        %1275 = vmatpush.msra.mxu0 0.0
        %1276 = vmatpush.msra.mxu0 0.0
        %1277 = vmatpush.msra.mxu0 0.0
        %1278 = vmatpush.msra.mxu0 0.0
        %1279 = vmatpush.msra.mxu0 0.0
        %1280 = vmatpush.msra.mxu0 0.0
        %1281 = vmatpush.msra.mxu0 0.0
        %1282 = vmatpush.msra.mxu0 %v1257
        %1283 = vmatpush.msra.mxu0 %v1256
        %1284 = vmatpush.msra.mxu0 %v1255
        %1285 = vmatpush.msra.mxu0 %v1254
        %1286 = vmatmul.f32.gmra.mxu0 %v1268
        %v1287 = vpop.f32.mrf.mxu0
        %v1288 = vadd.f32 %v1265, %v1287
        %1289 = vdwg.mxu0
        %1294 = vrot.lane.b32.xlu0 %v1254, 96
        %v1295 = vpop.permute.xlu0 %1294
        %1296 = vrot.lane.b32.xlu0 %v1255, 96
        %v1297 = vpop.permute.xlu0 %1296
        %1298 = vrot.lane.b32.xlu0 %v1256, 96
        %v1299 = vpop.permute.xlu0 %1298
        %1300 = vrot.lane.b32.xlu0 %v1257, 96
        %v1301 = vpop.permute.xlu0 %1300
        %1306 = vrot.lane.b32.xlu0 %v1265, 96
        %v1307 = vpop.permute.xlu0 %1306
        %v1310 = vsel %vm819, %v803, 0
        %1312 = vmatpush.msra.mxu0 0.0
        %1313 = vmatpush.msra.mxu0 0.0
        %1314 = vmatpush.msra.mxu0 0.0
        %1315 = vmatpush.msra.mxu0 0.0
        %1316 = vmatpush.msra.mxu0 0.0
        %1317 = vmatpush.msra.mxu0 0.0
        %1318 = vmatpush.msra.mxu0 0.0
        %1319 = vmatpush.msra.mxu0 0.0
        %1320 = vmatpush.msra.mxu0 0.0
        %1321 = vmatpush.msra.mxu0 0.0
        %1322 = vmatpush.msra.mxu0 0.0
        %1323 = vmatpush.msra.mxu0 0.0
        %1324 = vmatpush.msra.mxu0 %v1301
        %1325 = vmatpush.msra.mxu0 %v1299
        %1326 = vmatpush.msra.mxu0 %v1297
        %1327 = vmatpush.msra.mxu0 %v1295
        %1328 = vmatmul.f32.gmra.mxu0 %v1310
        %v1329 = vpop.f32.mrf.mxu0
        %v1330 = vadd.f32 %v1307, %v1329
        %1331 = vdwg.mxu0
        %v1333 = vsel %vm846, %v1288, 0
        %v1336 = vsel %vm846, %v1330, 0
        %1338 = vmatpush.xpose.msra.mxu0 0.0
        %1339 = vmatpush.xpose.msra.mxu0 0.0
        %1340 = vmatpush.xpose.msra.mxu0 0.0
        %1341 = vmatpush.xpose.msra.mxu0 0.0
        %1342 = vmatpush.xpose.msra.mxu0 0.0
        %1343 = vmatpush.xpose.msra.mxu0 0.0
        %1344 = vmatpush.xpose.msra.mxu0 0.0
        %1345 = vmatpush.xpose.msra.mxu0 0.0
        %1346 = vmatpush.xpose.msra.mxu0 0.0
        %1347 = vmatpush.xpose.msra.mxu0 0.0
        %1348 = vmatpush.xpose.msra.mxu0 0.0
        %1349 = vmatpush.xpose.msra.mxu0 0.0
        %1350 = vmatpush.xpose.msra.mxu0 0.0
        %1351 = vmatpush.xpose.msra.mxu0 0.0
        %1352 = vmatpush.xpose.msra.mxu0 0.0
        %1353 = vmatpush.xpose.msra.mxu0 %v1336
        %1354 = vmatmul.f32.gmra.mxu0 %v1333
        %v1355 = vpop.f32.mrf.mxu0
        %v1356 = vadd.f32 0.0, %v1355
        %1357 = vdwg.mxu0
        %v1358 = vmul.f32 %v1356, 0.35355338
        %vm1359 = vcmp.eq.s32.totalorder %v805, 0
        %v1360 = vsel %vm1359, 1, 0
        %v1361 = vperm.slane %v1360, 0
        %vm1362 = vcmp.eq.s32.totalorder %v1361, 1
        %v1363 = vsel %vm1362, -1e+10, %v1358
        %v1364 = vsel %vm846, %v1363, -inf
        %1365 = vmax.xlane.f32.xlu0 %v1364
        %v1366 = vpop.xlane.xlu0 %1365
        %v1367 = vsub.f32 %v1363, %v1366
        %v1368 = vmul.f32 %v1367, 1.442695
        %v1369 = vpow.pop %v1368
        %v1370 = vsel %vm846, %v1369, 0.0
        %1371 = vadd.xlane.f32.xlu0 %v1370
        %v1372 = vpop.xlane.xlu0 %1371
        %v1373 = vrcp.pop %v1372
        %v1374 = vmul.f32 %v1372, %v1373
        %v1375 = vsub.f32 1.0, %v1374
        %v1376 = vmul.f32 %v1373, %v1375
        %v1377 = vadd.f32 %v1373, %v1376
        %vm1378 = vweird.f32 %v1372
        %vm1379 = vweird.f32 %v1373
        %vm1380 = vmor %vm1378, %vm1379
        %v1381 = vsel %vm1380, %v1373, %v1377
        %v1382 = vand.u32 2147483647, %v1372
        %vm1383 = vcmp.eq.f32.partialorder %v1382, 8.507059e+37
        %v1384 = vand.u32 %v1372, 2147483648
        %v1385 = vor.u32 1.1754944e-38, %v1384
        %v1386 = vsel %vm1383, %v1385, %v1381
        %v1387 = vmul.f32 %v1369, %v1386
        %1388 = vst.msk [vmem:[%s782] sm:$0xff] %vm846, %v1387
        %1389 = vrot.lane.b32.xlu0 %v1330, 96
        %v1390 = vpop.permute.xlu0 %1389
        %v1393 = vsel %vm846, %v1387, 0
        %1395 = vmatpush.msra.mxu0 0.0
        %1396 = vmatpush.msra.mxu0 0.0
        %1397 = vmatpush.msra.mxu0 0.0
        %1398 = vmatpush.msra.mxu0 0.0
        %1399 = vmatpush.msra.mxu0 0.0
        %1400 = vmatpush.msra.mxu0 0.0
        %1401 = vmatpush.msra.mxu0 0.0
        %1402 = vmatpush.msra.mxu0 0.0
        %1403 = vmatpush.msra.mxu0 0.0
        %1404 = vmatpush.msra.mxu0 0.0
        %1405 = vmatpush.msra.mxu0 0.0
        %1406 = vmatpush.msra.mxu0 0.0
        %1407 = vmatpush.msra.mxu0 0.0
        %1408 = vmatpush.msra.mxu0 0.0
        %1409 = vmatpush.msra.mxu0 0.0
        %1410 = vmatpush.msra.mxu0 %v1390
        %1411 = vmatmul.f32.gmra.mxu0 %v1393
        %v1412 = vpop.f32.mrf.mxu0
        %v1413 = vadd.f32 0.0, %v1412
        %1414 = vdwg.mxu0
        %1415 = vrot.lane.b32.xlu0 %v1288, 120
        %v1416 = vpop.permute.xlu0 %1415
        %1417 = vrot.lane.b32.xlu0 %v1330, 120
        %v1418 = vpop.permute.xlu0 %1417
        %v1419 = vsel %vm846, %v1416, 0
        %v1421 = vsel %vm846, %v1418, 0
        %1423 = vmatpush.xpose.msra.mxu0 0.0
        %1424 = vmatpush.xpose.msra.mxu0 0.0
        %1425 = vmatpush.xpose.msra.mxu0 0.0
        %1426 = vmatpush.xpose.msra.mxu0 0.0
        %1427 = vmatpush.xpose.msra.mxu0 0.0
        %1428 = vmatpush.xpose.msra.mxu0 0.0
        %1429 = vmatpush.xpose.msra.mxu0 0.0
        %1430 = vmatpush.xpose.msra.mxu0 0.0
        %1431 = vmatpush.xpose.msra.mxu0 0.0
        %1432 = vmatpush.xpose.msra.mxu0 0.0
        %1433 = vmatpush.xpose.msra.mxu0 0.0
        %1434 = vmatpush.xpose.msra.mxu0 0.0
        %1435 = vmatpush.xpose.msra.mxu0 0.0
        %1436 = vmatpush.xpose.msra.mxu0 0.0
        %1437 = vmatpush.xpose.msra.mxu0 0.0
        %1438 = vmatpush.xpose.msra.mxu0 %v1421
        %1439 = vmatmul.f32.gmra.mxu0 %v1419
        %v1440 = vpop.f32.mrf.mxu0
        %v1441 = vadd.f32 0.0, %v1440
        %1442 = vdwg.mxu0
        %v1443 = vmul.f32 %v1441, 0.35355338
        %v1444 = vsel %vm1362, -1e+10, %v1443
        %v1445 = vsel %vm846, %v1444, -inf
        %1446 = vmax.xlane.f32.xlu0 %v1445
        %v1447 = vpop.xlane.xlu0 %1446
        %v1448 = vsub.f32 %v1444, %v1447
        %v1449 = vmul.f32 %v1448, 1.442695
        %v1450 = vpow.pop %v1449
        %v1451 = vsel %vm846, %v1450, 0.0
        %1452 = vadd.xlane.f32.xlu0 %v1451
        %v1453 = vpop.xlane.xlu0 %1452
        %v1454 = vrcp.pop %v1453
        %v1455 = vmul.f32 %v1453, %v1454
        %v1456 = vsub.f32 1.0, %v1455
        %v1457 = vmul.f32 %v1454, %v1456
        %v1458 = vadd.f32 %v1454, %v1457
        %vm1459 = vweird.f32 %v1453
        %vm1460 = vweird.f32 %v1454
        %vm1461 = vmor %vm1459, %vm1460
        %v1462 = vsel %vm1461, %v1454, %v1458
        %v1463 = vand.u32 2147483647, %v1453
        %vm1464 = vcmp.eq.f32.partialorder %v1463, 8.507059e+37
        %v1465 = vand.u32 %v1453, 2147483648
        %v1466 = vor.u32 1.1754944e-38, %v1465
        %v1467 = vsel %vm1464, %v1466, %v1462
        %v1468 = vmul.f32 %v1450, %v1467
        %s1469 = scalar_lea.vmem %s782, 8 [#allocation4]
        %1470 = vst.msk [vmem:[%s1469] sm:$0xff] %vm846, %v1468
        %1471 = vrot.lane.b32.xlu0 %v1330, 88
        %v1472 = vpop.permute.xlu0 %1471
        %v1475 = vsel %vm846, %v1468, 0
        %1477 = vmatpush.msra.mxu0 0.0
        %1478 = vmatpush.msra.mxu0 0.0
        %1479 = vmatpush.msra.mxu0 0.0
        %1480 = vmatpush.msra.mxu0 0.0
        %1481 = vmatpush.msra.mxu0 0.0
        %1482 = vmatpush.msra.mxu0 0.0
        %1483 = vmatpush.msra.mxu0 0.0
        %1484 = vmatpush.msra.mxu0 0.0
        %1485 = vmatpush.msra.mxu0 0.0
        %1486 = vmatpush.msra.mxu0 0.0
        %1487 = vmatpush.msra.mxu0 0.0
        %1488 = vmatpush.msra.mxu0 0.0
        %1489 = vmatpush.msra.mxu0 0.0
        %1490 = vmatpush.msra.mxu0 0.0
        %1491 = vmatpush.msra.mxu0 0.0
        %1492 = vmatpush.msra.mxu0 %v1472
        %1493 = vmatmul.f32.gmra.mxu0 %v1475
        %v1494 = vpop.f32.mrf.mxu0
        %v1495 = vadd.f32 0.0, %v1494
        %1496 = vdwg.mxu0
        %1497 = vrot.lane.b32.xlu0 %v1288, 112
        %v1498 = vpop.permute.xlu0 %1497
        %1499 = vrot.lane.b32.xlu0 %v1330, 112
        %v1500 = vpop.permute.xlu0 %1499
        %v1501 = vsel %vm846, %v1498, 0
        %v1503 = vsel %vm846, %v1500, 0
        %1505 = vmatpush.xpose.msra.mxu0 0.0
        %1506 = vmatpush.xpose.msra.mxu0 0.0
        %1507 = vmatpush.xpose.msra.mxu0 0.0
        %1508 = vmatpush.xpose.msra.mxu0 0.0
        %1509 = vmatpush.xpose.msra.mxu0 0.0
        %1510 = vmatpush.xpose.msra.mxu0 0.0
        %1511 = vmatpush.xpose.msra.mxu0 0.0
        %1512 = vmatpush.xpose.msra.mxu0 0.0
        %1513 = vmatpush.xpose.msra.mxu0 0.0
        %1514 = vmatpush.xpose.msra.mxu0 0.0
        %1515 = vmatpush.xpose.msra.mxu0 0.0
        %1516 = vmatpush.xpose.msra.mxu0 0.0
        %1517 = vmatpush.xpose.msra.mxu0 0.0
        %1518 = vmatpush.xpose.msra.mxu0 0.0
        %1519 = vmatpush.xpose.msra.mxu0 0.0
        %1520 = vmatpush.xpose.msra.mxu0 %v1503
        %1521 = vmatmul.f32.gmra.mxu0 %v1501
        %v1522 = vpop.f32.mrf.mxu0
        %v1523 = vadd.f32 0.0, %v1522
        %1524 = vdwg.mxu0
        %v1525 = vmul.f32 %v1523, 0.35355338
        %v1526 = vsel %vm1362, -1e+10, %v1525
        %v1527 = vsel %vm846, %v1526, -inf
        %1528 = vmax.xlane.f32.xlu0 %v1527
        %v1529 = vpop.xlane.xlu0 %1528
        %v1530 = vsub.f32 %v1526, %v1529
        %v1531 = vmul.f32 %v1530, 1.442695
        %v1532 = vpow.pop %v1531
        %v1533 = vsel %vm846, %v1532, 0.0
        %1534 = vadd.xlane.f32.xlu0 %v1533
        %v1535 = vpop.xlane.xlu0 %1534
        %v1536 = vrcp.pop %v1535
        %v1537 = vmul.f32 %v1535, %v1536
        %v1538 = vsub.f32 1.0, %v1537
        %v1539 = vmul.f32 %v1536, %v1538
        %v1540 = vadd.f32 %v1536, %v1539
        %vm1541 = vweird.f32 %v1535
        %vm1542 = vweird.f32 %v1536
        %vm1543 = vmor %vm1541, %vm1542
        %v1544 = vsel %vm1543, %v1536, %v1540
        %v1545 = vand.u32 2147483647, %v1535
        %vm1546 = vcmp.eq.f32.partialorder %v1545, 8.507059e+37
        %v1547 = vand.u32 %v1535, 2147483648
        %v1548 = vor.u32 1.1754944e-38, %v1547
        %v1549 = vsel %vm1546, %v1548, %v1544
        %v1550 = vmul.f32 %v1532, %v1549
        %s1551 = scalar_lea.vmem %s782, 16 [#allocation4]
        %1552 = vst.msk [vmem:[%s1551] sm:$0xff] %vm846, %v1550
        %1553 = vrot.lane.b32.xlu0 %v1330, 80
        %v1554 = vpop.permute.xlu0 %1553
        %v1557 = vsel %vm846, %v1550, 0
        %1559 = vmatpush.msra.mxu0 0.0
        %1560 = vmatpush.msra.mxu0 0.0
        %1561 = vmatpush.msra.mxu0 0.0
        %1562 = vmatpush.msra.mxu0 0.0
        %1563 = vmatpush.msra.mxu0 0.0
        %1564 = vmatpush.msra.mxu0 0.0
        %1565 = vmatpush.msra.mxu0 0.0
        %1566 = vmatpush.msra.mxu0 0.0
        %1567 = vmatpush.msra.mxu0 0.0
        %1568 = vmatpush.msra.mxu0 0.0
        %1569 = vmatpush.msra.mxu0 0.0
        %1570 = vmatpush.msra.mxu0 0.0
        %1571 = vmatpush.msra.mxu0 0.0
        %1572 = vmatpush.msra.mxu0 0.0
        %1573 = vmatpush.msra.mxu0 0.0
        %1574 = vmatpush.msra.mxu0 %v1554
        %1575 = vmatmul.f32.gmra.mxu0 %v1557
        %v1576 = vpop.f32.mrf.mxu0
        %v1577 = vadd.f32 0.0, %v1576
        %1578 = vdwg.mxu0
        %1579 = vrot.lane.b32.xlu0 %v1288, 104
        %v1580 = vpop.permute.xlu0 %1579
        %1581 = vrot.lane.b32.xlu0 %v1330, 104
        %v1582 = vpop.permute.xlu0 %1581
        %v1583 = vsel %vm846, %v1580, 0
        %v1585 = vsel %vm846, %v1582, 0
        %1587 = vmatpush.xpose.msra.mxu0 0.0
        %1588 = vmatpush.xpose.msra.mxu0 0.0
        %1589 = vmatpush.xpose.msra.mxu0 0.0
        %1590 = vmatpush.xpose.msra.mxu0 0.0
        %1591 = vmatpush.xpose.msra.mxu0 0.0
        %1592 = vmatpush.xpose.msra.mxu0 0.0
        %1593 = vmatpush.xpose.msra.mxu0 0.0
        %1594 = vmatpush.xpose.msra.mxu0 0.0
        %1595 = vmatpush.xpose.msra.mxu0 0.0
        %1596 = vmatpush.xpose.msra.mxu0 0.0
        %1597 = vmatpush.xpose.msra.mxu0 0.0
        %1598 = vmatpush.xpose.msra.mxu0 0.0
        %1599 = vmatpush.xpose.msra.mxu0 0.0
        %1600 = vmatpush.xpose.msra.mxu0 0.0
        %1601 = vmatpush.xpose.msra.mxu0 0.0
        %1602 = vmatpush.xpose.msra.mxu0 %v1585
        %1603 = vmatmul.f32.gmra.mxu0 %v1583
        %v1604 = vpop.f32.mrf.mxu0
        %v1605 = vadd.f32 0.0, %v1604
        %1606 = vdwg.mxu0
        %v1607 = vmul.f32 %v1605, 0.35355338
        %v1608 = vsel %vm1362, -1e+10, %v1607
        %v1609 = vsel %vm846, %v1608, -inf
        %1610 = vmax.xlane.f32.xlu0 %v1609
        %v1611 = vpop.xlane.xlu0 %1610
        %v1612 = vsub.f32 %v1608, %v1611
        %v1613 = vmul.f32 %v1612, 1.442695
        %v1614 = vpow.pop %v1613
        %v1615 = vsel %vm846, %v1614, 0.0
        %1616 = vadd.xlane.f32.xlu0 %v1615
        %v1617 = vpop.xlane.xlu0 %1616
        %v1618 = vrcp.pop %v1617
        %v1619 = vmul.f32 %v1617, %v1618
        %v1620 = vsub.f32 1.0, %v1619
        %v1621 = vmul.f32 %v1618, %v1620
        %v1622 = vadd.f32 %v1618, %v1621
        %vm1623 = vweird.f32 %v1617
        %vm1624 = vweird.f32 %v1618
        %vm1625 = vmor %vm1623, %vm1624
        %v1626 = vsel %vm1625, %v1618, %v1622
        %v1627 = vand.u32 2147483647, %v1617
        %vm1628 = vcmp.eq.f32.partialorder %v1627, 8.507059e+37
        %v1629 = vand.u32 %v1617, 2147483648
        %v1630 = vor.u32 1.1754944e-38, %v1629
        %v1631 = vsel %vm1628, %v1630, %v1626
        %v1632 = vmul.f32 %v1614, %v1631
        %s1633 = scalar_lea.vmem %s782, 24 [#allocation4]
        %1634 = vst.msk [vmem:[%s1633] sm:$0xff] %vm846, %v1632
        %1635 = vrot.lane.b32.xlu0 %v1330, 72
        %v1636 = vpop.permute.xlu0 %1635
        %v1639 = vsel %vm846, %v1632, 0
        %1641 = vmatpush.msra.mxu0 0.0
        %1642 = vmatpush.msra.mxu0 0.0
        %1643 = vmatpush.msra.mxu0 0.0
        %1644 = vmatpush.msra.mxu0 0.0
        %1645 = vmatpush.msra.mxu0 0.0
        %1646 = vmatpush.msra.mxu0 0.0
        %1647 = vmatpush.msra.mxu0 0.0
        %1648 = vmatpush.msra.mxu0 0.0
        %1649 = vmatpush.msra.mxu0 0.0
        %1650 = vmatpush.msra.mxu0 0.0
        %1651 = vmatpush.msra.mxu0 0.0
        %1652 = vmatpush.msra.mxu0 0.0
        %1653 = vmatpush.msra.mxu0 0.0
        %1654 = vmatpush.msra.mxu0 0.0
        %1655 = vmatpush.msra.mxu0 0.0
        %1656 = vmatpush.msra.mxu0 %v1636
        %1657 = vmatmul.f32.gmra.mxu0 %v1639
        %v1658 = vpop.f32.mrf.mxu0
        %v1659 = vadd.f32 0.0, %v1658
        %1660 = vdwg.mxu0
        %1662 = vrot.lane.b32.xlu0 %v1495, 8
        %v1663 = vpop.permute.xlu0 %1662
        %1666 = vrot.lane.b32.xlu0 %v1577, 16
        %v1667 = vpop.permute.xlu0 %1666
        %1670 = vrot.lane.b32.xlu0 %v1659, 24
        %v1671 = vpop.permute.xlu0 %1670
        %v1673 = vsel %vm846, %v1413, %v1663
        %v1674 = vsel %vm1184, %v1673, %v1667
        %v1675 = vsel %vm1186, %v1674, %v1671
        %v1677 = vperm.slane %v1263, 0
        %v1680 = vsel %vm819, %v1675, 0
        %1682 = vmatpush.msra.mxu0 0.0
        %1683 = vmatpush.msra.mxu0 0.0
        %1684 = vmatpush.msra.mxu0 0.0
        %1685 = vmatpush.msra.mxu0 0.0
        %1686 = vmatpush.msra.mxu0 0.0
        %1687 = vmatpush.msra.mxu0 0.0
        %1688 = vmatpush.msra.mxu0 0.0
        %1689 = vmatpush.msra.mxu0 0.0
        %1690 = vmatpush.msra.mxu0 0.0
        %1691 = vmatpush.msra.mxu0 0.0
        %1692 = vmatpush.msra.mxu0 0.0
        %1693 = vmatpush.msra.mxu0 0.0
        %1694 = vmatpush.msra.mxu0 %v1262
        %1695 = vmatpush.msra.mxu0 %v1261
        %1696 = vmatpush.msra.mxu0 %v1260
        %1697 = vmatpush.msra.mxu0 %v1259
        %1698 = vmatmul.f32.gmra.mxu0 %v1680
        %v1699 = vpop.f32.mrf.mxu0
        %v1700 = vadd.f32 %v1677, %v1699
        %1701 = vdwg.mxu0
        %v1702 = vld [vmem:[%s14] sm:$0x1]
        %v1703 = vld [vmem:[%s15] sm:$0x1]
        %v1704 = vadd.f32 %v1253, %v1700
        %v1705 = vsel %vm819, %v1704, 0.0
        %1706 = vadd.xlane.f32.xlu0 %v1705
        %v1707 = vpop.xlane.xlu0 %1706
        %v1708 = vmul.f32 %v1707, %v1226
        %v1709 = vsub.f32 %v1704, %v1708
        %v1710 = vmul.f32 %v1709, %v1709
        %v1711 = vsel %vm819, %v1710, 0.0
        %1712 = vadd.xlane.f32.xlu0 %v1711
        %v1713 = vpop.xlane.xlu0 %1712
        %v1714 = vmul.f32 %v1713, %v1226
        %v1715 = vadd.f32 %v1714, 1e-05
        %v1716 = vrsqrt.pop %v1715
        %v1717 = vmul.f32 %v1716, %v1715
        %v1718 = vmul.f32 %v1717, %v1716
        %v1719 = vmul.f32 0.5, %v1718
        %v1720 = vsub.f32 1.5, %v1719
        %v1721 = vmul.f32 %v1716, %v1720
        %vm1722 = vweird.f32 %v1715
        %vm1723 = vweird.f32 %v1716
        %vm1724 = vmor %vm1722, %vm1723
        %v1725 = vsel %vm1724, %v1716, %v1721
        %v1726 = vmul.f32 %v1709, %v1725
        %v1728 = vperm.slane %v1702, 0
        %v1730 = vmul.f32 %v1726, %v1728
        %v1732 = vperm.slane %v1703, 0
        %v1734 = vadd.f32 %v1730, %v1732
        %v1735 = vld [vmem:[%s16] sm:$0xff]
        %v1736 = vld [vmem:[%s16 + $0x8] sm:$0xff]
        %v1737 = vld [vmem:[%s16 + $0x10] sm:$0xff]
        %v1738 = vld [vmem:[%s16 + $0x18] sm:$0xff]
        %v1739 = vld [vmem:[%s17] sm:$0x1]
        %v1741 = vperm.slane %v1739, 0
        %v1744 = vsel %vm819, %v1734, 0
        %1746 = vmatpush.msra.mxu0 0.0
        %1747 = vmatpush.msra.mxu0 0.0
        %1748 = vmatpush.msra.mxu0 0.0
        %1749 = vmatpush.msra.mxu0 0.0
        %1750 = vmatpush.msra.mxu0 0.0
        %1751 = vmatpush.msra.mxu0 0.0
        %1752 = vmatpush.msra.mxu0 0.0
        %1753 = vmatpush.msra.mxu0 0.0
        %1754 = vmatpush.msra.mxu0 0.0
        %1755 = vmatpush.msra.mxu0 0.0
        %1756 = vmatpush.msra.mxu0 0.0
        %1757 = vmatpush.msra.mxu0 0.0
        %1758 = vmatpush.msra.mxu0 %v1738
        %1759 = vmatpush.msra.mxu0 %v1737
        %1760 = vmatpush.msra.mxu0 %v1736
        %1761 = vmatpush.msra.mxu0 %v1735
        %1762 = vmatmul.f32.gmra.mxu0 %v1744
        %v1763 = vpop.f32.mrf.mxu0
        %v1764 = vadd.f32 %v1741, %v1763
        %1765 = vdwg.mxu0
        %v1766 = vmax.f32 %v1764, 0.0
        %v1767 = vld [vmem:[%s18] sm:$0xff]
        %v1768 = vld [vmem:[%s18 + $0x8] sm:$0xff]
        %v1769 = vld [vmem:[%s18 + $0x10] sm:$0xff]
        %v1770 = vld [vmem:[%s18 + $0x18] sm:$0xff]
        %v1771 = vld [vmem:[%s18 + $0x20] sm:$0xff]
        %v1772 = vld [vmem:[%s18 + $0x28] sm:$0xff]
        %v1773 = vld [vmem:[%s18 + $0x30] sm:$0xff]
        %v1774 = vld [vmem:[%s18 + $0x38] sm:$0xff]
        %v1775 = vld [vmem:[%s19] sm:$0x1]
        %v1777 = vperm.slane %v1775, 0
        %vm1779 = vcmask 523264
        %v1781 = vsel %vm1779, %v1766, 0
        %1783 = vmatpush.msra.mxu0 0.0
        %1784 = vmatpush.msra.mxu0 0.0
        %1785 = vmatpush.msra.mxu0 0.0
        %1786 = vmatpush.msra.mxu0 0.0
        %1787 = vmatpush.msra.mxu0 0.0
        %1788 = vmatpush.msra.mxu0 0.0
        %1789 = vmatpush.msra.mxu0 0.0
        %1790 = vmatpush.msra.mxu0 0.0
        %1791 = vmatpush.msra.mxu0 %v1774
        %1792 = vmatpush.msra.mxu0 %v1773
        %1793 = vmatpush.msra.mxu0 %v1772
        %1794 = vmatpush.msra.mxu0 %v1771
        %1795 = vmatpush.msra.mxu0 %v1770
        %1796 = vmatpush.msra.mxu0 %v1769
        %1797 = vmatpush.msra.mxu0 %v1768
        %1798 = vmatpush.msra.mxu0 %v1767
        %1799 = vmatmul.f32.gmra.mxu0 %v1781
        %v1800 = vpop.f32.mrf.mxu0
        %v1801 = vadd.f32 %v1777, %v1800
        %1802 = vdwg.mxu0
        %v1803 = vld [vmem:[%s20] sm:$0x1]
        %v1804 = vld [vmem:[%s21] sm:$0x1]
        %v1805 = vadd.f32 %v1734, %v1801
        %v1806 = vsel %vm819, %v1805, 0.0
        %1807 = vadd.xlane.f32.xlu0 %v1806
        %v1808 = vpop.xlane.xlu0 %1807
        %v1809 = vmul.f32 %v1808, %v1226
        %v1810 = vsub.f32 %v1805, %v1809
        %v1811 = vmul.f32 %v1810, %v1810
        %v1812 = vsel %vm819, %v1811, 0.0
        %1813 = vadd.xlane.f32.xlu0 %v1812
        %v1814 = vpop.xlane.xlu0 %1813
        %v1815 = vmul.f32 %v1814, %v1226
        %v1816 = vadd.f32 %v1815, 1e-05
        %v1817 = vrsqrt.pop %v1816
        %v1818 = vmul.f32 %v1817, %v1816
        %v1819 = vmul.f32 %v1818, %v1817
        %v1820 = vmul.f32 0.5, %v1819
        %v1821 = vsub.f32 1.5, %v1820
        %v1822 = vmul.f32 %v1817, %v1821
        %vm1823 = vweird.f32 %v1816
        %vm1824 = vweird.f32 %v1817
        %vm1825 = vmor %vm1823, %vm1824
        %v1826 = vsel %vm1825, %v1817, %v1822
        %v1827 = vmul.f32 %v1810, %v1826
        %v1829 = vperm.slane %v1803, 0
        %v1831 = vmul.f32 %v1827, %v1829
        %v1833 = vperm.slane %v1804, 0
        %v1835 = vadd.f32 %v1831, %v1833
        %1836 = vst.msk [vmem:[%s801] sm:$0xff] %vm819, %v1835
        %p1837 = scmp.lt.s32.totalorder %s42, 1
        %s1838 = scalar_select %p1837, %s42, 1
        %s1839 = smul.addr %s1838, 8
        %s1840 = scalar_lea.vmem %s22, %s1839
        %s1841 = sand.u32 %s558, 1
        %s1842 = scalar_lea.sflag [#allocation3], %s1841
        %s1843 = sand.u32 %s558, 1
        %s1844 = smul.addr %s1843, 32
        %s1845 = scalar_lea.vmem [#allocation2], %s1844
        %s1846 = sand.u32 %s584, 1
        %s1847 = scalar_lea.sflag [#allocation5], %s1846
        %s1848 = sand.u32 %s584, 1
        %s1849 = smul.addr %s1848, 32
        %s1850 = scalar_lea.vmem [#allocation4], %s1849
        // Predicated region
        $region109: #{decoder_forward.3} parent=107 // pred_check
          %p1851 = pneg %p542
        $region110: #{decoder_forward.3} parent=107 // pred_check_branch
          %1853 = sbr.rel (%p1851) target = $region112
        $region111: #{decoder_forward.3} parent=107 // pred_region
          _
        $region112: #{decoder_forward.3} parent=107 // pred_fallthru
          _
        // Predicated region
        $region113: #{decoder_forward.3} parent=107 // pred_check
          %p1854 = pneg %p568
        $region114: #{decoder_forward.3} parent=107 // pred_check_branch
          %1856 = sbr.rel (%p1854) target = $region116
        $region115: #{decoder_forward.3} parent=107 // pred_region
          %1858 = vsyncadd %s1842, 0
          %s1859 = smul.addr %s42, 4
          %s1860 = smul.addr %s1859, 8
          %s1861 = scalar_lea.hbm %s23, %s1860
          %s1862 = sshll.u32 %s1845, 4
          %s1863 = int_to_ptr.vmem [resolvable:$true] %s1862
          %s1864 = sshll.u32 %s1861, 4
          %s1865 = int_to_ptr.hbm [resolvable:$true] %s1864
          %1870 = dma.vmem_to_hbm [thread:$0]  %s1863, 512, %s1865, %s1842, 128, 128, 8
        $region116: #{decoder_forward.3} parent=107 // pred_fallthru
          _
        // Predicated region
        $region117: #{decoder_forward.3} parent=107 // pred_check
          %p1871 = pneg %p594
        $region118: #{decoder_forward.3} parent=107 // pred_check_branch
          %1873 = sbr.rel (%p1871) target = $region120
        $region119: #{decoder_forward.3} parent=107 // pred_region
          %1875 = vsyncadd %s1847, 0
          %s1876 = smul.addr %s42, 4
          %s1877 = smul.addr %s1876, 8
          %s1878 = scalar_lea.hbm %s24, %s1877
          %s1879 = sshll.u32 %s1850, 4
          %s1880 = int_to_ptr.vmem [resolvable:$true] %s1879
          %s1881 = sshll.u32 %s1878, 4
          %s1882 = int_to_ptr.hbm [resolvable:$true] %s1881
          %1887 = dma.vmem_to_hbm [thread:$0]  %s1880, 512, %s1882, %s1847, 128, 128, 8
        $region120: #{decoder_forward.3} parent=107 // pred_fallthru
          _
      $region108: #{decoder_forward.3} parent=5 // pred_fallthru
        _
      %p1888 = scmp.le.s32.totalorder 2, %s37
      // Predicated region
      $region121: #{decoder_forward.3} parent=5 // pred_check
        %p1889 = pneg %p1888
      $region122: #{decoder_forward.3} parent=5 // pred_check_branch
        %1891 = sbr.rel (%p1889) target = $region124
      $region123: #{decoder_forward.3} parent=5 // pred_region
        %s1892 = ssub.s32 %s37, 2
        // Predicated region
        $region125: #{decoder_forward.3} parent=123 // pred_check
          %p1893 = pneg %p548
        $region126: #{decoder_forward.3} parent=123 // pred_check_branch
          %1895 = sbr.rel (%p1893) target = $region128
        $region127: #{decoder_forward.3} parent=123 // pred_region
          %p1896 = scmp.lt.s32.totalorder %s43, 1
          %s1897 = scalar_select %p1896, %s43, 1
          %s1898 = smul.addr %s1897, 8
          %s1899 = scalar_lea.vmem %s22, %s1898
        $region128: #{decoder_forward.3} parent=123 // pred_fallthru
          _
        // Predicated region
        $region129: #{decoder_forward.3} parent=123 // pred_check
          %p1900 = pneg %p574
        $region130: #{decoder_forward.3} parent=123 // pred_check_branch
          %1902 = sbr.rel (%p1900) target = $region132
        $region131: #{decoder_forward.3} parent=123 // pred_region
          %s1903 = sand.u32 %s559, 1
          %s1904 = scalar_lea.sflag [#allocation3], %s1903
          %s1905 = sand.u32 %s559, 1
          %s1906 = smul.addr %s1905, 32
          %s1907 = scalar_lea.vmem [#allocation2], %s1906
          %1909 = dma.done %s1904, 512
        $region132: #{decoder_forward.3} parent=123 // pred_fallthru
          _
        // Predicated region
        $region133: #{decoder_forward.3} parent=123 // pred_check
          %p1910 = pneg %p600
        $region134: #{decoder_forward.3} parent=123 // pred_check_branch
          %1912 = sbr.rel (%p1910) target = $region136
        $region135: #{decoder_forward.3} parent=123 // pred_region
          %s1913 = sand.u32 %s585, 1
          %s1914 = scalar_lea.sflag [#allocation5], %s1913
          %s1915 = sand.u32 %s585, 1
          %s1916 = smul.addr %s1915, 32
          %s1917 = scalar_lea.vmem [#allocation4], %s1916
          %1919 = dma.done %s1914, 512
        $region136: #{decoder_forward.3} parent=123 // pred_fallthru
          _
      $region124: #{decoder_forward.3} parent=5 // pred_fallthru
        _
    $region6: #{decoder_forward.3} parent=1 // loop_footer
      %s41 = sadd.s32 1, %s37
    $region7: #{decoder_forward.3} parent=1 // loop_footer_branch
      %36 = sbr.rel target = $region3
    $region8: #{decoder_forward.3} parent=1 // loop_exit
      _
    %1920 = vsyncpa [#allocation3], 1
    %s1921 = scalar_lea.sflag [#allocation3], 1
    %1922 = vsyncpa %s1921, 1
    %1923 = vsyncpa [#allocation5], 1
    %s1924 = scalar_lea.sflag [#allocation5], 1
    %1925 = vsyncpa %s1924, 1

</llo_original>
